<compile_context>
chip_gen: v5e
topology: v5e:2x2
jax: 0.10.0
libtpu: 0.0.40
codegen_flags: <defaults>
</compile_context>

<pallas_src>
import functools

import numpy as np
import jax
import jax.numpy as jnp
from jax.experimental import pallas as pl
from jax.experimental.pallas import tpu as pltpu

COLOR_CHANNELS = 3
FRAME_STACK_SIZE = 4
NUM_ACTIONS = 2
HIDDEN = 512

_VMEM_LIMIT = 32 * 1024 * 1024  # safe scoped-VMEM cap on v5e / v6e / v7x


def _conv_out(n, k, s):
    return (n - k) // s + 1


def _silu(x):
    # SiLU in f32 via tanh: one EUP push per element, numerically exact.
    return x * (0.5 * jnp.tanh(0.5 * x) + 0.5)


# ------------------------------ Pallas kernel ------------------------------ #

def duel_dqn_kernel(col1_ref, w1_ref, b1_ref,
                    sel2_ref, w2_ref, b2_ref,
                    sel3_ref, w3_ref, b3_ref,
                    wh1_ref, bh1_ref, wh2_ref, bh2_ref,
                    o_ref, *, num_actions):
    """Whole DUEL_DQN forward for one batch example (one grid step)."""
    f32 = jnp.float32
    bf16 = jnp.bfloat16

    # conv1: one im2col GEMM over this example's oh1*ow1 patches.
    h1 = jnp.dot(col1_ref[0], w1_ref[...], preferred_element_type=f32)
    h1 = _silu(h1 + b1_ref[...]).astype(bf16)                      # (P1, 32)

    # conv2: per-tap (32,64) weights; rows gathered with exact one-hot matmuls.
    n_tap2, p2, _ = sel2_ref.shape
    h2 = jnp.zeros((p2, w2_ref.shape[2]), f32)
    for t in range(n_tap2):
        rows = jnp.dot(sel2_ref[t], h1, preferred_element_type=f32).astype(bf16)
        h2 = h2 + jnp.dot(rows, w2_ref[t], preferred_element_type=f32)
    h2 = _silu(h2 + b2_ref[...]).astype(bf16)                      # (P2, 64)

    # conv3: same per-tap structure.
    n_tap3, p3, _ = sel3_ref.shape
    h3 = jnp.zeros((p3, w3_ref.shape[2]), f32)
    for t in range(n_tap3):
        rows = jnp.dot(sel3_ref[t], h2, preferred_element_type=f32).astype(bf16)
        h3 = h3 + jnp.dot(rows, w3_ref[t], preferred_element_type=f32)
    h3 = _silu(h3 + b3_ref[...]).astype(bf16)                      # (P3, 64)

    # Head layer 1: value||advantage in one lane-dense (.., 1024) matmul.
    # PyTorch's NCHW flatten order is folded per spatial position at init,
    # so no in-kernel reshape is needed.
    hidden2 = wh1_ref.shape[2]
    hh = jnp.zeros((1, hidden2), f32)
    for p in range(p3):
        hh = hh + jnp.dot(h3[p:p + 1, :], wh1_ref[p], preferred_element_type=f32)
    hh = _silu(hh + bh1_ref[...]).astype(bf16)                     # (1, 1024)

    # Head layer 2: block-diagonal [value | advantage] + dueling combine.
    va = jnp.dot(hh, wh2_ref[...], preferred_element_type=f32) + bh2_ref[...]
    v = va[:, 0:1]
    a = va[:, 1:1 + num_actions]
    q = v + a - jnp.mean(a, axis=1, keepdims=True)
    o_ref[0] = q.astype(o_ref.dtype)                               # (1, A)


# ------------------------------ Pallas wrapper ------------------------------ #

def _rep_spec(arr):
    """Full-array block replicated across the batch grid."""
    n = arr.ndim
    return pl.BlockSpec(arr.shape, lambda b, n=n: (0,) * n)


def duel_dqn_forward(x, kp, num_actions=NUM_ACTIONS):
    """x: (B, T, C, H, W) f32 -> q_values: (B, num_actions) f32."""
    B = x.shape[0]
    col1 = _im2col_conv1(x)                                        # (B, P1, K1) bf16
    _, P1, K1 = col1.shape

    kern = functools.partial(duel_dqn_kernel, num_actions=num_actions)
    out = pl.pallas_call(
        kern,
        out_shape=jax.ShapeDtypeStruct((B, 1, num_actions), jnp.float32),
        grid=(B,),
        in_specs=[
            pl.BlockSpec((1, P1, K1), lambda b: (b, 0, 0)),
            _rep_spec(kp['w1']), _rep_spec(kp['b1']),
            _rep_spec(kp['sel2']), _rep_spec(kp['w2']), _rep_spec(kp['b2']),
            _rep_spec(kp['sel3']), _rep_spec(kp['w3']), _rep_spec(kp['b3']),
            _rep_spec(kp['wh1']), _rep_spec(kp['bh1']),
            _rep_spec(kp['wh2']), _rep_spec(kp['bh2']),
        ],
        out_specs=pl.BlockSpec((1, 1, num_actions), lambda b: (b, 0, 0)),
        compiler_params=pltpu.CompilerParams(
            # tiny batch: keep the grid on one core so the weight DMA is not
            # duplicated; only split across cores once there is real work.
            dimension_semantics=("arbitrary",) if B < 16 else ("parallel",),
            vmem_limit_bytes=_VMEM_LIMIT),
    )(col1, kp['w1'], kp['b1'], kp['sel2'], kp['w2'], kp['b2'],
      kp['sel3'], kp['w3'], kp['b3'], kp['wh1'], kp['bh1'], kp['wh2'], kp['bh2'])
    return out.reshape(B, num_actions)


# ------------------- XLA-side glue: conv1 im2col (tiny) --------------------- #

def _im2col_conv1(x):
    """x: (B,T,C,H,W) -> (B, oh1*ow1, 8*8*T*C) bf16, feature order (ky,kx,c)."""
    B, T, C, H, W = x.shape
    cin = T * C
    xh = x.astype(jnp.bfloat16).reshape(B, cin, H, W).transpose(0, 2, 3, 1)  # NHWC
    oh = _conv_out(H, 8, 4)
    ow = _conv_out(W, 8, 4)
    if H % 4 == 0 and W % 4 == 0:
        # kernel=8/stride=4: an 8x8 patch is a 2x2 group of 4x4 blocks -> 4 slices.
        xb = xh.reshape(B, H // 4, 4, W // 4, 4, cin)
        rows = []
        for di in range(2):
            cols = []
            for dj in range(2):
                p = xb[:, di:di + oh, :, dj:dj + ow, :, :]         # (B,oh,4,ow,4,c)
                cols.append(p.transpose(0, 1, 3, 2, 4, 5))         # (B,oh,ow,4,4,c)
            rows.append(jnp.concatenate(cols, axis=4))             # (B,oh,ow,4,8,c)
        col = jnp.concatenate(rows, axis=3)                        # (B,oh,ow,8,8,c)
    else:
        # Generic fallback: one strided slice per kernel tap.
        taps = []
        for i in range(8):
            for j in range(8):
                taps.append(xh[:, i:i + 4 * oh:4, j:j + 4 * ow:4, :])
        col = jnp.stack(taps, axis=3).reshape(B, oh, ow, 8, 8, cin)
    return col.reshape(B, oh * ow, 8 * 8 * cin)


# ----------------------- Parameter prep (once, at init) --------------------- #

def init_torch_params(key, in_channels, stack_size, num_actions, h, w):
    """PyTorch-layout parameters (Conv2d OIHW, Linear (out,in)), default-style init."""
    oh3 = _conv_out(_conv_out(_conv_out(h, 8, 4), 4, 2), 3, 2)
    ow3 = _conv_out(_conv_out(_conv_out(w, 8, 4), 4, 2), 3, 2)
    flat_dim = 64 * oh3 * ow3

    def u(k, fan_in, shape):
        bound = 1.0 / float(fan_in) ** 0.5
        return jax.random.uniform(k, shape, jnp.float32, -bound, bound)

    ks = jax.random.split(key, 14)
    cin = in_channels * stack_size
    return {
        'w1': u(ks[0], cin * 64, (32, cin, 8, 8)),   'b1': u(ks[1], cin * 64, (32,)),
        'w2': u(ks[2], 32 * 16, (64, 32, 4, 4)),     'b2': u(ks[3], 32 * 16, (64,)),
        'w3': u(ks[4], 64 * 9, (64, 64, 3, 3)),      'b3': u(ks[5], 64 * 9, (64,)),
        'wv1': u(ks[6], flat_dim, (HIDDEN, flat_dim)), 'bv1': u(ks[7], flat_dim, (HIDDEN,)),
        'wv2': u(ks[8], HIDDEN, (1, HIDDEN)),          'bv2': u(ks[9], HIDDEN, (1,)),
        'wa1': u(ks[10], flat_dim, (HIDDEN, flat_dim)), 'ba1': u(ks[11], flat_dim, (HIDDEN,)),
        'wa2': u(ks[12], HIDDEN, (num_actions, HIDDEN)), 'ba2': u(ks[13], HIDDEN, (num_actions,)),
    }


def prepare_kernel_params(tp, h, w):
    """PyTorch-layout params -> kernel-layout params (bf16 weights, f32 biases)."""
    oh1, ow1 = _conv_out(h, 8, 4), _conv_out(w, 8, 4)
    oh2, ow2 = _conv_out(oh1, 4, 2), _conv_out(ow1, 4, 2)
    oh3, ow3 = _conv_out(oh2, 3, 2), _conv_out(ow2, 3, 2)
    p1, p2, p3 = oh1 * ow1, oh2 * ow2, oh3 * ow3

    # conv1 im2col weight: feature order (ky, kx, c).
    oc1, ic1, k1, _ = tp['w1'].shape
    w1 = np.asarray(tp['w1'], np.float32).transpose(2, 3, 1, 0).reshape(k1 * k1 * ic1, oc1)

    # conv2: one-hot row selection per tap (exact) + per-tap (32, 64) weights.
    sel2 = np.zeros((16, p2, p1), np.float32)
    for oy in range(oh2):
        for ox in range(ow2):
            for ky in range(4):
                for kx in range(4):
                    src = (2 * oy + ky) * ow1 + (2 * ox + kx)
                    sel2[ky * 4 + kx, oy * ow2 + ox, src] = 1.0
    w2t = np.asarray(tp['w2'], np.float32).transpose(2, 3, 1, 0).reshape(16, 32, 64)

    # conv3: same structure.
    sel3 = np.zeros((9, p3, p2), np.float32)
    for oy in range(oh3):
        for ox in range(ow3):
            for ky in range(3):
                for kx in range(3):
                    src = (2 * oy + ky) * ow2 + (2 * ox + kx)
                    sel3[ky * 3 + kx, oy * ow3 + ox, src] = 1.0
    w3t = np.asarray(tp['w3'], np.float32).transpose(2, 3, 1, 0).reshape(9, 64, 64)

    # Head layer 1: value||advantage concatenated (lane-dense 1024 columns),
    # with PyTorch's NCHW flatten order folded per spatial position.
    oc3 = tp['w3'].shape[0]
    wv1 = np.asarray(tp['wv1'], np.float32).T                       # (flat, 512)
    wa1 = np.asarray(tp['wa1'], np.float32).T
    wh1 = np.concatenate([wv1, wa1], axis=1)                        # (flat, 1024)
    wh1p = wh1.reshape(oc3, p3, 2 * HIDDEN).transpose(1, 0, 2)      # (p3, 64, 1024)
    bh1 = np.concatenate([np.asarray(tp['bv1'], np.float32),
                          np.asarray(tp['ba1'], np.float32)])

    # Head layer 2 as one block-diagonal matmul: col 0 = value, cols 1.. = advantage.
    na = tp['wa2'].shape[0]
    wh2 = np.zeros((2 * HIDDEN, 1 + na), np.float32)
    wh2[:HIDDEN, 0] = np.asarray(tp['wv2'], np.float32)[0]
    wh2[HIDDEN:, 1:] = np.asarray(tp['wa2'], np.float32).T
    bh2 = np.concatenate([np.asarray(tp['bv2'], np.float32),
                          np.asarray(tp['ba2'], np.float32)])

    bf = lambda a: jnp.asarray(a, jnp.bfloat16)
    fr = lambda a: jnp.asarray(a, jnp.float32).reshape(1, -1)
    return {
        'w1': bf(w1), 'b1': fr(tp['b1']),
        'sel2': bf(sel2), 'w2': bf(w2t), 'b2': fr(tp['b2']),
        'sel3': bf(sel3), 'w3': bf(w3t), 'b3': fr(tp['b3']),
        'wh1': bf(wh1p), 'bh1': fr(bh1),
        'wh2': bf(wh2), 'bh2': fr(bh2),
    }


# ---------------------- Pure-JAX reference (PyTorch-parity) ------------------ #

def reference_forward(x, tp, num_actions):
    """Mirrors the PyTorch module (and the kernel's bf16-in / f32-accumulate path)."""
    B, T, C, H, W = x.shape
    h = x.reshape(B, T * C, H, W)

    def conv(v, w, b, s):
        y = jax.lax.conv_general_dilated(
            v.astype(jnp.bfloat16), w.astype(jnp.bfloat16), (s, s), 'VALID',
            dimension_numbers=('NCHW', 'OIHW', 'NCHW'),
            preferred_element_type=jnp.float32)
        return jax.nn.silu(y + b.reshape(1, -1, 1, 1))

    h = conv(h, tp['w1'], tp['b1'], 4)
    h = conv(h, tp['w2'], tp['b2'], 2)
    h = conv(h, tp['w3'], tp['b3'], 2)
    f = h.reshape(B, -1)                                    # NCHW flatten (PyTorch order)

    def lin(v, w, b):
        return jnp.dot(v.astype(jnp.bfloat16), w.astype(jnp.bfloat16).T,
                       preferred_element_type=jnp.float32) + b

    val = lin(jax.nn.silu(lin(f, tp['wv1'], tp['bv1'])), tp['wv2'], tp['bv2'])
    adv = lin(jax.nn.silu(lin(f, tp['wa1'], tp['ba1'])), tp['wa2'], tp['ba2'])
    return val + adv - adv.mean(axis=1, keepdims=True)


# ---------------------------------- Main ------------------------------------ #

if __name__ == "__main__":
    B, T, C = 2, FRAME_STACK_SIZE, COLOR_CHANNELS
    H = W = 36   # smallest spatial size surviving the 8/4 -> 4/2 -> 3/2 conv stack

    key = jax.random.PRNGKey(0)
    kx_, kp_ = jax.random.split(key)
    x = jax.random.normal(kx_, (B, T, C, H, W), dtype=jnp.float32)

    torch_params = init_torch_params(kp_, C, T, NUM_ACTIONS, H, W)
    kernel_params = prepare_kernel_params(torch_params, H, W)

    fwd = jax.jit(functools.partial(duel_dqn_forward, num_actions=NUM_ACTIONS))
    q = fwd(x, kernel_params)
    jax.block_until_ready(q)
    assert q.shape == (B, NUM_ACTIONS)

    q_ref = reference_forward(x, torch_params, NUM_ACTIONS)
    assert jnp.allclose(q, q_ref, rtol=2e-2, atol=2e-2), (q, q_ref)

    print("KERNEL_OK")
</pallas_src>

<mosaic_0001>
module attributes {stable_mosaic.version = 11 : i64} {
  func.func @duel_dqn_kernel(%arg0: i32, %arg1: memref<1x64x768xbf16, #tpu.memory_space<vmem>>, %arg2: memref<768x32xbf16, #tpu.memory_space<vmem>>, %arg3: memref<1x32xf32, #tpu.memory_space<vmem>>, %arg4: memref<16x9x64xbf16, #tpu.memory_space<vmem>>, %arg5: memref<16x32x64xbf16, #tpu.memory_space<vmem>>, %arg6: memref<1x64xf32, #tpu.memory_space<vmem>>, %arg7: memref<9x1x9xbf16, #tpu.memory_space<vmem>>, %arg8: memref<9x64x64xbf16, #tpu.memory_space<vmem>>, %arg9: memref<1x64xf32, #tpu.memory_space<vmem>>, %arg10: memref<1x64x1024xbf16, #tpu.memory_space<vmem>>, %arg11: memref<1x1024xf32, #tpu.memory_space<vmem>>, %arg12: memref<1024x3xbf16, #tpu.memory_space<vmem>>, %arg13: memref<1x3xf32, #tpu.memory_space<vmem>>, %arg14: memref<1x1x2xf32, #tpu.memory_space<vmem>>) attributes {dimension_semantics = [#tpu.dimension_semantics<arbitrary>], iteration_bounds = array<i64: 2>, scalar_prefetch = 0 : i64, scratch_operands = 0 : i64, tpu.core_type = #tpu.core_type<tc>, window_params = [{transform_indices = @transform_0, window_bounds = array<i64: 1, 64, 768>}, {pipeline_mode = #tpu.pipeline_mode<synchronous>, transform_indices = @transform_1, window_bounds = array<i64: 768, 32>}, {pipeline_mode = #tpu.pipeline_mode<synchronous>, transform_indices = @transform_2, window_bounds = array<i64: 1, 32>}, {pipeline_mode = #tpu.pipeline_mode<synchronous>, transform_indices = @transform_3, window_bounds = array<i64: 16, 9, 64>}, {pipeline_mode = #tpu.pipeline_mode<synchronous>, transform_indices = @transform_4, window_bounds = array<i64: 16, 32, 64>}, {pipeline_mode = #tpu.pipeline_mode<synchronous>, transform_indices = @transform_5, window_bounds = array<i64: 1, 64>}, {pipeline_mode = #tpu.pipeline_mode<synchronous>, transform_indices = @transform_6, window_bounds = array<i64: 9, 1, 9>}, {pipeline_mode = #tpu.pipeline_mode<synchronous>, transform_indices = @transform_7, window_bounds = array<i64: 9, 64, 64>}, {pipeline_mode = #tpu.pipeline_mode<synchronous>, transform_indices = @transform_8, window_bounds = array<i64: 1, 64>}, {pipeline_mode = #tpu.pipeline_mode<synchronous>, transform_indices = @transform_9, window_bounds = array<i64: 1, 64, 1024>}, {pipeline_mode = #tpu.pipeline_mode<synchronous>, transform_indices = @transform_10, window_bounds = array<i64: 1, 1024>}, {pipeline_mode = #tpu.pipeline_mode<synchronous>, transform_indices = @transform_11, window_bounds = array<i64: 1024, 3>}, {pipeline_mode = #tpu.pipeline_mode<synchronous>, transform_indices = @transform_12, window_bounds = array<i64: 1, 3>}, {transform_indices = @transform_13, window_bounds = array<i64: 1, 1, 2>}]} {
    %c0 = arith.constant 0 : index
    %c0_0 = arith.constant 0 : index
    %c0_1 = arith.constant 0 : index
    %0 = vector.load %arg1[%c0, %c0_0, %c0_1] : memref<1x64x768xbf16, #tpu.memory_space<vmem>>, vector<1x64x768xbf16>
    %1 = vector.shape_cast %0 : vector<1x64x768xbf16> to vector<64x768xbf16>
    %c0_2 = arith.constant 0 : index
    %c0_3 = arith.constant 0 : index
    %2 = vector.load %arg2[%c0_2, %c0_3] : memref<768x32xbf16, #tpu.memory_space<vmem>>, vector<768x32xbf16>
    %cst = arith.constant dense<0.000000e+00> : vector<64x32xf32>
    %3 = tpu.matmul %1, %2, %cst {dimension_numbers = #tpu.dot_dimension_numbers<[1], [0], [0], [1], [0, 0, 1, 1], [], []>} : vector<64x768xbf16>, vector<768x32xbf16>, vector<64x32xf32> -> vector<64x32xf32>
    %c0_4 = arith.constant 0 : index
    %c0_5 = arith.constant 0 : index
    %4 = vector.load %arg3[%c0_4, %c0_5] : memref<1x32xf32, #tpu.memory_space<vmem>>, vector<1x32xf32>
    %5 = vector.broadcast %4 : vector<1x32xf32> to vector<64x32xf32>
    %6 = arith.addf %3, %5 : vector<64x32xf32>
    %cst_6 = arith.constant 5.000000e-01 : f32
    %7 = vector.broadcast %cst_6 : f32 to vector<64x32xf32>
    %8 = arith.mulf %7, %6 : vector<64x32xf32>
    %9 = math.tanh %8 : vector<64x32xf32>
    %cst_7 = arith.constant 5.000000e-01 : f32
    %10 = vector.broadcast %cst_7 : f32 to vector<64x32xf32>
    %11 = arith.mulf %10, %9 : vector<64x32xf32>
    %cst_8 = arith.constant 5.000000e-01 : f32
    %12 = vector.broadcast %cst_8 : f32 to vector<64x32xf32>
    %13 = arith.addf %11, %12 : vector<64x32xf32>
    %14 = arith.mulf %6, %13 : vector<64x32xf32>
    %15 = arith.truncf %14 : vector<64x32xf32> to vector<64x32xbf16>
    %cst_9 = arith.constant 0.000000e+00 : f32
    %16 = vector.broadcast %cst_9 : f32 to vector<9x64xf32>
    %c0_10 = arith.constant 0 : index
    %c0_11 = arith.constant 0 : index
    %c0_12 = arith.constant 0 : index
    %17 = vector.load %arg4[%c0_10, %c0_11, %c0_12] : memref<16x9x64xbf16, #tpu.memory_space<vmem>>, vector<1x9x64xbf16>
    %18 = vector.shape_cast %17 : vector<1x9x64xbf16> to vector<9x64xbf16>
    %cst_13 = arith.constant dense<0.000000e+00> : vector<9x32xf32>
    %19 = tpu.matmul %18, %15, %cst_13 {dimension_numbers = #tpu.dot_dimension_numbers<[1], [0], [0], [1], [0, 0, 1, 1], [], []>} : vector<9x64xbf16>, vector<64x32xbf16>, vector<9x32xf32> -> vector<9x32xf32>
    %20 = arith.truncf %19 : vector<9x32xf32> to vector<9x32xbf16>
    %c0_14 = arith.constant 0 : index
    %c0_15 = arith.constant 0 : index
    %c0_16 = arith.constant 0 : index
    %21 = vector.load %arg5[%c0_14, %c0_15, %c0_16] : memref<16x32x64xbf16, #tpu.memory_space<vmem>>, vector<1x32x64xbf16>
    %22 = vector.shape_cast %21 : vector<1x32x64xbf16> to vector<32x64xbf16>
    %cst_17 = arith.constant dense<0.000000e+00> : vector<9x64xf32>
    %23 = tpu.matmul %20, %22, %cst_17 {dimension_numbers = #tpu.dot_dimension_numbers<[1], [0], [0], [1], [0, 0, 1, 1], [], []>} : vector<9x32xbf16>, vector<32x64xbf16>, vector<9x64xf32> -> vector<9x64xf32>
    %24 = arith.addf %16, %23 : vector<9x64xf32>
    %c1 = arith.constant 1 : index
    %c0_18 = arith.constant 0 : index
    %c0_19 = arith.constant 0 : index
    %25 = vector.load %arg4[%c1, %c0_18, %c0_19] : memref<16x9x64xbf16, #tpu.memory_space<vmem>>, vector<1x9x64xbf16>
    %26 = vector.shape_cast %25 : vector<1x9x64xbf16> to vector<9x64xbf16>
    %cst_20 = arith.constant dense<0.000000e+00> : vector<9x32xf32>
    %27 = tpu.matmul %26, %15, %cst_20 {dimension_numbers = #tpu.dot_dimension_numbers<[1], [0], [0], [1], [0, 0, 1, 1], [], []>} : vector<9x64xbf16>, vector<64x32xbf16>, vector<9x32xf32> -> vector<9x32xf32>
    %28 = arith.truncf %27 : vector<9x32xf32> to vector<9x32xbf16>
    %c1_21 = arith.constant 1 : index
    %c0_22 = arith.constant 0 : index
    %c0_23 = arith.constant 0 : index
    %29 = vector.load %arg5[%c1_21, %c0_22, %c0_23] : memref<16x32x64xbf16, #tpu.memory_space<vmem>>, vector<1x32x64xbf16>
    %30 = vector.shape_cast %29 : vector<1x32x64xbf16> to vector<32x64xbf16>
    %cst_24 = arith.constant dense<0.000000e+00> : vector<9x64xf32>
    %31 = tpu.matmul %28, %30, %cst_24 {dimension_numbers = #tpu.dot_dimension_numbers<[1], [0], [0], [1], [0, 0, 1, 1], [], []>} : vector<9x32xbf16>, vector<32x64xbf16>, vector<9x64xf32> -> vector<9x64xf32>
    %32 = arith.addf %24, %31 : vector<9x64xf32>
    %c2 = arith.constant 2 : index
    %c0_25 = arith.constant 0 : index
    %c0_26 = arith.constant 0 : index
    %33 = vector.load %arg4[%c2, %c0_25, %c0_26] : memref<16x9x64xbf16, #tpu.memory_space<vmem>>, vector<1x9x64xbf16>
    %34 = vector.shape_cast %33 : vector<1x9x64xbf16> to vector<9x64xbf16>
    %cst_27 = arith.constant dense<0.000000e+00> : vector<9x32xf32>
    %35 = tpu.matmul %34, %15, %cst_27 {dimension_numbers = #tpu.dot_dimension_numbers<[1], [0], [0], [1], [0, 0, 1, 1], [], []>} : vector<9x64xbf16>, vector<64x32xbf16>, vector<9x32xf32> -> vector<9x32xf32>
    %36 = arith.truncf %35 : vector<9x32xf32> to vector<9x32xbf16>
    %c2_28 = arith.constant 2 : index
    %c0_29 = arith.constant 0 : index
    %c0_30 = arith.constant 0 : index
    %37 = vector.load %arg5[%c2_28, %c0_29, %c0_30] : memref<16x32x64xbf16, #tpu.memory_space<vmem>>, vector<1x32x64xbf16>
    %38 = vector.shape_cast %37 : vector<1x32x64xbf16> to vector<32x64xbf16>
    %cst_31 = arith.constant dense<0.000000e+00> : vector<9x64xf32>
    %39 = tpu.matmul %36, %38, %cst_31 {dimension_numbers = #tpu.dot_dimension_numbers<[1], [0], [0], [1], [0, 0, 1, 1], [], []>} : vector<9x32xbf16>, vector<32x64xbf16>, vector<9x64xf32> -> vector<9x64xf32>
    %40 = arith.addf %32, %39 : vector<9x64xf32>
    %c3 = arith.constant 3 : index
    %c0_32 = arith.constant 0 : index
    %c0_33 = arith.constant 0 : index
    %41 = vector.load %arg4[%c3, %c0_32, %c0_33] : memref<16x9x64xbf16, #tpu.memory_space<vmem>>, vector<1x9x64xbf16>
    %42 = vector.shape_cast %41 : vector<1x9x64xbf16> to vector<9x64xbf16>
    %cst_34 = arith.constant dense<0.000000e+00> : vector<9x32xf32>
    %43 = tpu.matmul %42, %15, %cst_34 {dimension_numbers = #tpu.dot_dimension_numbers<[1], [0], [0], [1], [0, 0, 1, 1], [], []>} : vector<9x64xbf16>, vector<64x32xbf16>, vector<9x32xf32> -> vector<9x32xf32>
    %44 = arith.truncf %43 : vector<9x32xf32> to vector<9x32xbf16>
    %c3_35 = arith.constant 3 : index
    %c0_36 = arith.constant 0 : index
    %c0_37 = arith.constant 0 : index
    %45 = vector.load %arg5[%c3_35, %c0_36, %c0_37] : memref<16x32x64xbf16, #tpu.memory_space<vmem>>, vector<1x32x64xbf16>
    %46 = vector.shape_cast %45 : vector<1x32x64xbf16> to vector<32x64xbf16>
    %cst_38 = arith.constant dense<0.000000e+00> : vector<9x64xf32>
    %47 = tpu.matmul %44, %46, %cst_38 {dimension_numbers = #tpu.dot_dimension_numbers<[1], [0], [0], [1], [0, 0, 1, 1], [], []>} : vector<9x32xbf16>, vector<32x64xbf16>, vector<9x64xf32> -> vector<9x64xf32>
    %48 = arith.addf %40, %47 : vector<9x64xf32>
    %c4 = arith.constant 4 : index
    %c0_39 = arith.constant 0 : index
    %c0_40 = arith.constant 0 : index
    %49 = vector.load %arg4[%c4, %c0_39, %c0_40] : memref<16x9x64xbf16, #tpu.memory_space<vmem>>, vector<1x9x64xbf16>
    %50 = vector.shape_cast %49 : vector<1x9x64xbf16> to vector<9x64xbf16>
    %cst_41 = arith.constant dense<0.000000e+00> : vector<9x32xf32>
    %51 = tpu.matmul %50, %15, %cst_41 {dimension_numbers = #tpu.dot_dimension_numbers<[1], [0], [0], [1], [0, 0, 1, 1], [], []>} : vector<9x64xbf16>, vector<64x32xbf16>, vector<9x32xf32> -> vector<9x32xf32>
    %52 = arith.truncf %51 : vector<9x32xf32> to vector<9x32xbf16>
    %c4_42 = arith.constant 4 : index
    %c0_43 = arith.constant 0 : index
    %c0_44 = arith.constant 0 : index
    %53 = vector.load %arg5[%c4_42, %c0_43, %c0_44] : memref<16x32x64xbf16, #tpu.memory_space<vmem>>, vector<1x32x64xbf16>
    %54 = vector.shape_cast %53 : vector<1x32x64xbf16> to vector<32x64xbf16>
    %cst_45 = arith.constant dense<0.000000e+00> : vector<9x64xf32>
    %55 = tpu.matmul %52, %54, %cst_45 {dimension_numbers = #tpu.dot_dimension_numbers<[1], [0], [0], [1], [0, 0, 1, 1], [], []>} : vector<9x32xbf16>, vector<32x64xbf16>, vector<9x64xf32> -> vector<9x64xf32>
    %56 = arith.addf %48, %55 : vector<9x64xf32>
    %c5 = arith.constant 5 : index
    %c0_46 = arith.constant 0 : index
    %c0_47 = arith.constant 0 : index
    %57 = vector.load %arg4[%c5, %c0_46, %c0_47] : memref<16x9x64xbf16, #tpu.memory_space<vmem>>, vector<1x9x64xbf16>
    %58 = vector.shape_cast %57 : vector<1x9x64xbf16> to vector<9x64xbf16>
    %cst_48 = arith.constant dense<0.000000e+00> : vector<9x32xf32>
    %59 = tpu.matmul %58, %15, %cst_48 {dimension_numbers = #tpu.dot_dimension_numbers<[1], [0], [0], [1], [0, 0, 1, 1], [], []>} : vector<9x64xbf16>, vector<64x32xbf16>, vector<9x32xf32> -> vector<9x32xf32>
    %60 = arith.truncf %59 : vector<9x32xf32> to vector<9x32xbf16>
    %c5_49 = arith.constant 5 : index
    %c0_50 = arith.constant 0 : index
    %c0_51 = arith.constant 0 : index
    %61 = vector.load %arg5[%c5_49, %c0_50, %c0_51] : memref<16x32x64xbf16, #tpu.memory_space<vmem>>, vector<1x32x64xbf16>
    %62 = vector.shape_cast %61 : vector<1x32x64xbf16> to vector<32x64xbf16>
    %cst_52 = arith.constant dense<0.000000e+00> : vector<9x64xf32>
    %63 = tpu.matmul %60, %62, %cst_52 {dimension_numbers = #tpu.dot_dimension_numbers<[1], [0], [0], [1], [0, 0, 1, 1], [], []>} : vector<9x32xbf16>, vector<32x64xbf16>, vector<9x64xf32> -> vector<9x64xf32>
    %64 = arith.addf %56, %63 : vector<9x64xf32>
    %c6 = arith.constant 6 : index
    %c0_53 = arith.constant 0 : index
    %c0_54 = arith.constant 0 : index
    %65 = vector.load %arg4[%c6, %c0_53, %c0_54] : memref<16x9x64xbf16, #tpu.memory_space<vmem>>, vector<1x9x64xbf16>
    %66 = vector.shape_cast %65 : vector<1x9x64xbf16> to vector<9x64xbf16>
    %cst_55 = arith.constant dense<0.000000e+00> : vector<9x32xf32>
    %67 = tpu.matmul %66, %15, %cst_55 {dimension_numbers = #tpu.dot_dimension_numbers<[1], [0], [0], [1], [0, 0, 1, 1], [], []>} : vector<9x64xbf16>, vector<64x32xbf16>, vector<9x32xf32> -> vector<9x32xf32>
    %68 = arith.truncf %67 : vector<9x32xf32> to vector<9x32xbf16>
    %c6_56 = arith.constant 6 : index
    %c0_57 = arith.constant 0 : index
    %c0_58 = arith.constant 0 : index
    %69 = vector.load %arg5[%c6_56, %c0_57, %c0_58] : memref<16x32x64xbf16, #tpu.memory_space<vmem>>, vector<1x32x64xbf16>
    %70 = vector.shape_cast %69 : vector<1x32x64xbf16> to vector<32x64xbf16>
    %cst_59 = arith.constant dense<0.000000e+00> : vector<9x64xf32>
    %71 = tpu.matmul %68, %70, %cst_59 {dimension_numbers = #tpu.dot_dimension_numbers<[1], [0], [0], [1], [0, 0, 1, 1], [], []>} : vector<9x32xbf16>, vector<32x64xbf16>, vector<9x64xf32> -> vector<9x64xf32>
    %72 = arith.addf %64, %71 : vector<9x64xf32>
    %c7 = arith.constant 7 : index
    %c0_60 = arith.constant 0 : index
    %c0_61 = arith.constant 0 : index
    %73 = vector.load %arg4[%c7, %c0_60, %c0_61] : memref<16x9x64xbf16, #tpu.memory_space<vmem>>, vector<1x9x64xbf16>
    %74 = vector.shape_cast %73 : vector<1x9x64xbf16> to vector<9x64xbf16>
    %cst_62 = arith.constant dense<0.000000e+00> : vector<9x32xf32>
    %75 = tpu.matmul %74, %15, %cst_62 {dimension_numbers = #tpu.dot_dimension_numbers<[1], [0], [0], [1], [0, 0, 1, 1], [], []>} : vector<9x64xbf16>, vector<64x32xbf16>, vector<9x32xf32> -> vector<9x32xf32>
    %76 = arith.truncf %75 : vector<9x32xf32> to vector<9x32xbf16>
    %c7_63 = arith.constant 7 : index
    %c0_64 = arith.constant 0 : index
    %c0_65 = arith.constant 0 : index
    %77 = vector.load %arg5[%c7_63, %c0_64, %c0_65] : memref<16x32x64xbf16, #tpu.memory_space<vmem>>, vector<1x32x64xbf16>
    %78 = vector.shape_cast %77 : vector<1x32x64xbf16> to vector<32x64xbf16>
    %cst_66 = arith.constant dense<0.000000e+00> : vector<9x64xf32>
    %79 = tpu.matmul %76, %78, %cst_66 {dimension_numbers = #tpu.dot_dimension_numbers<[1], [0], [0], [1], [0, 0, 1, 1], [], []>} : vector<9x32xbf16>, vector<32x64xbf16>, vector<9x64xf32> -> vector<9x64xf32>
    %80 = arith.addf %72, %79 : vector<9x64xf32>
    %c8 = arith.constant 8 : index
    %c0_67 = arith.constant 0 : index
    %c0_68 = arith.constant 0 : index
    %81 = vector.load %arg4[%c8, %c0_67, %c0_68] : memref<16x9x64xbf16, #tpu.memory_space<vmem>>, vector<1x9x64xbf16>
    %82 = vector.shape_cast %81 : vector<1x9x64xbf16> to vector<9x64xbf16>
    %cst_69 = arith.constant dense<0.000000e+00> : vector<9x32xf32>
    %83 = tpu.matmul %82, %15, %cst_69 {dimension_numbers = #tpu.dot_dimension_numbers<[1], [0], [0], [1], [0, 0, 1, 1], [], []>} : vector<9x64xbf16>, vector<64x32xbf16>, vector<9x32xf32> -> vector<9x32xf32>
    %84 = arith.truncf %83 : vector<9x32xf32> to vector<9x32xbf16>
    %c8_70 = arith.constant 8 : index
    %c0_71 = arith.constant 0 : index
    %c0_72 = arith.constant 0 : index
    %85 = vector.load %arg5[%c8_70, %c0_71, %c0_72] : memref<16x32x64xbf16, #tpu.memory_space<vmem>>, vector<1x32x64xbf16>
    %86 = vector.shape_cast %85 : vector<1x32x64xbf16> to vector<32x64xbf16>
    %cst_73 = arith.constant dense<0.000000e+00> : vector<9x64xf32>
    %87 = tpu.matmul %84, %86, %cst_73 {dimension_numbers = #tpu.dot_dimension_numbers<[1], [0], [0], [1], [0, 0, 1, 1], [], []>} : vector<9x32xbf16>, vector<32x64xbf16>, vector<9x64xf32> -> vector<9x64xf32>
    %88 = arith.addf %80, %87 : vector<9x64xf32>
    %c9 = arith.constant 9 : index
    %c0_74 = arith.constant 0 : index
    %c0_75 = arith.constant 0 : index
    %89 = vector.load %arg4[%c9, %c0_74, %c0_75] : memref<16x9x64xbf16, #tpu.memory_space<vmem>>, vector<1x9x64xbf16>
    %90 = vector.shape_cast %89 : vector<1x9x64xbf16> to vector<9x64xbf16>
    %cst_76 = arith.constant dense<0.000000e+00> : vector<9x32xf32>
    %91 = tpu.matmul %90, %15, %cst_76 {dimension_numbers = #tpu.dot_dimension_numbers<[1], [0], [0], [1], [0, 0, 1, 1], [], []>} : vector<9x64xbf16>, vector<64x32xbf16>, vector<9x32xf32> -> vector<9x32xf32>
    %92 = arith.truncf %91 : vector<9x32xf32> to vector<9x32xbf16>
    %c9_77 = arith.constant 9 : index
    %c0_78 = arith.constant 0 : index
    %c0_79 = arith.constant 0 : index
    %93 = vector.load %arg5[%c9_77, %c0_78, %c0_79] : memref<16x32x64xbf16, #tpu.memory_space<vmem>>, vector<1x32x64xbf16>
    %94 = vector.shape_cast %93 : vector<1x32x64xbf16> to vector<32x64xbf16>
    %cst_80 = arith.constant dense<0.000000e+00> : vector<9x64xf32>
    %95 = tpu.matmul %92, %94, %cst_80 {dimension_numbers = #tpu.dot_dimension_numbers<[1], [0], [0], [1], [0, 0, 1, 1], [], []>} : vector<9x32xbf16>, vector<32x64xbf16>, vector<9x64xf32> -> vector<9x64xf32>
    %96 = arith.addf %88, %95 : vector<9x64xf32>
    %c10 = arith.constant 10 : index
    %c0_81 = arith.constant 0 : index
    %c0_82 = arith.constant 0 : index
    %97 = vector.load %arg4[%c10, %c0_81, %c0_82] : memref<16x9x64xbf16, #tpu.memory_space<vmem>>, vector<1x9x64xbf16>
    %98 = vector.shape_cast %97 : vector<1x9x64xbf16> to vector<9x64xbf16>
    %cst_83 = arith.constant dense<0.000000e+00> : vector<9x32xf32>
    %99 = tpu.matmul %98, %15, %cst_83 {dimension_numbers = #tpu.dot_dimension_numbers<[1], [0], [0], [1], [0, 0, 1, 1], [], []>} : vector<9x64xbf16>, vector<64x32xbf16>, vector<9x32xf32> -> vector<9x32xf32>
    %100 = arith.truncf %99 : vector<9x32xf32> to vector<9x32xbf16>
    %c10_84 = arith.constant 10 : index
    %c0_85 = arith.constant 0 : index
    %c0_86 = arith.constant 0 : index
    %101 = vector.load %arg5[%c10_84, %c0_85, %c0_86] : memref<16x32x64xbf16, #tpu.memory_space<vmem>>, vector<1x32x64xbf16>
    %102 = vector.shape_cast %101 : vector<1x32x64xbf16> to vector<32x64xbf16>
    %cst_87 = arith.constant dense<0.000000e+00> : vector<9x64xf32>
    %103 = tpu.matmul %100, %102, %cst_87 {dimension_numbers = #tpu.dot_dimension_numbers<[1], [0], [0], [1], [0, 0, 1, 1], [], []>} : vector<9x32xbf16>, vector<32x64xbf16>, vector<9x64xf32> -> vector<9x64xf32>
    %104 = arith.addf %96, %103 : vector<9x64xf32>
    %c11 = arith.constant 11 : index
    %c0_88 = arith.constant 0 : index
    %c0_89 = arith.constant 0 : index
    %105 = vector.load %arg4[%c11, %c0_88, %c0_89] : memref<16x9x64xbf16, #tpu.memory_space<vmem>>, vector<1x9x64xbf16>
    %106 = vector.shape_cast %105 : vector<1x9x64xbf16> to vector<9x64xbf16>
    %cst_90 = arith.constant dense<0.000000e+00> : vector<9x32xf32>
    %107 = tpu.matmul %106, %15, %cst_90 {dimension_numbers = #tpu.dot_dimension_numbers<[1], [0], [0], [1], [0, 0, 1, 1], [], []>} : vector<9x64xbf16>, vector<64x32xbf16>, vector<9x32xf32> -> vector<9x32xf32>
    %108 = arith.truncf %107 : vector<9x32xf32> to vector<9x32xbf16>
    %c11_91 = arith.constant 11 : index
    %c0_92 = arith.constant 0 : index
    %c0_93 = arith.constant 0 : index
    %109 = vector.load %arg5[%c11_91, %c0_92, %c0_93] : memref<16x32x64xbf16, #tpu.memory_space<vmem>>, vector<1x32x64xbf16>
    %110 = vector.shape_cast %109 : vector<1x32x64xbf16> to vector<32x64xbf16>
    %cst_94 = arith.constant dense<0.000000e+00> : vector<9x64xf32>
    %111 = tpu.matmul %108, %110, %cst_94 {dimension_numbers = #tpu.dot_dimension_numbers<[1], [0], [0], [1], [0, 0, 1, 1], [], []>} : vector<9x32xbf16>, vector<32x64xbf16>, vector<9x64xf32> -> vector<9x64xf32>
    %112 = arith.addf %104, %111 : vector<9x64xf32>
    %c12 = arith.constant 12 : index
    %c0_95 = arith.constant 0 : index
    %c0_96 = arith.constant 0 : index
    %113 = vector.load %arg4[%c12, %c0_95, %c0_96] : memref<16x9x64xbf16, #tpu.memory_space<vmem>>, vector<1x9x64xbf16>
    %114 = vector.shape_cast %113 : vector<1x9x64xbf16> to vector<9x64xbf16>
    %cst_97 = arith.constant dense<0.000000e+00> : vector<9x32xf32>
    %115 = tpu.matmul %114, %15, %cst_97 {dimension_numbers = #tpu.dot_dimension_numbers<[1], [0], [0], [1], [0, 0, 1, 1], [], []>} : vector<9x64xbf16>, vector<64x32xbf16>, vector<9x32xf32> -> vector<9x32xf32>
    %116 = arith.truncf %115 : vector<9x32xf32> to vector<9x32xbf16>
    %c12_98 = arith.constant 12 : index
    %c0_99 = arith.constant 0 : index
    %c0_100 = arith.constant 0 : index
    %117 = vector.load %arg5[%c12_98, %c0_99, %c0_100] : memref<16x32x64xbf16, #tpu.memory_space<vmem>>, vector<1x32x64xbf16>
    %118 = vector.shape_cast %117 : vector<1x32x64xbf16> to vector<32x64xbf16>
    %cst_101 = arith.constant dense<0.000000e+00> : vector<9x64xf32>
    %119 = tpu.matmul %116, %118, %cst_101 {dimension_numbers = #tpu.dot_dimension_numbers<[1], [0], [0], [1], [0, 0, 1, 1], [], []>} : vector<9x32xbf16>, vector<32x64xbf16>, vector<9x64xf32> -> vector<9x64xf32>
    %120 = arith.addf %112, %119 : vector<9x64xf32>
    %c13 = arith.constant 13 : index
    %c0_102 = arith.constant 0 : index
    %c0_103 = arith.constant 0 : index
    %121 = vector.load %arg4[%c13, %c0_102, %c0_103] : memref<16x9x64xbf16, #tpu.memory_space<vmem>>, vector<1x9x64xbf16>
    %122 = vector.shape_cast %121 : vector<1x9x64xbf16> to vector<9x64xbf16>
    %cst_104 = arith.constant dense<0.000000e+00> : vector<9x32xf32>
    %123 = tpu.matmul %122, %15, %cst_104 {dimension_numbers = #tpu.dot_dimension_numbers<[1], [0], [0], [1], [0, 0, 1, 1], [], []>} : vector<9x64xbf16>, vector<64x32xbf16>, vector<9x32xf32> -> vector<9x32xf32>
    %124 = arith.truncf %123 : vector<9x32xf32> to vector<9x32xbf16>
    %c13_105 = arith.constant 13 : index
    %c0_106 = arith.constant 0 : index
    %c0_107 = arith.constant 0 : index
    %125 = vector.load %arg5[%c13_105, %c0_106, %c0_107] : memref<16x32x64xbf16, #tpu.memory_space<vmem>>, vector<1x32x64xbf16>
    %126 = vector.shape_cast %125 : vector<1x32x64xbf16> to vector<32x64xbf16>
    %cst_108 = arith.constant dense<0.000000e+00> : vector<9x64xf32>
    %127 = tpu.matmul %124, %126, %cst_108 {dimension_numbers = #tpu.dot_dimension_numbers<[1], [0], [0], [1], [0, 0, 1, 1], [], []>} : vector<9x32xbf16>, vector<32x64xbf16>, vector<9x64xf32> -> vector<9x64xf32>
    %128 = arith.addf %120, %127 : vector<9x64xf32>
    %c14 = arith.constant 14 : index
    %c0_109 = arith.constant 0 : index
    %c0_110 = arith.constant 0 : index
    %129 = vector.load %arg4[%c14, %c0_109, %c0_110] : memref<16x9x64xbf16, #tpu.memory_space<vmem>>, vector<1x9x64xbf16>
    %130 = vector.shape_cast %129 : vector<1x9x64xbf16> to vector<9x64xbf16>
    %cst_111 = arith.constant dense<0.000000e+00> : vector<9x32xf32>
    %131 = tpu.matmul %130, %15, %cst_111 {dimension_numbers = #tpu.dot_dimension_numbers<[1], [0], [0], [1], [0, 0, 1, 1], [], []>} : vector<9x64xbf16>, vector<64x32xbf16>, vector<9x32xf32> -> vector<9x32xf32>
    %132 = arith.truncf %131 : vector<9x32xf32> to vector<9x32xbf16>
    %c14_112 = arith.constant 14 : index
    %c0_113 = arith.constant 0 : index
    %c0_114 = arith.constant 0 : index
    %133 = vector.load %arg5[%c14_112, %c0_113, %c0_114] : memref<16x32x64xbf16, #tpu.memory_space<vmem>>, vector<1x32x64xbf16>
    %134 = vector.shape_cast %133 : vector<1x32x64xbf16> to vector<32x64xbf16>
    %cst_115 = arith.constant dense<0.000000e+00> : vector<9x64xf32>
    %135 = tpu.matmul %132, %134, %cst_115 {dimension_numbers = #tpu.dot_dimension_numbers<[1], [0], [0], [1], [0, 0, 1, 1], [], []>} : vector<9x32xbf16>, vector<32x64xbf16>, vector<9x64xf32> -> vector<9x64xf32>
    %136 = arith.addf %128, %135 : vector<9x64xf32>
    %c15 = arith.constant 15 : index
    %c0_116 = arith.constant 0 : index
    %c0_117 = arith.constant 0 : index
    %137 = vector.load %arg4[%c15, %c0_116, %c0_117] : memref<16x9x64xbf16, #tpu.memory_space<vmem>>, vector<1x9x64xbf16>
    %138 = vector.shape_cast %137 : vector<1x9x64xbf16> to vector<9x64xbf16>
    %cst_118 = arith.constant dense<0.000000e+00> : vector<9x32xf32>
    %139 = tpu.matmul %138, %15, %cst_118 {dimension_numbers = #tpu.dot_dimension_numbers<[1], [0], [0], [1], [0, 0, 1, 1], [], []>} : vector<9x64xbf16>, vector<64x32xbf16>, vector<9x32xf32> -> vector<9x32xf32>
    %140 = arith.truncf %139 : vector<9x32xf32> to vector<9x32xbf16>
    %c15_119 = arith.constant 15 : index
    %c0_120 = arith.constant 0 : index
    %c0_121 = arith.constant 0 : index
    %141 = vector.load %arg5[%c15_119, %c0_120, %c0_121] : memref<16x32x64xbf16, #tpu.memory_space<vmem>>, vector<1x32x64xbf16>
    %142 = vector.shape_cast %141 : vector<1x32x64xbf16> to vector<32x64xbf16>
    %cst_122 = arith.constant dense<0.000000e+00> : vector<9x64xf32>
    %143 = tpu.matmul %140, %142, %cst_122 {dimension_numbers = #tpu.dot_dimension_numbers<[1], [0], [0], [1], [0, 0, 1, 1], [], []>} : vector<9x32xbf16>, vector<32x64xbf16>, vector<9x64xf32> -> vector<9x64xf32>
    %144 = arith.addf %136, %143 : vector<9x64xf32>
    %c0_123 = arith.constant 0 : index
    %c0_124 = arith.constant 0 : index
    %145 = vector.load %arg6[%c0_123, %c0_124] : memref<1x64xf32, #tpu.memory_space<vmem>>, vector<1x64xf32>
    %146 = vector.broadcast %145 : vector<1x64xf32> to vector<9x64xf32>
    %147 = arith.addf %144, %146 : vector<9x64xf32>
    %cst_125 = arith.constant 5.000000e-01 : f32
    %148 = vector.broadcast %cst_125 : f32 to vector<9x64xf32>
    %149 = arith.mulf %148, %147 : vector<9x64xf32>
    %150 = math.tanh %149 : vector<9x64xf32>
    %cst_126 = arith.constant 5.000000e-01 : f32
    %151 = vector.broadcast %cst_126 : f32 to vector<9x64xf32>
    %152 = arith.mulf %151, %150 : vector<9x64xf32>
    %cst_127 = arith.constant 5.000000e-01 : f32
    %153 = vector.broadcast %cst_127 : f32 to vector<9x64xf32>
    %154 = arith.addf %152, %153 : vector<9x64xf32>
    %155 = arith.mulf %147, %154 : vector<9x64xf32>
    %156 = arith.truncf %155 : vector<9x64xf32> to vector<9x64xbf16>
    %cst_128 = arith.constant 0.000000e+00 : f32
    %157 = vector.broadcast %cst_128 : f32 to vector<1x64xf32>
    %c0_129 = arith.constant 0 : index
    %c0_130 = arith.constant 0 : index
    %c0_131 = arith.constant 0 : index
    %158 = vector.load %arg7[%c0_129, %c0_130, %c0_131] : memref<9x1x9xbf16, #tpu.memory_space<vmem>>, vector<1x1x9xbf16>
    %159 = vector.shape_cast %158 : vector<1x1x9xbf16> to vector<1x9xbf16>
    %cst_132 = arith.constant dense<0.000000e+00> : vector<1x64xf32>
    %160 = tpu.matmul %159, %156, %cst_132 {dimension_numbers = #tpu.dot_dimension_numbers<[1], [0], [0], [1], [0, 0, 1, 1], [], []>} : vector<1x9xbf16>, vector<9x64xbf16>, vector<1x64xf32> -> vector<1x64xf32>
    %161 = arith.truncf %160 : vector<1x64xf32> to vector<1x64xbf16>
    %c0_133 = arith.constant 0 : index
    %c0_134 = arith.constant 0 : index
    %c0_135 = arith.constant 0 : index
    %162 = vector.load %arg8[%c0_133, %c0_134, %c0_135] : memref<9x64x64xbf16, #tpu.memory_space<vmem>>, vector<1x64x64xbf16>
    %163 = vector.shape_cast %162 : vector<1x64x64xbf16> to vector<64x64xbf16>
    %cst_136 = arith.constant dense<0.000000e+00> : vector<1x64xf32>
    %164 = tpu.matmul %161, %163, %cst_136 {dimension_numbers = #tpu.dot_dimension_numbers<[1], [0], [0], [1], [0, 0, 1, 1], [], []>} : vector<1x64xbf16>, vector<64x64xbf16>, vector<1x64xf32> -> vector<1x64xf32>
    %165 = arith.addf %157, %164 : vector<1x64xf32>
    %c1_137 = arith.constant 1 : index
    %c0_138 = arith.constant 0 : index
    %c0_139 = arith.constant 0 : index
    %166 = vector.load %arg7[%c1_137, %c0_138, %c0_139] : memref<9x1x9xbf16, #tpu.memory_space<vmem>>, vector<1x1x9xbf16>
    %167 = vector.shape_cast %166 : vector<1x1x9xbf16> to vector<1x9xbf16>
    %cst_140 = arith.constant dense<0.000000e+00> : vector<1x64xf32>
    %168 = tpu.matmul %167, %156, %cst_140 {dimension_numbers = #tpu.dot_dimension_numbers<[1], [0], [0], [1], [0, 0, 1, 1], [], []>} : vector<1x9xbf16>, vector<9x64xbf16>, vector<1x64xf32> -> vector<1x64xf32>
    %169 = arith.truncf %168 : vector<1x64xf32> to vector<1x64xbf16>
    %c1_141 = arith.constant 1 : index
    %c0_142 = arith.constant 0 : index
    %c0_143 = arith.constant 0 : index
    %170 = vector.load %arg8[%c1_141, %c0_142, %c0_143] : memref<9x64x64xbf16, #tpu.memory_space<vmem>>, vector<1x64x64xbf16>
    %171 = vector.shape_cast %170 : vector<1x64x64xbf16> to vector<64x64xbf16>
    %cst_144 = arith.constant dense<0.000000e+00> : vector<1x64xf32>
    %172 = tpu.matmul %169, %171, %cst_144 {dimension_numbers = #tpu.dot_dimension_numbers<[1], [0], [0], [1], [0, 0, 1, 1], [], []>} : vector<1x64xbf16>, vector<64x64xbf16>, vector<1x64xf32> -> vector<1x64xf32>
    %173 = arith.addf %165, %172 : vector<1x64xf32>
    %c2_145 = arith.constant 2 : index
    %c0_146 = arith.constant 0 : index
    %c0_147 = arith.constant 0 : index
    %174 = vector.load %arg7[%c2_145, %c0_146, %c0_147] : memref<9x1x9xbf16, #tpu.memory_space<vmem>>, vector<1x1x9xbf16>
    %175 = vector.shape_cast %174 : vector<1x1x9xbf16> to vector<1x9xbf16>
    %cst_148 = arith.constant dense<0.000000e+00> : vector<1x64xf32>
    %176 = tpu.matmul %175, %156, %cst_148 {dimension_numbers = #tpu.dot_dimension_numbers<[1], [0], [0], [1], [0, 0, 1, 1], [], []>} : vector<1x9xbf16>, vector<9x64xbf16>, vector<1x64xf32> -> vector<1x64xf32>
    %177 = arith.truncf %176 : vector<1x64xf32> to vector<1x64xbf16>
    %c2_149 = arith.constant 2 : index
    %c0_150 = arith.constant 0 : index
    %c0_151 = arith.constant 0 : index
    %178 = vector.load %arg8[%c2_149, %c0_150, %c0_151] : memref<9x64x64xbf16, #tpu.memory_space<vmem>>, vector<1x64x64xbf16>
    %179 = vector.shape_cast %178 : vector<1x64x64xbf16> to vector<64x64xbf16>
    %cst_152 = arith.constant dense<0.000000e+00> : vector<1x64xf32>
    %180 = tpu.matmul %177, %179, %cst_152 {dimension_numbers = #tpu.dot_dimension_numbers<[1], [0], [0], [1], [0, 0, 1, 1], [], []>} : vector<1x64xbf16>, vector<64x64xbf16>, vector<1x64xf32> -> vector<1x64xf32>
    %181 = arith.addf %173, %180 : vector<1x64xf32>
    %c3_153 = arith.constant 3 : index
    %c0_154 = arith.constant 0 : index
    %c0_155 = arith.constant 0 : index
    %182 = vector.load %arg7[%c3_153, %c0_154, %c0_155] : memref<9x1x9xbf16, #tpu.memory_space<vmem>>, vector<1x1x9xbf16>
    %183 = vector.shape_cast %182 : vector<1x1x9xbf16> to vector<1x9xbf16>
    %cst_156 = arith.constant dense<0.000000e+00> : vector<1x64xf32>
    %184 = tpu.matmul %183, %156, %cst_156 {dimension_numbers = #tpu.dot_dimension_numbers<[1], [0], [0], [1], [0, 0, 1, 1], [], []>} : vector<1x9xbf16>, vector<9x64xbf16>, vector<1x64xf32> -> vector<1x64xf32>
    %185 = arith.truncf %184 : vector<1x64xf32> to vector<1x64xbf16>
    %c3_157 = arith.constant 3 : index
    %c0_158 = arith.constant 0 : index
    %c0_159 = arith.constant 0 : index
    %186 = vector.load %arg8[%c3_157, %c0_158, %c0_159] : memref<9x64x64xbf16, #tpu.memory_space<vmem>>, vector<1x64x64xbf16>
    %187 = vector.shape_cast %186 : vector<1x64x64xbf16> to vector<64x64xbf16>
    %cst_160 = arith.constant dense<0.000000e+00> : vector<1x64xf32>
    %188 = tpu.matmul %185, %187, %cst_160 {dimension_numbers = #tpu.dot_dimension_numbers<[1], [0], [0], [1], [0, 0, 1, 1], [], []>} : vector<1x64xbf16>, vector<64x64xbf16>, vector<1x64xf32> -> vector<1x64xf32>
    %189 = arith.addf %181, %188 : vector<1x64xf32>
    %c4_161 = arith.constant 4 : index
    %c0_162 = arith.constant 0 : index
    %c0_163 = arith.constant 0 : index
    %190 = vector.load %arg7[%c4_161, %c0_162, %c0_163] : memref<9x1x9xbf16, #tpu.memory_space<vmem>>, vector<1x1x9xbf16>
    %191 = vector.shape_cast %190 : vector<1x1x9xbf16> to vector<1x9xbf16>
    %cst_164 = arith.constant dense<0.000000e+00> : vector<1x64xf32>
    %192 = tpu.matmul %191, %156, %cst_164 {dimension_numbers = #tpu.dot_dimension_numbers<[1], [0], [0], [1], [0, 0, 1, 1], [], []>} : vector<1x9xbf16>, vector<9x64xbf16>, vector<1x64xf32> -> vector<1x64xf32>
    %193 = arith.truncf %192 : vector<1x64xf32> to vector<1x64xbf16>
    %c4_165 = arith.constant 4 : index
    %c0_166 = arith.constant 0 : index
    %c0_167 = arith.constant 0 : index
    %194 = vector.load %arg8[%c4_165, %c0_166, %c0_167] : memref<9x64x64xbf16, #tpu.memory_space<vmem>>, vector<1x64x64xbf16>
    %195 = vector.shape_cast %194 : vector<1x64x64xbf16> to vector<64x64xbf16>
    %cst_168 = arith.constant dense<0.000000e+00> : vector<1x64xf32>
    %196 = tpu.matmul %193, %195, %cst_168 {dimension_numbers = #tpu.dot_dimension_numbers<[1], [0], [0], [1], [0, 0, 1, 1], [], []>} : vector<1x64xbf16>, vector<64x64xbf16>, vector<1x64xf32> -> vector<1x64xf32>
    %197 = arith.addf %189, %196 : vector<1x64xf32>
    %c5_169 = arith.constant 5 : index
    %c0_170 = arith.constant 0 : index
    %c0_171 = arith.constant 0 : index
    %198 = vector.load %arg7[%c5_169, %c0_170, %c0_171] : memref<9x1x9xbf16, #tpu.memory_space<vmem>>, vector<1x1x9xbf16>
    %199 = vector.shape_cast %198 : vector<1x1x9xbf16> to vector<1x9xbf16>
    %cst_172 = arith.constant dense<0.000000e+00> : vector<1x64xf32>
    %200 = tpu.matmul %199, %156, %cst_172 {dimension_numbers = #tpu.dot_dimension_numbers<[1], [0], [0], [1], [0, 0, 1, 1], [], []>} : vector<1x9xbf16>, vector<9x64xbf16>, vector<1x64xf32> -> vector<1x64xf32>
    %201 = arith.truncf %200 : vector<1x64xf32> to vector<1x64xbf16>
    %c5_173 = arith.constant 5 : index
    %c0_174 = arith.constant 0 : index
    %c0_175 = arith.constant 0 : index
    %202 = vector.load %arg8[%c5_173, %c0_174, %c0_175] : memref<9x64x64xbf16, #tpu.memory_space<vmem>>, vector<1x64x64xbf16>
    %203 = vector.shape_cast %202 : vector<1x64x64xbf16> to vector<64x64xbf16>
    %cst_176 = arith.constant dense<0.000000e+00> : vector<1x64xf32>
    %204 = tpu.matmul %201, %203, %cst_176 {dimension_numbers = #tpu.dot_dimension_numbers<[1], [0], [0], [1], [0, 0, 1, 1], [], []>} : vector<1x64xbf16>, vector<64x64xbf16>, vector<1x64xf32> -> vector<1x64xf32>
    %205 = arith.addf %197, %204 : vector<1x64xf32>
    %c6_177 = arith.constant 6 : index
    %c0_178 = arith.constant 0 : index
    %c0_179 = arith.constant 0 : index
    %206 = vector.load %arg7[%c6_177, %c0_178, %c0_179] : memref<9x1x9xbf16, #tpu.memory_space<vmem>>, vector<1x1x9xbf16>
    %207 = vector.shape_cast %206 : vector<1x1x9xbf16> to vector<1x9xbf16>
    %cst_180 = arith.constant dense<0.000000e+00> : vector<1x64xf32>
    %208 = tpu.matmul %207, %156, %cst_180 {dimension_numbers = #tpu.dot_dimension_numbers<[1], [0], [0], [1], [0, 0, 1, 1], [], []>} : vector<1x9xbf16>, vector<9x64xbf16>, vector<1x64xf32> -> vector<1x64xf32>
    %209 = arith.truncf %208 : vector<1x64xf32> to vector<1x64xbf16>
    %c6_181 = arith.constant 6 : index
    %c0_182 = arith.constant 0 : index
    %c0_183 = arith.constant 0 : index
    %210 = vector.load %arg8[%c6_181, %c0_182, %c0_183] : memref<9x64x64xbf16, #tpu.memory_space<vmem>>, vector<1x64x64xbf16>
    %211 = vector.shape_cast %210 : vector<1x64x64xbf16> to vector<64x64xbf16>
    %cst_184 = arith.constant dense<0.000000e+00> : vector<1x64xf32>
    %212 = tpu.matmul %209, %211, %cst_184 {dimension_numbers = #tpu.dot_dimension_numbers<[1], [0], [0], [1], [0, 0, 1, 1], [], []>} : vector<1x64xbf16>, vector<64x64xbf16>, vector<1x64xf32> -> vector<1x64xf32>
    %213 = arith.addf %205, %212 : vector<1x64xf32>
    %c7_185 = arith.constant 7 : index
    %c0_186 = arith.constant 0 : index
    %c0_187 = arith.constant 0 : index
    %214 = vector.load %arg7[%c7_185, %c0_186, %c0_187] : memref<9x1x9xbf16, #tpu.memory_space<vmem>>, vector<1x1x9xbf16>
    %215 = vector.shape_cast %214 : vector<1x1x9xbf16> to vector<1x9xbf16>
    %cst_188 = arith.constant dense<0.000000e+00> : vector<1x64xf32>
    %216 = tpu.matmul %215, %156, %cst_188 {dimension_numbers = #tpu.dot_dimension_numbers<[1], [0], [0], [1], [0, 0, 1, 1], [], []>} : vector<1x9xbf16>, vector<9x64xbf16>, vector<1x64xf32> -> vector<1x64xf32>
    %217 = arith.truncf %216 : vector<1x64xf32> to vector<1x64xbf16>
    %c7_189 = arith.constant 7 : index
    %c0_190 = arith.constant 0 : index
    %c0_191 = arith.constant 0 : index
    %218 = vector.load %arg8[%c7_189, %c0_190, %c0_191] : memref<9x64x64xbf16, #tpu.memory_space<vmem>>, vector<1x64x64xbf16>
    %219 = vector.shape_cast %218 : vector<1x64x64xbf16> to vector<64x64xbf16>
    %cst_192 = arith.constant dense<0.000000e+00> : vector<1x64xf32>
    %220 = tpu.matmul %217, %219, %cst_192 {dimension_numbers = #tpu.dot_dimension_numbers<[1], [0], [0], [1], [0, 0, 1, 1], [], []>} : vector<1x64xbf16>, vector<64x64xbf16>, vector<1x64xf32> -> vector<1x64xf32>
    %221 = arith.addf %213, %220 : vector<1x64xf32>
    %c8_193 = arith.constant 8 : index
    %c0_194 = arith.constant 0 : index
    %c0_195 = arith.constant 0 : index
    %222 = vector.load %arg7[%c8_193, %c0_194, %c0_195] : memref<9x1x9xbf16, #tpu.memory_space<vmem>>, vector<1x1x9xbf16>
    %223 = vector.shape_cast %222 : vector<1x1x9xbf16> to vector<1x9xbf16>
    %cst_196 = arith.constant dense<0.000000e+00> : vector<1x64xf32>
    %224 = tpu.matmul %223, %156, %cst_196 {dimension_numbers = #tpu.dot_dimension_numbers<[1], [0], [0], [1], [0, 0, 1, 1], [], []>} : vector<1x9xbf16>, vector<9x64xbf16>, vector<1x64xf32> -> vector<1x64xf32>
    %225 = arith.truncf %224 : vector<1x64xf32> to vector<1x64xbf16>
    %c8_197 = arith.constant 8 : index
    %c0_198 = arith.constant 0 : index
    %c0_199 = arith.constant 0 : index
    %226 = vector.load %arg8[%c8_197, %c0_198, %c0_199] : memref<9x64x64xbf16, #tpu.memory_space<vmem>>, vector<1x64x64xbf16>
    %227 = vector.shape_cast %226 : vector<1x64x64xbf16> to vector<64x64xbf16>
    %cst_200 = arith.constant dense<0.000000e+00> : vector<1x64xf32>
    %228 = tpu.matmul %225, %227, %cst_200 {dimension_numbers = #tpu.dot_dimension_numbers<[1], [0], [0], [1], [0, 0, 1, 1], [], []>} : vector<1x64xbf16>, vector<64x64xbf16>, vector<1x64xf32> -> vector<1x64xf32>
    %229 = arith.addf %221, %228 : vector<1x64xf32>
    %c0_201 = arith.constant 0 : index
    %c0_202 = arith.constant 0 : index
    %230 = vector.load %arg9[%c0_201, %c0_202] : memref<1x64xf32, #tpu.memory_space<vmem>>, vector<1x64xf32>
    %231 = arith.addf %229, %230 : vector<1x64xf32>
    %cst_203 = arith.constant 5.000000e-01 : f32
    %232 = vector.broadcast %cst_203 : f32 to vector<1x64xf32>
    %233 = arith.mulf %232, %231 : vector<1x64xf32>
    %234 = math.tanh %233 : vector<1x64xf32>
    %cst_204 = arith.constant 5.000000e-01 : f32
    %235 = vector.broadcast %cst_204 : f32 to vector<1x64xf32>
    %236 = arith.mulf %235, %234 : vector<1x64xf32>
    %cst_205 = arith.constant 5.000000e-01 : f32
    %237 = vector.broadcast %cst_205 : f32 to vector<1x64xf32>
    %238 = arith.addf %236, %237 : vector<1x64xf32>
    %239 = arith.mulf %231, %238 : vector<1x64xf32>
    %240 = arith.truncf %239 : vector<1x64xf32> to vector<1x64xbf16>
    %cst_206 = arith.constant 0.000000e+00 : f32
    %241 = vector.broadcast %cst_206 : f32 to vector<1x1024xf32>
    %c0_207 = arith.constant 0 : index
    %c0_208 = arith.constant 0 : index
    %c0_209 = arith.constant 0 : index
    %242 = vector.load %arg10[%c0_207, %c0_208, %c0_209] : memref<1x64x1024xbf16, #tpu.memory_space<vmem>>, vector<1x64x1024xbf16>
    %243 = vector.shape_cast %242 : vector<1x64x1024xbf16> to vector<64x1024xbf16>
    %cst_210 = arith.constant dense<0.000000e+00> : vector<1x1024xf32>
    %244 = tpu.matmul %240, %243, %cst_210 {dimension_numbers = #tpu.dot_dimension_numbers<[1], [0], [0], [1], [0, 0, 1, 1], [], []>} : vector<1x64xbf16>, vector<64x1024xbf16>, vector<1x1024xf32> -> vector<1x1024xf32>
    %245 = arith.addf %241, %244 : vector<1x1024xf32>
    %c0_211 = arith.constant 0 : index
    %c0_212 = arith.constant 0 : index
    %246 = vector.load %arg11[%c0_211, %c0_212] : memref<1x1024xf32, #tpu.memory_space<vmem>>, vector<1x1024xf32>
    %247 = arith.addf %245, %246 : vector<1x1024xf32>
    %cst_213 = arith.constant 5.000000e-01 : f32
    %248 = vector.broadcast %cst_213 : f32 to vector<1x1024xf32>
    %249 = arith.mulf %248, %247 : vector<1x1024xf32>
    %250 = math.tanh %249 : vector<1x1024xf32>
    %cst_214 = arith.constant 5.000000e-01 : f32
    %251 = vector.broadcast %cst_214 : f32 to vector<1x1024xf32>
    %252 = arith.mulf %251, %250 : vector<1x1024xf32>
    %cst_215 = arith.constant 5.000000e-01 : f32
    %253 = vector.broadcast %cst_215 : f32 to vector<1x1024xf32>
    %254 = arith.addf %252, %253 : vector<1x1024xf32>
    %255 = arith.mulf %247, %254 : vector<1x1024xf32>
    %256 = arith.truncf %255 : vector<1x1024xf32> to vector<1x1024xbf16>
    %c0_216 = arith.constant 0 : index
    %c0_217 = arith.constant 0 : index
    %257 = vector.load %arg12[%c0_216, %c0_217] : memref<1024x3xbf16, #tpu.memory_space<vmem>>, vector<1024x3xbf16>
    %cst_218 = arith.constant dense<0.000000e+00> : vector<1x3xf32>
    %258 = tpu.matmul %256, %257, %cst_218 {dimension_numbers = #tpu.dot_dimension_numbers<[1], [0], [0], [1], [0, 0, 1, 1], [], []>} : vector<1x1024xbf16>, vector<1024x3xbf16>, vector<1x3xf32> -> vector<1x3xf32>
    %c0_219 = arith.constant 0 : index
    %c0_220 = arith.constant 0 : index
    %259 = vector.load %arg13[%c0_219, %c0_220] : memref<1x3xf32, #tpu.memory_space<vmem>>, vector<1x3xf32>
    %260 = arith.addf %258, %259 : vector<1x3xf32>
    %261 = vector.extract_strided_slice %260 {offsets = [0, 0], sizes = [1, 1], strides = [1, 1]} : vector<1x3xf32> to vector<1x1xf32>
    %262 = vector.extract_strided_slice %260 {offsets = [0, 1], sizes = [1, 2], strides = [1, 1]} : vector<1x3xf32> to vector<1x2xf32>
    %263 = vector.broadcast %261 : vector<1x1xf32> to vector<1x2xf32>
    %264 = arith.addf %263, %262 : vector<1x2xf32>
    %cst_221 = arith.constant dense<0.000000e+00> : vector<1xf32>
    %265 = vector.multi_reduction <add>, %262, %cst_221 [1] : vector<1x2xf32> to vector<1xf32>
    %266 = vector.shape_cast %265 : vector<1xf32> to vector<1x1xf32>
    %cst_222 = arith.constant 2.000000e+00 : f32
    %267 = vector.broadcast %cst_222 : f32 to vector<1x1xf32>
    %268 = arith.divf %266, %267 : vector<1x1xf32>
    %269 = vector.broadcast %268 : vector<1x1xf32> to vector<1x2xf32>
    %270 = arith.subf %264, %269 : vector<1x2xf32>
    %c0_223 = arith.constant 0 : index
    %c0_224 = arith.constant 0 : index
    %c0_225 = arith.constant 0 : index
    %271 = vector.load %arg14[%c0_223, %c0_224, %c0_225] : memref<1x1x2xf32, #tpu.memory_space<vmem>>, vector<1x1x2xf32>
    %272 = vector.shape_cast %271 : vector<1x1x2xf32> to vector<1x2xf32>
    %273 = vector.shape_cast %270 : vector<1x2xf32> to vector<1x1x2xf32>
    tpu.vector_store %arg14[%c0_223, %c0_224, %c0_225], %273 {strides = array<i32>} : memref<1x1x2xf32, #tpu.memory_space<vmem>>, vector<1x1x2xf32>,
    return
  }
  func.func @transform_0(%arg0: i32) -> (i32, i32, i32) {
    %c0_i32 = arith.constant 0 : i32
    %c0_i32_0 = arith.constant 0 : i32
    %c0_i32_1 = arith.constant 0 : i32
    return %arg0, %c0_i32, %c0_i32_0 : i32, i32, i32
  }
  func.func @transform_1(%arg0: i32) -> (i32, i32) {
    %c0_i32 = arith.constant 0 : i32
    %c0_i32_0 = arith.constant 0 : i32
    %c0_i32_1 = arith.constant 0 : i32
    return %c0_i32, %c0_i32_0 : i32, i32
  }
  func.func @transform_2(%arg0: i32) -> (i32, i32) {
    %c0_i32 = arith.constant 0 : i32
    %c0_i32_0 = arith.constant 0 : i32
    %c0_i32_1 = arith.constant 0 : i32
    return %c0_i32, %c0_i32_0 : i32, i32
  }
  func.func @transform_3(%arg0: i32) -> (i32, i32, i32) {
    %c0_i32 = arith.constant 0 : i32
    %c0_i32_0 = arith.constant 0 : i32
    %c0_i32_1 = arith.constant 0 : i32
    %c0_i32_2 = arith.constant 0 : i32
    return %c0_i32, %c0_i32_0, %c0_i32_1 : i32, i32, i32
  }
  func.func @transform_4(%arg0: i32) -> (i32, i32, i32) {
    %c0_i32 = arith.constant 0 : i32
    %c0_i32_0 = arith.constant 0 : i32
    %c0_i32_1 = arith.constant 0 : i32
    %c0_i32_2 = arith.constant 0 : i32
    return %c0_i32, %c0_i32_0, %c0_i32_1 : i32, i32, i32
  }
  func.func @transform_5(%arg0: i32) -> (i32, i32) {
    %c0_i32 = arith.constant 0 : i32
    %c0_i32_0 = arith.constant 0 : i32
    %c0_i32_1 = arith.constant 0 : i32
    return %c0_i32, %c0_i32_0 : i32, i32
  }
  func.func @transform_6(%arg0: i32) -> (i32, i32, i32) {
    %c0_i32 = arith.constant 0 : i32
    %c0_i32_0 = arith.constant 0 : i32
    %c0_i32_1 = arith.constant 0 : i32
    %c0_i32_2 = arith.constant 0 : i32
    return %c0_i32, %c0_i32_0, %c0_i32_1 : i32, i32, i32
  }
  func.func @transform_7(%arg0: i32) -> (i32, i32, i32) {
    %c0_i32 = arith.constant 0 : i32
    %c0_i32_0 = arith.constant 0 : i32
    %c0_i32_1 = arith.constant 0 : i32
    %c0_i32_2 = arith.constant 0 : i32
    return %c0_i32, %c0_i32_0, %c0_i32_1 : i32, i32, i32
  }
  func.func @transform_8(%arg0: i32) -> (i32, i32) {
    %c0_i32 = arith.constant 0 : i32
    %c0_i32_0 = arith.constant 0 : i32
    %c0_i32_1 = arith.constant 0 : i32
    return %c0_i32, %c0_i32_0 : i32, i32
  }
  func.func @transform_9(%arg0: i32) -> (i32, i32, i32) {
    %c0_i32 = arith.constant 0 : i32
    %c0_i32_0 = arith.constant 0 : i32
    %c0_i32_1 = arith.constant 0 : i32
    %c0_i32_2 = arith.constant 0 : i32
    return %c0_i32, %c0_i32_0, %c0_i32_1 : i32, i32, i32
  }
  func.func @transform_10(%arg0: i32) -> (i32, i32) {
    %c0_i32 = arith.constant 0 : i32
    %c0_i32_0 = arith.constant 0 : i32
    %c0_i32_1 = arith.constant 0 : i32
    return %c0_i32, %c0_i32_0 : i32, i32
  }
  func.func @transform_11(%arg0: i32) -> (i32, i32) {
    %c0_i32 = arith.constant 0 : i32
    %c0_i32_0 = arith.constant 0 : i32
    %c0_i32_1 = arith.constant 0 : i32
    return %c0_i32, %c0_i32_0 : i32, i32
  }
  func.func @transform_12(%arg0: i32) -> (i32, i32) {
    %c0_i32 = arith.constant 0 : i32
    %c0_i32_0 = arith.constant 0 : i32
    %c0_i32_1 = arith.constant 0 : i32
    return %c0_i32, %c0_i32_0 : i32, i32
  }
  func.func @transform_13(%arg0: i32) -> (i32, i32, i32) {
    %c0_i32 = arith.constant 0 : i32
    %c0_i32_0 = arith.constant 0 : i32
    %c0_i32_1 = arith.constant 0 : i32
    return %arg0, %c0_i32, %c0_i32_0 : i32, i32, i32
  }
}

</mosaic_0001>

<llo_original>
// kernel: duel_dqn_forward.1
$region0: #{duel_dqn_forward.1}
  #allocation0 [shape = 'u32[]', space=smem, size = 0x4, offset = 0x4, fixed_abs, tag = 'smem constant byte address 0x4 - core index']
  #allocation1 [shape = 'u32[72,128]{1,0:T(1,128)}', space=vmem, size = 0x9000, scoped, tag = 'internal scratch']
  %s0 = inlined_call_operand.vmem [shape: bf16[2,64,768], index: 0, kind: input, shape index: {}]
  %s1 = inlined_call_operand.vmem [shape: bf16[768,32], index: 1, kind: input, shape index: {}]
  %s2 = inlined_call_operand.vmem [shape: f32[1,32], index: 2, kind: input, shape index: {}]
  %s3 = inlined_call_operand.vmem [shape: bf16[16,9,64], index: 3, kind: input, shape index: {}]
  %s4 = inlined_call_operand.vmem [shape: bf16[16,32,64], index: 4, kind: input, shape index: {}]
  %s5 = inlined_call_operand.vmem [shape: f32[1,64], index: 5, kind: input, shape index: {}]
  %s6 = inlined_call_operand.vmem [shape: bf16[9,1,9], index: 6, kind: input, shape index: {}]
  %s7 = inlined_call_operand.vmem [shape: bf16[9,64,64], index: 7, kind: input, shape index: {}]
  %s8 = inlined_call_operand.vmem [shape: f32[1,64], index: 8, kind: input, shape index: {}]
  %s9 = inlined_call_operand.vmem [shape: bf16[1,64,1024], index: 9, kind: input, shape index: {}]
  %s10 = inlined_call_operand.vmem [shape: f32[1,1024], index: 10, kind: input, shape index: {}]
  %s11 = inlined_call_operand.vmem [shape: bf16[1024,3], index: 11, kind: input, shape index: {}]
  %s12 = inlined_call_operand.vmem [shape: f32[1,3], index: 12, kind: input, shape index: {}]
  %s13 = inlined_call_operand.hbm [shape: f32[2,1,2], index: 13, kind: output, shape index: {}]
  %s14 = sld [smem:[#allocation0]]
  $region85: #{duel_dqn_forward.1} parent=0
    _
  %s16 = ssub.s32 1, %s14
  %s17 = scalar_select 0, %s16, %s14
  $region1: #{duel_dqn_forward.1} parent=0
    #allocation2 [shape = 'u8[1024]{0}', space=vmem, size = 0x400, scoped, tag = 'output window, operand 0']
    #allocation3 [shape = 's32[2]{0}', space=sflag, size = 0x8, scoped, tag = 'scoped memory for duel_dqn_forward.1']
    %18 = vsyncpa [#allocation3], 0
    %s19 = scalar_lea.sflag [#allocation3], 1
    %20 = vsyncpa %s19, 0
    loop: start=0, step=1, limit=4
    $region2: #{duel_dqn_forward.1} parent=1 // loop_pre_header
      _
    $region3: #{duel_dqn_forward.1} parent=1 // loop_header
      %s22 = sphi 0, %s26
      %p23 = scmp.ge.s32.totalorder %s22, 4
      %s32 = sphi 0, %s34
      %s35 = sphi 0, %s32
      %s36 = sphi 0, %s35
      %s52 = sphi 0, %s36
      %s56 = sphi 0, %s56
      %s58 = sphi 0, %s56
      %s59 = sphi 0, %s58
      %s73 = sphi 0, %s59
      %s77 = sphi 0, %s77
      %s79 = sphi 0, %s77
      %s80 = sphi 0, %s79
      %s94 = sphi 0, %s80
      %s98 = sphi 0, %s98
      %s100 = sphi 0, %s98
      %s101 = sphi 0, %s100
      %s115 = sphi 0, %s101
      %s119 = sphi 0, %s119
      %s121 = sphi 0, %s119
      %s122 = sphi 0, %s121
      %s136 = sphi 0, %s122
      %s140 = sphi 0, %s140
      %s142 = sphi 0, %s140
      %s143 = sphi 0, %s142
      %s157 = sphi 0, %s143
      %s161 = sphi 0, %s161
      %s163 = sphi 0, %s161
      %s164 = sphi 0, %s163
      %s178 = sphi 0, %s164
      %s182 = sphi 0, %s182
      %s184 = sphi 0, %s182
      %s185 = sphi 0, %s184
      %s199 = sphi 0, %s185
      %s203 = sphi 0, %s203
      %s205 = sphi 0, %s203
      %s206 = sphi 0, %s205
      %s220 = sphi 0, %s206
      %s224 = sphi 0, %s224
      %s226 = sphi 0, %s224
      %s227 = sphi 0, %s226
      %s241 = sphi 0, %s227
      %s245 = sphi 0, %s245
      %s247 = sphi 0, %s245
      %s248 = sphi 0, %s247
      %s262 = sphi 0, %s248
      %s266 = sphi 0, %s266
      %s268 = sphi 0, %s266
      %s269 = sphi 0, %s268
      %s283 = sphi 0, %s269
      %s287 = sphi 0, %s287
      %s289 = sphi 0, %s287
      %s290 = sphi 0, %s289
      %s304 = sphi 0, %s290
      %s310 = sphi 0, %s312
      %s313 = sphi 0, %s310
      %s314 = sphi 0, %s313
      %s330 = sphi 0, %s314
    $region4: #{duel_dqn_forward.1} parent=1 // loop_header_branch
      %25 = sbr.rel (%p23) target = $region8
    $region5: #{duel_dqn_forward.1} parent=1 // loop_body
      %s27 = ssub.s32 %s22, 1
      %s28 = ssub.s32 %s22, 2
      %s29 = sadd.s32 %s22, 1
      %s30 = ssub.s32 %s22, %s29
      %p31 = scmp.eq.s32.totalorder %s30, 0
      %s33 = sadd.s32 %s32, 1
      %s34 = scalar_select %p31, %s32, %s33
      %p37 = pneg %p31
      %p38 = scmp.eq.s32.totalorder %s22, 1
      %p39 = por %p37, %p38
      %p40 = scmp.ne.s32.totalorder %s32, %s35
      %p41 = scmp.eq.s32.totalorder %s22, 0
      %p42 = por %p40, %p41
      %p43 = scmp.ne.s32.totalorder %s32, %s35
      %p44 = scmp.eq.s32.totalorder %s27, 1
      %p45 = por %p43, %p44
      %p46 = scmp.ne.s32.totalorder %s35, %s36
      %p47 = scmp.eq.s32.totalorder %s27, 0
      %p48 = por %p46, %p47
      %p49 = scmp.ne.s32.totalorder %s35, %s36
      %p50 = scmp.eq.s32.totalorder %s28, 1
      %p51 = por %p49, %p50
      %p53 = scmp.ne.s32.totalorder %s36, %s52
      %p54 = scmp.eq.s32.totalorder %s28, 0
      %p55 = por %p53, %p54
      %s57 = sadd.s32 %s56, 1
      %p60 = scmp.eq.s32.totalorder %s22, 1
      %p61 = scmp.ne.s32.totalorder %s56, %s58
      %p62 = scmp.eq.s32.totalorder %s22, 0
      %p63 = por %p61, %p62
      %p64 = scmp.ne.s32.totalorder %s56, %s58
      %p65 = scmp.eq.s32.totalorder %s27, 1
      %p66 = por %p64, %p65
      %p67 = scmp.ne.s32.totalorder %s58, %s59
      %p68 = scmp.eq.s32.totalorder %s27, 0
      %p69 = por %p67, %p68
      %p70 = scmp.ne.s32.totalorder %s58, %s59
      %p71 = scmp.eq.s32.totalorder %s28, 1
      %p72 = por %p70, %p71
      %p74 = scmp.ne.s32.totalorder %s59, %s73
      %p75 = scmp.eq.s32.totalorder %s28, 0
      %p76 = por %p74, %p75
      %s78 = sadd.s32 %s77, 1
      %p81 = scmp.eq.s32.totalorder %s22, 1
      %p82 = scmp.ne.s32.totalorder %s77, %s79
      %p83 = scmp.eq.s32.totalorder %s22, 0
      %p84 = por %p82, %p83
      %p85 = scmp.ne.s32.totalorder %s77, %s79
      %p86 = scmp.eq.s32.totalorder %s27, 1
      %p87 = por %p85, %p86
      %p88 = scmp.ne.s32.totalorder %s79, %s80
      %p89 = scmp.eq.s32.totalorder %s27, 0
      %p90 = por %p88, %p89
      %p91 = scmp.ne.s32.totalorder %s79, %s80
      %p92 = scmp.eq.s32.totalorder %s28, 1
      %p93 = por %p91, %p92
      %p95 = scmp.ne.s32.totalorder %s80, %s94
      %p96 = scmp.eq.s32.totalorder %s28, 0
      %p97 = por %p95, %p96
      %s99 = sadd.s32 %s98, 1
      %p102 = scmp.eq.s32.totalorder %s22, 1
      %p103 = scmp.ne.s32.totalorder %s98, %s100
      %p104 = scmp.eq.s32.totalorder %s22, 0
      %p105 = por %p103, %p104
      %p106 = scmp.ne.s32.totalorder %s98, %s100
      %p107 = scmp.eq.s32.totalorder %s27, 1
      %p108 = por %p106, %p107
      %p109 = scmp.ne.s32.totalorder %s100, %s101
      %p110 = scmp.eq.s32.totalorder %s27, 0
      %p111 = por %p109, %p110
      %p112 = scmp.ne.s32.totalorder %s100, %s101
      %p113 = scmp.eq.s32.totalorder %s28, 1
      %p114 = por %p112, %p113
      %p116 = scmp.ne.s32.totalorder %s101, %s115
      %p117 = scmp.eq.s32.totalorder %s28, 0
      %p118 = por %p116, %p117
      %s120 = sadd.s32 %s119, 1
      %p123 = scmp.eq.s32.totalorder %s22, 1
      %p124 = scmp.ne.s32.totalorder %s119, %s121
      %p125 = scmp.eq.s32.totalorder %s22, 0
      %p126 = por %p124, %p125
      %p127 = scmp.ne.s32.totalorder %s119, %s121
      %p128 = scmp.eq.s32.totalorder %s27, 1
      %p129 = por %p127, %p128
      %p130 = scmp.ne.s32.totalorder %s121, %s122
      %p131 = scmp.eq.s32.totalorder %s27, 0
      %p132 = por %p130, %p131
      %p133 = scmp.ne.s32.totalorder %s121, %s122
      %p134 = scmp.eq.s32.totalorder %s28, 1
      %p135 = por %p133, %p134
      %p137 = scmp.ne.s32.totalorder %s122, %s136
      %p138 = scmp.eq.s32.totalorder %s28, 0
      %p139 = por %p137, %p138
      %s141 = sadd.s32 %s140, 1
      %p144 = scmp.eq.s32.totalorder %s22, 1
      %p145 = scmp.ne.s32.totalorder %s140, %s142
      %p146 = scmp.eq.s32.totalorder %s22, 0
      %p147 = por %p145, %p146
      %p148 = scmp.ne.s32.totalorder %s140, %s142
      %p149 = scmp.eq.s32.totalorder %s27, 1
      %p150 = por %p148, %p149
      %p151 = scmp.ne.s32.totalorder %s142, %s143
      %p152 = scmp.eq.s32.totalorder %s27, 0
      %p153 = por %p151, %p152
      %p154 = scmp.ne.s32.totalorder %s142, %s143
      %p155 = scmp.eq.s32.totalorder %s28, 1
      %p156 = por %p154, %p155
      %p158 = scmp.ne.s32.totalorder %s143, %s157
      %p159 = scmp.eq.s32.totalorder %s28, 0
      %p160 = por %p158, %p159
      %s162 = sadd.s32 %s161, 1
      %p165 = scmp.eq.s32.totalorder %s22, 1
      %p166 = scmp.ne.s32.totalorder %s161, %s163
      %p167 = scmp.eq.s32.totalorder %s22, 0
      %p168 = por %p166, %p167
      %p169 = scmp.ne.s32.totalorder %s161, %s163
      %p170 = scmp.eq.s32.totalorder %s27, 1
      %p171 = por %p169, %p170
      %p172 = scmp.ne.s32.totalorder %s163, %s164
      %p173 = scmp.eq.s32.totalorder %s27, 0
      %p174 = por %p172, %p173
      %p175 = scmp.ne.s32.totalorder %s163, %s164
      %p176 = scmp.eq.s32.totalorder %s28, 1
      %p177 = por %p175, %p176
      %p179 = scmp.ne.s32.totalorder %s164, %s178
      %p180 = scmp.eq.s32.totalorder %s28, 0
      %p181 = por %p179, %p180
      %s183 = sadd.s32 %s182, 1
      %p186 = scmp.eq.s32.totalorder %s22, 1
      %p187 = scmp.ne.s32.totalorder %s182, %s184
      %p188 = scmp.eq.s32.totalorder %s22, 0
      %p189 = por %p187, %p188
      %p190 = scmp.ne.s32.totalorder %s182, %s184
      %p191 = scmp.eq.s32.totalorder %s27, 1
      %p192 = por %p190, %p191
      %p193 = scmp.ne.s32.totalorder %s184, %s185
      %p194 = scmp.eq.s32.totalorder %s27, 0
      %p195 = por %p193, %p194
      %p196 = scmp.ne.s32.totalorder %s184, %s185
      %p197 = scmp.eq.s32.totalorder %s28, 1
      %p198 = por %p196, %p197
      %p200 = scmp.ne.s32.totalorder %s185, %s199
      %p201 = scmp.eq.s32.totalorder %s28, 0
      %p202 = por %p200, %p201
      %s204 = sadd.s32 %s203, 1
      %p207 = scmp.eq.s32.totalorder %s22, 1
      %p208 = scmp.ne.s32.totalorder %s203, %s205
      %p209 = scmp.eq.s32.totalorder %s22, 0
      %p210 = por %p208, %p209
      %p211 = scmp.ne.s32.totalorder %s203, %s205
      %p212 = scmp.eq.s32.totalorder %s27, 1
      %p213 = por %p211, %p212
      %p214 = scmp.ne.s32.totalorder %s205, %s206
      %p215 = scmp.eq.s32.totalorder %s27, 0
      %p216 = por %p214, %p215
      %p217 = scmp.ne.s32.totalorder %s205, %s206
      %p218 = scmp.eq.s32.totalorder %s28, 1
      %p219 = por %p217, %p218
      %p221 = scmp.ne.s32.totalorder %s206, %s220
      %p222 = scmp.eq.s32.totalorder %s28, 0
      %p223 = por %p221, %p222
      %s225 = sadd.s32 %s224, 1
      %p228 = scmp.eq.s32.totalorder %s22, 1
      %p229 = scmp.ne.s32.totalorder %s224, %s226
      %p230 = scmp.eq.s32.totalorder %s22, 0
      %p231 = por %p229, %p230
      %p232 = scmp.ne.s32.totalorder %s224, %s226
      %p233 = scmp.eq.s32.totalorder %s27, 1
      %p234 = por %p232, %p233
      %p235 = scmp.ne.s32.totalorder %s226, %s227
      %p236 = scmp.eq.s32.totalorder %s27, 0
      %p237 = por %p235, %p236
      %p238 = scmp.ne.s32.totalorder %s226, %s227
      %p239 = scmp.eq.s32.totalorder %s28, 1
      %p240 = por %p238, %p239
      %p242 = scmp.ne.s32.totalorder %s227, %s241
      %p243 = scmp.eq.s32.totalorder %s28, 0
      %p244 = por %p242, %p243
      %s246 = sadd.s32 %s245, 1
      %p249 = scmp.eq.s32.totalorder %s22, 1
      %p250 = scmp.ne.s32.totalorder %s245, %s247
      %p251 = scmp.eq.s32.totalorder %s22, 0
      %p252 = por %p250, %p251
      %p253 = scmp.ne.s32.totalorder %s245, %s247
      %p254 = scmp.eq.s32.totalorder %s27, 1
      %p255 = por %p253, %p254
      %p256 = scmp.ne.s32.totalorder %s247, %s248
      %p257 = scmp.eq.s32.totalorder %s27, 0
      %p258 = por %p256, %p257
      %p259 = scmp.ne.s32.totalorder %s247, %s248
      %p260 = scmp.eq.s32.totalorder %s28, 1
      %p261 = por %p259, %p260
      %p263 = scmp.ne.s32.totalorder %s248, %s262
      %p264 = scmp.eq.s32.totalorder %s28, 0
      %p265 = por %p263, %p264
      %s267 = sadd.s32 %s266, 1
      %p270 = scmp.eq.s32.totalorder %s22, 1
      %p271 = scmp.ne.s32.totalorder %s266, %s268
      %p272 = scmp.eq.s32.totalorder %s22, 0
      %p273 = por %p271, %p272
      %p274 = scmp.ne.s32.totalorder %s266, %s268
      %p275 = scmp.eq.s32.totalorder %s27, 1
      %p276 = por %p274, %p275
      %p277 = scmp.ne.s32.totalorder %s268, %s269
      %p278 = scmp.eq.s32.totalorder %s27, 0
      %p279 = por %p277, %p278
      %p280 = scmp.ne.s32.totalorder %s268, %s269
      %p281 = scmp.eq.s32.totalorder %s28, 1
      %p282 = por %p280, %p281
      %p284 = scmp.ne.s32.totalorder %s269, %s283
      %p285 = scmp.eq.s32.totalorder %s28, 0
      %p286 = por %p284, %p285
      %s288 = sadd.s32 %s287, 1
      %p291 = scmp.eq.s32.totalorder %s22, 1
      %p292 = scmp.ne.s32.totalorder %s287, %s289
      %p293 = scmp.eq.s32.totalorder %s22, 0
      %p294 = por %p292, %p293
      %p295 = scmp.ne.s32.totalorder %s287, %s289
      %p296 = scmp.eq.s32.totalorder %s27, 1
      %p297 = por %p295, %p296
      %p298 = scmp.ne.s32.totalorder %s289, %s290
      %p299 = scmp.eq.s32.totalorder %s27, 0
      %p300 = por %p298, %p299
      %p301 = scmp.ne.s32.totalorder %s289, %s290
      %p302 = scmp.eq.s32.totalorder %s28, 1
      %p303 = por %p301, %p302
      %p305 = scmp.ne.s32.totalorder %s290, %s304
      %p306 = scmp.eq.s32.totalorder %s28, 0
      %p307 = por %p305, %p306
      %s308 = ssub.s32 %s22, %s29
      %p309 = scmp.eq.s32.totalorder %s308, 0
      %s311 = sadd.s32 %s310, 1
      %s312 = scalar_select %p309, %s310, %s311
      %p315 = pneg %p309
      %p316 = scmp.eq.s32.totalorder %s22, 1
      %p317 = por %p315, %p316
      %p318 = scmp.ne.s32.totalorder %s310, %s313
      %p319 = scmp.eq.s32.totalorder %s22, 0
      %p320 = por %p318, %p319
      %p321 = scmp.ne.s32.totalorder %s310, %s313
      %p322 = scmp.eq.s32.totalorder %s27, 1
      %p323 = por %p321, %p322
      %p324 = scmp.ne.s32.totalorder %s313, %s314
      %p325 = scmp.eq.s32.totalorder %s27, 0
      %p326 = por %p324, %p325
      %p327 = scmp.ne.s32.totalorder %s313, %s314
      %p328 = scmp.eq.s32.totalorder %s28, 1
      %p329 = por %p327, %p328
      %p331 = scmp.ne.s32.totalorder %s314, %s330
      %p332 = scmp.eq.s32.totalorder %s28, 0
      %p333 = por %p331, %p332
      %p334 = scmp.le.s32.totalorder 1, %s22
      %p335 = scmp.lt.s32.totalorder %s22, 3
      %p336 = pnand %p334, %p335
      %p337 = pneg %p336
      // Predicated region
      $region9: #{duel_dqn_forward.1} parent=5 // pred_check
        _
      $region10: #{duel_dqn_forward.1} parent=5 // pred_check_branch
        %339 = sbr.rel (%p336) target = $region12
      $region11: #{duel_dqn_forward.1} parent=5 // pred_region
        %s340 = ssub.s32 %s22, 1
        // Predicated region
        $region13: #{duel_dqn_forward.1} parent=11 // pred_check
          %p341 = pneg %p69
        $region14: #{duel_dqn_forward.1} parent=11 // pred_check_branch
          %343 = sbr.rel (%p341) target = $region16
        $region15: #{duel_dqn_forward.1} parent=11 // pred_region
          _
        $region16: #{duel_dqn_forward.1} parent=11 // pred_fallthru
          _
        // Predicated region
        $region17: #{duel_dqn_forward.1} parent=11 // pred_check
          %p344 = pneg %p90
        $region18: #{duel_dqn_forward.1} parent=11 // pred_check_branch
          %346 = sbr.rel (%p344) target = $region20
        $region19: #{duel_dqn_forward.1} parent=11 // pred_region
          _
        $region20: #{duel_dqn_forward.1} parent=11 // pred_fallthru
          _
        // Predicated region
        $region21: #{duel_dqn_forward.1} parent=11 // pred_check
          %p347 = pneg %p111
        $region22: #{duel_dqn_forward.1} parent=11 // pred_check_branch
          %349 = sbr.rel (%p347) target = $region24
        $region23: #{duel_dqn_forward.1} parent=11 // pred_region
          _
        $region24: #{duel_dqn_forward.1} parent=11 // pred_fallthru
          _
        // Predicated region
        $region25: #{duel_dqn_forward.1} parent=11 // pred_check
          %p350 = pneg %p132
        $region26: #{duel_dqn_forward.1} parent=11 // pred_check_branch
          %352 = sbr.rel (%p350) target = $region28
        $region27: #{duel_dqn_forward.1} parent=11 // pred_region
          _
        $region28: #{duel_dqn_forward.1} parent=11 // pred_fallthru
          _
        // Predicated region
        $region29: #{duel_dqn_forward.1} parent=11 // pred_check
          %p353 = pneg %p153
        $region30: #{duel_dqn_forward.1} parent=11 // pred_check_branch
          %355 = sbr.rel (%p353) target = $region32
        $region31: #{duel_dqn_forward.1} parent=11 // pred_region
          _
        $region32: #{duel_dqn_forward.1} parent=11 // pred_fallthru
          _
        // Predicated region
        $region33: #{duel_dqn_forward.1} parent=11 // pred_check
          %p356 = pneg %p174
        $region34: #{duel_dqn_forward.1} parent=11 // pred_check_branch
          %358 = sbr.rel (%p356) target = $region36
        $region35: #{duel_dqn_forward.1} parent=11 // pred_region
          _
        $region36: #{duel_dqn_forward.1} parent=11 // pred_fallthru
          _
        // Predicated region
        $region37: #{duel_dqn_forward.1} parent=11 // pred_check
          %p359 = pneg %p195
        $region38: #{duel_dqn_forward.1} parent=11 // pred_check_branch
          %361 = sbr.rel (%p359) target = $region40
        $region39: #{duel_dqn_forward.1} parent=11 // pred_region
          _
        $region40: #{duel_dqn_forward.1} parent=11 // pred_fallthru
          _
        // Predicated region
        $region41: #{duel_dqn_forward.1} parent=11 // pred_check
          %p362 = pneg %p216
        $region42: #{duel_dqn_forward.1} parent=11 // pred_check_branch
          %364 = sbr.rel (%p362) target = $region44
        $region43: #{duel_dqn_forward.1} parent=11 // pred_region
          _
        $region44: #{duel_dqn_forward.1} parent=11 // pred_fallthru
          _
        // Predicated region
        $region45: #{duel_dqn_forward.1} parent=11 // pred_check
          %p365 = pneg %p237
        $region46: #{duel_dqn_forward.1} parent=11 // pred_check_branch
          %367 = sbr.rel (%p365) target = $region48
        $region47: #{duel_dqn_forward.1} parent=11 // pred_region
          _
        $region48: #{duel_dqn_forward.1} parent=11 // pred_fallthru
          _
        // Predicated region
        $region49: #{duel_dqn_forward.1} parent=11 // pred_check
          %p368 = pneg %p258
        $region50: #{duel_dqn_forward.1} parent=11 // pred_check_branch
          %370 = sbr.rel (%p368) target = $region52
        $region51: #{duel_dqn_forward.1} parent=11 // pred_region
          _
        $region52: #{duel_dqn_forward.1} parent=11 // pred_fallthru
          _
        // Predicated region
        $region53: #{duel_dqn_forward.1} parent=11 // pred_check
          %p371 = pneg %p279
        $region54: #{duel_dqn_forward.1} parent=11 // pred_check_branch
          %373 = sbr.rel (%p371) target = $region56
        $region55: #{duel_dqn_forward.1} parent=11 // pred_region
          _
        $region56: #{duel_dqn_forward.1} parent=11 // pred_fallthru
          _
        // Predicated region
        $region57: #{duel_dqn_forward.1} parent=11 // pred_check
          %p374 = pneg %p300
        $region58: #{duel_dqn_forward.1} parent=11 // pred_check_branch
          %376 = sbr.rel (%p374) target = $region60
        $region59: #{duel_dqn_forward.1} parent=11 // pred_region
          _
        $region60: #{duel_dqn_forward.1} parent=11 // pred_fallthru
          _
      $region12: #{duel_dqn_forward.1} parent=5 // pred_fallthru
        _
      %p377 = scmp.lt.s32.totalorder %s22, 2
      // Predicated region
      $region61: #{duel_dqn_forward.1} parent=5 // pred_check
        %p378 = pneg %p377
      $region62: #{duel_dqn_forward.1} parent=5 // pred_check_branch
        %380 = sbr.rel (%p378) target = $region64
      $region63: #{duel_dqn_forward.1} parent=5 // pred_region
        // Predicated region
        $region65: #{duel_dqn_forward.1} parent=63 // pred_check
          %p381 = pneg %p42
        $region66: #{duel_dqn_forward.1} parent=63 // pred_check_branch
          %383 = sbr.rel (%p381) target = $region68
        $region67: #{duel_dqn_forward.1} parent=63 // pred_region
          %p384 = scmp.lt.s32.totalorder %s22, 1
          %s385 = scalar_select %p384, %s22, 1
          %s386 = smul.addr %s385, 48
          %s387 = smul.addr %s386, 4
          %s388 = scalar_lea.vmem %s0, %s387
        $region68: #{duel_dqn_forward.1} parent=63 // pred_fallthru
          _
      $region64: #{duel_dqn_forward.1} parent=5 // pred_fallthru
        _
      %p389 = scmp.le.s32.totalorder 1, %s22
      %p390 = scmp.lt.s32.totalorder %s22, 3
      %p391 = pnand %p389, %p390
      %p392 = pneg %p391
      // Predicated region
      $region69: #{duel_dqn_forward.1} parent=5 // pred_check
        _
      $region70: #{duel_dqn_forward.1} parent=5 // pred_check_branch
        %394 = sbr.rel (%p391) target = $region72
      $region71: #{duel_dqn_forward.1} parent=5 // pred_region
        %s395 = ssub.s32 %s22, 1
        %p396 = scmp.lt.s32.totalorder %s27, 1
        %s397 = scalar_select %p396, %s27, 1
        %s398 = smul.addr %s397, 48
        %s399 = smul.addr %s398, 4
        %s400 = scalar_lea.vmem %s0, %s399
        %p401 = pneg %p48
        %p402 = pneg %p45
        %p403 = pneg %p69
        %p404 = pneg %p66
        %p405 = pneg %p90
        %p406 = pneg %p87
        %p407 = pneg %p111
        %p408 = pneg %p108
        %p409 = pneg %p132
        %p410 = pneg %p129
        %p411 = pneg %p153
        %p412 = pneg %p150
        %p413 = pneg %p174
        %p414 = pneg %p171
        %p415 = pneg %p195
        %p416 = pneg %p192
        %p417 = pneg %p216
        %p418 = pneg %p213
        %p419 = pneg %p237
        %p420 = pneg %p234
        %p421 = pneg %p258
        %p422 = pneg %p255
        %p423 = pneg %p279
        %p424 = pneg %p276
        %p425 = pneg %p300
        %p426 = pneg %p297
        %p427 = pneg %p326
        %p428 = pneg %p323
        %s429 = sand.u32 %s313, 1
        %s430 = scalar_lea.sflag [#allocation3], %s429
        %s431 = sand.u32 %s313, 1
        %s432 = scalar_lea.vmem [#allocation2], %s431
        %p433 = scmp.lt.s32.totalorder %s27, 1
        %s434 = scalar_select %p433, %s27, 1
        %s435 = smul.addr %s434, 48
        %s436 = smul.addr %s435, 4
        %s437 = scalar_lea.vmem %s0, %s436
        %v439 = vld [vmem:[%s437] sm:$0xff]
        %v440 = vld [vmem:[%s437 + $0x8] sm:$0xff]
        %v441 = vld [vmem:[%s437 + $0x10] sm:$0xff]
        %v442 = vld [vmem:[%s437 + $0x18] sm:$0xff]
        %v443 = vld [vmem:[%s437 + $0x20] sm:$0xff]
        %v444 = vld [vmem:[%s437 + $0x28] sm:$0xff]
        %v445 = vld [vmem:[%s437 + $0x30] sm:$0xff]
        %v446 = vld [vmem:[%s437 + $0x38] sm:$0xff]
        %v447 = vld [vmem:[%s437 + $0x40] sm:$0xff]
        %v448 = vld [vmem:[%s437 + $0x48] sm:$0xff]
        %v449 = vld [vmem:[%s437 + $0x50] sm:$0xff]
        %v450 = vld [vmem:[%s437 + $0x58] sm:$0xff]
        %v451 = vld [vmem:[%s437 + $0x60] sm:$0xff]
        %v452 = vld [vmem:[%s437 + $0x68] sm:$0xff]
        %v453 = vld [vmem:[%s437 + $0x70] sm:$0xff]
        %v454 = vld [vmem:[%s437 + $0x78] sm:$0xff]
        %v455 = vld [vmem:[%s437 + $0x80] sm:$0xff]
        %v456 = vld [vmem:[%s437 + $0x88] sm:$0xff]
        %v457 = vld [vmem:[%s437 + $0x90] sm:$0xff]
        %v458 = vld [vmem:[%s437 + $0x98] sm:$0xff]
        %v459 = vld [vmem:[%s437 + $0xa0] sm:$0xff]
        %v460 = vld [vmem:[%s437 + $0xa8] sm:$0xff]
        %v461 = vld [vmem:[%s437 + $0xb0] sm:$0xff]
        %v462 = vld [vmem:[%s437 + $0xb8] sm:$0xff]
        %v463 = vld [vmem:[%s1] sm:$0xf]
        %v464 = vld [vmem:[%s1 + $0x4] sm:$0xf]
        %v465 = vld [vmem:[%s1 + $0x8] sm:$0xf]
        %v466 = vld [vmem:[%s1 + $0xc] sm:$0xf]
        %v467 = vld [vmem:[%s1 + $0x10] sm:$0xf]
        %v468 = vld [vmem:[%s1 + $0x14] sm:$0xf]
        %v469 = vld [vmem:[%s1 + $0x18] sm:$0xf]
        %v470 = vld [vmem:[%s1 + $0x1c] sm:$0xf]
        %v471 = vld [vmem:[%s1 + $0x20] sm:$0xf]
        %v472 = vld [vmem:[%s1 + $0x24] sm:$0xf]
        %v473 = vld [vmem:[%s1 + $0x28] sm:$0xf]
        %v474 = vld [vmem:[%s1 + $0x2c] sm:$0xf]
        %v475 = vld [vmem:[%s1 + $0x30] sm:$0xf]
        %v476 = vld [vmem:[%s1 + $0x34] sm:$0xf]
        %v477 = vld [vmem:[%s1 + $0x38] sm:$0xf]
        %v478 = vld [vmem:[%s1 + $0x3c] sm:$0xf]
        %v479 = vld [vmem:[%s1 + $0x40] sm:$0xf]
        %v480 = vld [vmem:[%s1 + $0x44] sm:$0xf]
        %v481 = vld [vmem:[%s1 + $0x48] sm:$0xf]
        %v482 = vld [vmem:[%s1 + $0x4c] sm:$0xf]
        %v483 = vld [vmem:[%s1 + $0x50] sm:$0xf]
        %v484 = vld [vmem:[%s1 + $0x54] sm:$0xf]
        %v485 = vld [vmem:[%s1 + $0x58] sm:$0xf]
        %v486 = vld [vmem:[%s1 + $0x5c] sm:$0xf]
        %v487 = vld [vmem:[%s1 + $0x60] sm:$0xf]
        %v488 = vld [vmem:[%s1 + $0x64] sm:$0xf]
        %v489 = vld [vmem:[%s1 + $0x68] sm:$0xf]
        %v490 = vld [vmem:[%s1 + $0x6c] sm:$0xf]
        %v491 = vld [vmem:[%s1 + $0x70] sm:$0xf]
        %v492 = vld [vmem:[%s1 + $0x74] sm:$0xf]
        %v493 = vld [vmem:[%s1 + $0x78] sm:$0xf]
        %v494 = vld [vmem:[%s1 + $0x7c] sm:$0xf]
        %v495 = vld [vmem:[%s1 + $0x80] sm:$0xf]
        %v496 = vld [vmem:[%s1 + $0x84] sm:$0xf]
        %v497 = vld [vmem:[%s1 + $0x88] sm:$0xf]
        %v498 = vld [vmem:[%s1 + $0x8c] sm:$0xf]
        %v499 = vld [vmem:[%s1 + $0x90] sm:$0xf]
        %v500 = vld [vmem:[%s1 + $0x94] sm:$0xf]
        %v501 = vld [vmem:[%s1 + $0x98] sm:$0xf]
        %v502 = vld [vmem:[%s1 + $0x9c] sm:$0xf]
        %v503 = vld [vmem:[%s1 + $0xa0] sm:$0xf]
        %v504 = vld [vmem:[%s1 + $0xa4] sm:$0xf]
        %v505 = vld [vmem:[%s1 + $0xa8] sm:$0xf]
        %v506 = vld [vmem:[%s1 + $0xac] sm:$0xf]
        %v507 = vld [vmem:[%s1 + $0xb0] sm:$0xf]
        %v508 = vld [vmem:[%s1 + $0xb4] sm:$0xf]
        %v509 = vld [vmem:[%s1 + $0xb8] sm:$0xf]
        %v510 = vld [vmem:[%s1 + $0xbc] sm:$0xf]
        %v511 = vld [vmem:[%s1 + $0xc0] sm:$0xf]
        %v512 = vld [vmem:[%s1 + $0xc4] sm:$0xf]
        %v513 = vld [vmem:[%s1 + $0xc8] sm:$0xf]
        %v514 = vld [vmem:[%s1 + $0xcc] sm:$0xf]
        %v515 = vld [vmem:[%s1 + $0xd0] sm:$0xf]
        %v516 = vld [vmem:[%s1 + $0xd4] sm:$0xf]
        %v517 = vld [vmem:[%s1 + $0xd8] sm:$0xf]
        %v518 = vld [vmem:[%s1 + $0xdc] sm:$0xf]
        %v519 = vld [vmem:[%s1 + $0xe0] sm:$0xf]
        %v520 = vld [vmem:[%s1 + $0xe4] sm:$0xf]
        %v521 = vld [vmem:[%s1 + $0xe8] sm:$0xf]
        %v522 = vld [vmem:[%s1 + $0xec] sm:$0xf]
        %v523 = vld [vmem:[%s1 + $0xf0] sm:$0xf]
        %v524 = vld [vmem:[%s1 + $0xf4] sm:$0xf]
        %v525 = vld [vmem:[%s1 + $0xf8] sm:$0xf]
        %v526 = vld [vmem:[%s1 + $0xfc] sm:$0xf]
        %v527 = vld [vmem:[%s1 + $0x100] sm:$0xf]
        %v528 = vld [vmem:[%s1 + $0x104] sm:$0xf]
        %v529 = vld [vmem:[%s1 + $0x108] sm:$0xf]
        %v530 = vld [vmem:[%s1 + $0x10c] sm:$0xf]
        %v531 = vld [vmem:[%s1 + $0x110] sm:$0xf]
        %v532 = vld [vmem:[%s1 + $0x114] sm:$0xf]
        %v533 = vld [vmem:[%s1 + $0x118] sm:$0xf]
        %v534 = vld [vmem:[%s1 + $0x11c] sm:$0xf]
        %v535 = vld [vmem:[%s1 + $0x120] sm:$0xf]
        %v536 = vld [vmem:[%s1 + $0x124] sm:$0xf]
        %v537 = vld [vmem:[%s1 + $0x128] sm:$0xf]
        %v538 = vld [vmem:[%s1 + $0x12c] sm:$0xf]
        %v539 = vld [vmem:[%s1 + $0x130] sm:$0xf]
        %v540 = vld [vmem:[%s1 + $0x134] sm:$0xf]
        %v541 = vld [vmem:[%s1 + $0x138] sm:$0xf]
        %v542 = vld [vmem:[%s1 + $0x13c] sm:$0xf]
        %v543 = vld [vmem:[%s1 + $0x140] sm:$0xf]
        %v544 = vld [vmem:[%s1 + $0x144] sm:$0xf]
        %v545 = vld [vmem:[%s1 + $0x148] sm:$0xf]
        %v546 = vld [vmem:[%s1 + $0x14c] sm:$0xf]
        %v547 = vld [vmem:[%s1 + $0x150] sm:$0xf]
        %v548 = vld [vmem:[%s1 + $0x154] sm:$0xf]
        %v549 = vld [vmem:[%s1 + $0x158] sm:$0xf]
        %v550 = vld [vmem:[%s1 + $0x15c] sm:$0xf]
        %v551 = vld [vmem:[%s1 + $0x160] sm:$0xf]
        %v552 = vld [vmem:[%s1 + $0x164] sm:$0xf]
        %v553 = vld [vmem:[%s1 + $0x168] sm:$0xf]
        %v554 = vld [vmem:[%s1 + $0x16c] sm:$0xf]
        %v555 = vld [vmem:[%s1 + $0x170] sm:$0xf]
        %v556 = vld [vmem:[%s1 + $0x174] sm:$0xf]
        %v557 = vld [vmem:[%s1 + $0x178] sm:$0xf]
        %v558 = vld [vmem:[%s1 + $0x17c] sm:$0xf]
        %v559 = vld [vmem:[%s2] sm:$0x1]
        %v561 = vperm.slane %v559, 0
        %v587 = vunpack.c.l.b16 %v439
        %v588 = vunpack.c.h.b16 %v439
        %v589 = vunpack.c.l.b16 %v440
        %v590 = vunpack.c.h.b16 %v440
        %v591 = vunpack.c.l.b16 %v441
        %v592 = vunpack.c.h.b16 %v441
        %v593 = vunpack.c.l.b16 %v442
        %v594 = vunpack.c.h.b16 %v442
        %v595 = vunpack.c.l.b16 %v443
        %v596 = vunpack.c.h.b16 %v443
        %v597 = vunpack.c.l.b16 %v444
        %v598 = vunpack.c.h.b16 %v444
        %v599 = vunpack.c.l.b16 %v445
        %v600 = vunpack.c.h.b16 %v445
        %v601 = vunpack.c.l.b16 %v446
        %v602 = vunpack.c.h.b16 %v446
        %v603 = vunpack.c.l.b16 %v447
        %v604 = vunpack.c.h.b16 %v447
        %v605 = vunpack.c.l.b16 %v448
        %v606 = vunpack.c.h.b16 %v448
        %v607 = vunpack.c.l.b16 %v449
        %v608 = vunpack.c.h.b16 %v449
        %v609 = vunpack.c.l.b16 %v450
        %v610 = vunpack.c.h.b16 %v450
        %v611 = vunpack.c.l.b16 %v451
        %v612 = vunpack.c.h.b16 %v451
        %v613 = vunpack.c.l.b16 %v452
        %v614 = vunpack.c.h.b16 %v452
        %v615 = vunpack.c.l.b16 %v453
        %v616 = vunpack.c.h.b16 %v453
        %v617 = vunpack.c.l.b16 %v454
        %v618 = vunpack.c.h.b16 %v454
        %v619 = vunpack.c.l.b16 %v455
        %v620 = vunpack.c.h.b16 %v455
        %v621 = vunpack.c.l.b16 %v456
        %v622 = vunpack.c.h.b16 %v456
        %v623 = vunpack.c.l.b16 %v457
        %v624 = vunpack.c.h.b16 %v457
        %v625 = vunpack.c.l.b16 %v458
        %v626 = vunpack.c.h.b16 %v458
        %v627 = vunpack.c.l.b16 %v459
        %v628 = vunpack.c.h.b16 %v459
        %v629 = vunpack.c.l.b16 %v460
        %v630 = vunpack.c.h.b16 %v460
        %v631 = vunpack.c.l.b16 %v461
        %v632 = vunpack.c.h.b16 %v461
        %v633 = vunpack.c.l.b16 %v462
        %v634 = vunpack.c.h.b16 %v462
        %v635 = vpack.c.b16 %v593, %v587
        %v636 = vpack.c.b16 %v594, %v588
        %v637 = vpack.c.b16 %v595, %v589
        %v638 = vpack.c.b16 %v596, %v590
        %v639 = vpack.c.b16 %v597, %v591
        %v640 = vpack.c.b16 %v598, %v592
        %v641 = vpack.c.b16 %v605, %v599
        %v642 = vpack.c.b16 %v606, %v600
        %v643 = vpack.c.b16 %v607, %v601
        %v644 = vpack.c.b16 %v608, %v602
        %v645 = vpack.c.b16 %v609, %v603
        %v646 = vpack.c.b16 %v610, %v604
        %v647 = vpack.c.b16 %v617, %v611
        %v648 = vpack.c.b16 %v618, %v612
        %v649 = vpack.c.b16 %v619, %v613
        %v650 = vpack.c.b16 %v620, %v614
        %v651 = vpack.c.b16 %v621, %v615
        %v652 = vpack.c.b16 %v622, %v616
        %v653 = vpack.c.b16 %v629, %v623
        %v654 = vpack.c.b16 %v630, %v624
        %v655 = vpack.c.b16 %v631, %v625
        %v656 = vpack.c.b16 %v632, %v626
        %v657 = vpack.c.b16 %v633, %v627
        %v658 = vpack.c.b16 %v634, %v628
        %v779 = vunpack.c.l.b16 %v463
        %v780 = vunpack.c.l.b16 %v464
        %v781 = vunpack.c.l.b16 %v465
        %v782 = vunpack.c.l.b16 %v466
        %v783 = vunpack.c.l.b16 %v467
        %v784 = vunpack.c.l.b16 %v468
        %v785 = vunpack.c.l.b16 %v469
        %v786 = vunpack.c.l.b16 %v470
        %v787 = vunpack.c.l.b16 %v471
        %v788 = vunpack.c.l.b16 %v472
        %v789 = vunpack.c.l.b16 %v473
        %v790 = vunpack.c.l.b16 %v474
        %v791 = vunpack.c.l.b16 %v475
        %v792 = vunpack.c.l.b16 %v476
        %v793 = vunpack.c.l.b16 %v477
        %v794 = vunpack.c.l.b16 %v478
        %v795 = vunpack.c.l.b16 %v479
        %v796 = vunpack.c.l.b16 %v480
        %v797 = vunpack.c.l.b16 %v481
        %v798 = vunpack.c.l.b16 %v482
        %v799 = vunpack.c.l.b16 %v483
        %v800 = vunpack.c.l.b16 %v484
        %v801 = vunpack.c.l.b16 %v485
        %v802 = vunpack.c.l.b16 %v486
        %v803 = vunpack.c.l.b16 %v487
        %v804 = vunpack.c.l.b16 %v488
        %v805 = vunpack.c.l.b16 %v489
        %v806 = vunpack.c.l.b16 %v490
        %v807 = vunpack.c.l.b16 %v491
        %v808 = vunpack.c.l.b16 %v492
        %v809 = vunpack.c.l.b16 %v493
        %v810 = vunpack.c.l.b16 %v494
        %v811 = vunpack.c.l.b16 %v495
        %v812 = vunpack.c.l.b16 %v496
        %v813 = vunpack.c.l.b16 %v497
        %v814 = vunpack.c.l.b16 %v498
        %v815 = vunpack.c.l.b16 %v499
        %v816 = vunpack.c.l.b16 %v500
        %v817 = vunpack.c.l.b16 %v501
        %v818 = vunpack.c.l.b16 %v502
        %v819 = vunpack.c.l.b16 %v503
        %v820 = vunpack.c.l.b16 %v504
        %v821 = vunpack.c.l.b16 %v505
        %v822 = vunpack.c.l.b16 %v506
        %v823 = vunpack.c.l.b16 %v507
        %v824 = vunpack.c.l.b16 %v508
        %v825 = vunpack.c.l.b16 %v509
        %v826 = vunpack.c.l.b16 %v510
        %v827 = vunpack.c.l.b16 %v511
        %v828 = vunpack.c.l.b16 %v512
        %v829 = vunpack.c.l.b16 %v513
        %v830 = vunpack.c.l.b16 %v514
        %v831 = vunpack.c.l.b16 %v515
        %v832 = vunpack.c.l.b16 %v516
        %v833 = vunpack.c.l.b16 %v517
        %v834 = vunpack.c.l.b16 %v518
        %v835 = vunpack.c.l.b16 %v519
        %v836 = vunpack.c.l.b16 %v520
        %v837 = vunpack.c.l.b16 %v521
        %v838 = vunpack.c.l.b16 %v522
        %v839 = vunpack.c.l.b16 %v523
        %v840 = vunpack.c.l.b16 %v524
        %v841 = vunpack.c.l.b16 %v525
        %v842 = vunpack.c.l.b16 %v526
        %v843 = vunpack.c.l.b16 %v527
        %v844 = vunpack.c.l.b16 %v528
        %v845 = vunpack.c.l.b16 %v529
        %v846 = vunpack.c.l.b16 %v530
        %v847 = vunpack.c.l.b16 %v531
        %v848 = vunpack.c.l.b16 %v532
        %v849 = vunpack.c.l.b16 %v533
        %v850 = vunpack.c.l.b16 %v534
        %v851 = vunpack.c.l.b16 %v535
        %v852 = vunpack.c.l.b16 %v536
        %v853 = vunpack.c.l.b16 %v537
        %v854 = vunpack.c.l.b16 %v538
        %v855 = vunpack.c.l.b16 %v539
        %v856 = vunpack.c.l.b16 %v540
        %v857 = vunpack.c.l.b16 %v541
        %v858 = vunpack.c.l.b16 %v542
        %v859 = vunpack.c.l.b16 %v543
        %v860 = vunpack.c.l.b16 %v544
        %v861 = vunpack.c.l.b16 %v545
        %v862 = vunpack.c.l.b16 %v546
        %v863 = vunpack.c.l.b16 %v547
        %v864 = vunpack.c.l.b16 %v548
        %v865 = vunpack.c.l.b16 %v549
        %v866 = vunpack.c.l.b16 %v550
        %v867 = vunpack.c.l.b16 %v551
        %v868 = vunpack.c.l.b16 %v552
        %v869 = vunpack.c.l.b16 %v553
        %v870 = vunpack.c.l.b16 %v554
        %v871 = vunpack.c.l.b16 %v555
        %v872 = vunpack.c.l.b16 %v556
        %v873 = vunpack.c.l.b16 %v557
        %v874 = vunpack.c.l.b16 %v558
        %v875 = vpack.c.b16 %v780, %v779
        %v876 = vpack.c.b16 %v782, %v781
        %v877 = vpack.c.b16 %v784, %v783
        %v878 = vpack.c.b16 %v786, %v785
        %v879 = vpack.c.b16 %v788, %v787
        %v880 = vpack.c.b16 %v790, %v789
        %v881 = vpack.c.b16 %v792, %v791
        %v882 = vpack.c.b16 %v794, %v793
        %v883 = vpack.c.b16 %v796, %v795
        %v884 = vpack.c.b16 %v798, %v797
        %v885 = vpack.c.b16 %v800, %v799
        %v886 = vpack.c.b16 %v802, %v801
        %v887 = vpack.c.b16 %v804, %v803
        %v888 = vpack.c.b16 %v806, %v805
        %v889 = vpack.c.b16 %v808, %v807
        %v890 = vpack.c.b16 %v810, %v809
        %v891 = vpack.c.b16 %v812, %v811
        %v892 = vpack.c.b16 %v814, %v813
        %v893 = vpack.c.b16 %v816, %v815
        %v894 = vpack.c.b16 %v818, %v817
        %v895 = vpack.c.b16 %v820, %v819
        %v896 = vpack.c.b16 %v822, %v821
        %v897 = vpack.c.b16 %v824, %v823
        %v898 = vpack.c.b16 %v826, %v825
        %v899 = vpack.c.b16 %v828, %v827
        %v900 = vpack.c.b16 %v830, %v829
        %v901 = vpack.c.b16 %v832, %v831
        %v902 = vpack.c.b16 %v834, %v833
        %v903 = vpack.c.b16 %v836, %v835
        %v904 = vpack.c.b16 %v838, %v837
        %v905 = vpack.c.b16 %v840, %v839
        %v906 = vpack.c.b16 %v842, %v841
        %v907 = vpack.c.b16 %v844, %v843
        %v908 = vpack.c.b16 %v846, %v845
        %v909 = vpack.c.b16 %v848, %v847
        %v910 = vpack.c.b16 %v850, %v849
        %v911 = vpack.c.b16 %v852, %v851
        %v912 = vpack.c.b16 %v854, %v853
        %v913 = vpack.c.b16 %v856, %v855
        %v914 = vpack.c.b16 %v858, %v857
        %v915 = vpack.c.b16 %v860, %v859
        %v916 = vpack.c.b16 %v862, %v861
        %v917 = vpack.c.b16 %v864, %v863
        %v918 = vpack.c.b16 %v866, %v865
        %v919 = vpack.c.b16 %v868, %v867
        %v920 = vpack.c.b16 %v870, %v869
        %v921 = vpack.c.b16 %v872, %v871
        %v922 = vpack.c.b16 %v874, %v873
        %971 = vmatpush.bf16.msra.mxu0 %v882
        %972 = vmatpush.bf16.msra.mxu0 %v881
        %973 = vmatpush.bf16.msra.mxu0 %v880
        %974 = vmatpush.bf16.msra.mxu0 %v879
        %975 = vmatpush.bf16.msra.mxu0 %v878
        %976 = vmatpush.bf16.msra.mxu0 %v877
        %977 = vmatpush.bf16.msra.mxu0 %v876
        %978 = vmatpush.bf16.msra.mxu0 %v875
        %979 = vmatmul.bf16.gmra.mxu0 %v635
        %v980 = vpop.f32.mrf.mxu0
        %v981 = vadd.f32 %v561, %v980
        %v982 = vpop.f32.mrf.mxu0
        %v983 = vadd.f32 %v561, %v982
        %984 = vmatmul.bf16.gmra.mxu0 %v641
        %v985 = vpop.f32.mrf.mxu0
        %v986 = vadd.f32 %v561, %v985
        %v987 = vpop.f32.mrf.mxu0
        %v988 = vadd.f32 %v561, %v987
        %989 = vmatmul.bf16.gmra.mxu0 %v647
        %v990 = vpop.f32.mrf.mxu0
        %v991 = vadd.f32 %v561, %v990
        %v992 = vpop.f32.mrf.mxu0
        %v993 = vadd.f32 %v561, %v992
        %994 = vmatmul.bf16.gmra.mxu0 %v653
        %v995 = vpop.f32.mrf.mxu0
        %v996 = vadd.f32 %v561, %v995
        %v997 = vpop.f32.mrf.mxu0
        %v998 = vadd.f32 %v561, %v997
        %999 = vdwg.mxu0
        %1000 = vmatpush.bf16.msra.mxu0 %v890
        %1001 = vmatpush.bf16.msra.mxu0 %v889
        %1002 = vmatpush.bf16.msra.mxu0 %v888
        %1003 = vmatpush.bf16.msra.mxu0 %v887
        %1004 = vmatpush.bf16.msra.mxu0 %v886
        %1005 = vmatpush.bf16.msra.mxu0 %v885
        %1006 = vmatpush.bf16.msra.mxu0 %v884
        %1007 = vmatpush.bf16.msra.mxu0 %v883
        %1008 = vmatmul.bf16.gmra.mxu0 %v636
        %v1009 = vpop.f32.mrf.mxu0
        %v1010 = vadd.f32 %v981, %v1009
        %v1011 = vpop.f32.mrf.mxu0
        %v1012 = vadd.f32 %v983, %v1011
        %1013 = vmatmul.bf16.gmra.mxu0 %v642
        %v1014 = vpop.f32.mrf.mxu0
        %v1015 = vadd.f32 %v986, %v1014
        %v1016 = vpop.f32.mrf.mxu0
        %v1017 = vadd.f32 %v988, %v1016
        %1018 = vmatmul.bf16.gmra.mxu0 %v648
        %v1019 = vpop.f32.mrf.mxu0
        %v1020 = vadd.f32 %v991, %v1019
        %v1021 = vpop.f32.mrf.mxu0
        %v1022 = vadd.f32 %v993, %v1021
        %1023 = vmatmul.bf16.gmra.mxu0 %v654
        %v1024 = vpop.f32.mrf.mxu0
        %v1025 = vadd.f32 %v996, %v1024
        %v1026 = vpop.f32.mrf.mxu0
        %v1027 = vadd.f32 %v998, %v1026
        %1028 = vdwg.mxu0
        %1029 = vmatpush.bf16.msra.mxu0 %v898
        %1030 = vmatpush.bf16.msra.mxu0 %v897
        %1031 = vmatpush.bf16.msra.mxu0 %v896
        %1032 = vmatpush.bf16.msra.mxu0 %v895
        %1033 = vmatpush.bf16.msra.mxu0 %v894
        %1034 = vmatpush.bf16.msra.mxu0 %v893
        %1035 = vmatpush.bf16.msra.mxu0 %v892
        %1036 = vmatpush.bf16.msra.mxu0 %v891
        %1037 = vmatmul.bf16.gmra.mxu0 %v637
        %v1038 = vpop.f32.mrf.mxu0
        %v1039 = vadd.f32 %v1010, %v1038
        %v1040 = vpop.f32.mrf.mxu0
        %v1041 = vadd.f32 %v1012, %v1040
        %1042 = vmatmul.bf16.gmra.mxu0 %v643
        %v1043 = vpop.f32.mrf.mxu0
        %v1044 = vadd.f32 %v1015, %v1043
        %v1045 = vpop.f32.mrf.mxu0
        %v1046 = vadd.f32 %v1017, %v1045
        %1047 = vmatmul.bf16.gmra.mxu0 %v649
        %v1048 = vpop.f32.mrf.mxu0
        %v1049 = vadd.f32 %v1020, %v1048
        %v1050 = vpop.f32.mrf.mxu0
        %v1051 = vadd.f32 %v1022, %v1050
        %1052 = vmatmul.bf16.gmra.mxu0 %v655
        %v1053 = vpop.f32.mrf.mxu0
        %v1054 = vadd.f32 %v1025, %v1053
        %v1055 = vpop.f32.mrf.mxu0
        %v1056 = vadd.f32 %v1027, %v1055
        %1057 = vdwg.mxu0
        %1058 = vmatpush.bf16.msra.mxu0 %v906
        %1059 = vmatpush.bf16.msra.mxu0 %v905
        %1060 = vmatpush.bf16.msra.mxu0 %v904
        %1061 = vmatpush.bf16.msra.mxu0 %v903
        %1062 = vmatpush.bf16.msra.mxu0 %v902
        %1063 = vmatpush.bf16.msra.mxu0 %v901
        %1064 = vmatpush.bf16.msra.mxu0 %v900
        %1065 = vmatpush.bf16.msra.mxu0 %v899
        %1066 = vmatmul.bf16.gmra.mxu0 %v638
        %v1067 = vpop.f32.mrf.mxu0
        %v1068 = vadd.f32 %v1039, %v1067
        %v1069 = vpop.f32.mrf.mxu0
        %v1070 = vadd.f32 %v1041, %v1069
        %1071 = vmatmul.bf16.gmra.mxu0 %v644
        %v1072 = vpop.f32.mrf.mxu0
        %v1073 = vadd.f32 %v1044, %v1072
        %v1074 = vpop.f32.mrf.mxu0
        %v1075 = vadd.f32 %v1046, %v1074
        %1076 = vmatmul.bf16.gmra.mxu0 %v650
        %v1077 = vpop.f32.mrf.mxu0
        %v1078 = vadd.f32 %v1049, %v1077
        %v1079 = vpop.f32.mrf.mxu0
        %v1080 = vadd.f32 %v1051, %v1079
        %1081 = vmatmul.bf16.gmra.mxu0 %v656
        %v1082 = vpop.f32.mrf.mxu0
        %v1083 = vadd.f32 %v1054, %v1082
        %v1084 = vpop.f32.mrf.mxu0
        %v1085 = vadd.f32 %v1056, %v1084
        %1086 = vdwg.mxu0
        %1087 = vmatpush.bf16.msra.mxu0 %v914
        %1088 = vmatpush.bf16.msra.mxu0 %v913
        %1089 = vmatpush.bf16.msra.mxu0 %v912
        %1090 = vmatpush.bf16.msra.mxu0 %v911
        %1091 = vmatpush.bf16.msra.mxu0 %v910
        %1092 = vmatpush.bf16.msra.mxu0 %v909
        %1093 = vmatpush.bf16.msra.mxu0 %v908
        %1094 = vmatpush.bf16.msra.mxu0 %v907
        %1095 = vmatmul.bf16.gmra.mxu0 %v639
        %v1096 = vpop.f32.mrf.mxu0
        %v1097 = vadd.f32 %v1068, %v1096
        %v1098 = vpop.f32.mrf.mxu0
        %v1099 = vadd.f32 %v1070, %v1098
        %1100 = vmatmul.bf16.gmra.mxu0 %v645
        %v1101 = vpop.f32.mrf.mxu0
        %v1102 = vadd.f32 %v1073, %v1101
        %v1103 = vpop.f32.mrf.mxu0
        %v1104 = vadd.f32 %v1075, %v1103
        %1105 = vmatmul.bf16.gmra.mxu0 %v651
        %v1106 = vpop.f32.mrf.mxu0
        %v1107 = vadd.f32 %v1078, %v1106
        %v1108 = vpop.f32.mrf.mxu0
        %v1109 = vadd.f32 %v1080, %v1108
        %1110 = vmatmul.bf16.gmra.mxu0 %v657
        %v1111 = vpop.f32.mrf.mxu0
        %v1112 = vadd.f32 %v1083, %v1111
        %v1113 = vpop.f32.mrf.mxu0
        %v1114 = vadd.f32 %v1085, %v1113
        %1115 = vdwg.mxu0
        %1116 = vmatpush.bf16.msra.mxu0 %v922
        %1117 = vmatpush.bf16.msra.mxu0 %v921
        %1118 = vmatpush.bf16.msra.mxu0 %v920
        %1119 = vmatpush.bf16.msra.mxu0 %v919
        %1120 = vmatpush.bf16.msra.mxu0 %v918
        %1121 = vmatpush.bf16.msra.mxu0 %v917
        %1122 = vmatpush.bf16.msra.mxu0 %v916
        %1123 = vmatpush.bf16.msra.mxu0 %v915
        %1124 = vmatmul.bf16.gmra.mxu0 %v640
        %v1125 = vpop.f32.mrf.mxu0
        %v1126 = vadd.f32 %v1097, %v1125
        %v1127 = vpop.f32.mrf.mxu0
        %v1128 = vadd.f32 %v1099, %v1127
        %1129 = vmatmul.bf16.gmra.mxu0 %v646
        %v1130 = vpop.f32.mrf.mxu0
        %v1131 = vadd.f32 %v1102, %v1130
        %v1132 = vpop.f32.mrf.mxu0
        %v1133 = vadd.f32 %v1104, %v1132
        %1134 = vmatmul.bf16.gmra.mxu0 %v652
        %v1135 = vpop.f32.mrf.mxu0
        %v1136 = vadd.f32 %v1107, %v1135
        %v1137 = vpop.f32.mrf.mxu0
        %v1138 = vadd.f32 %v1109, %v1137
        %1139 = vmatmul.bf16.gmra.mxu0 %v658
        %v1140 = vpop.f32.mrf.mxu0
        %v1141 = vadd.f32 %v1112, %v1140
        %v1142 = vpop.f32.mrf.mxu0
        %v1143 = vadd.f32 %v1114, %v1142
        %1144 = vdwg.mxu0
        %v1145 = vmul.f32 %v1126, 0.5
        %v1146 = vmul.f32 %v1128, 0.5
        %v1147 = vmul.f32 %v1131, 0.5
        %v1148 = vmul.f32 %v1133, 0.5
        %v1149 = vmul.f32 %v1136, 0.5
        %v1150 = vmul.f32 %v1138, 0.5
        %v1151 = vmul.f32 %v1141, 0.5
        %v1152 = vmul.f32 %v1143, 0.5
        %v1153 = vtanh.pop %v1145
        %v1154 = vtanh.pop %v1146
        %v1155 = vtanh.pop %v1147
        %v1156 = vtanh.pop %v1148
        %v1157 = vtanh.pop %v1149
        %v1158 = vtanh.pop %v1150
        %v1159 = vtanh.pop %v1151
        %v1160 = vtanh.pop %v1152
        %v1161 = vmul.f32 %v1153, 0.5
        %v1162 = vmul.f32 %v1154, 0.5
        %v1163 = vmul.f32 %v1155, 0.5
        %v1164 = vmul.f32 %v1156, 0.5
        %v1165 = vmul.f32 %v1157, 0.5
        %v1166 = vmul.f32 %v1158, 0.5
        %v1167 = vmul.f32 %v1159, 0.5
        %v1168 = vmul.f32 %v1160, 0.5
        %v1169 = vadd.f32 %v1161, 0.5
        %v1170 = vadd.f32 %v1162, 0.5
        %v1171 = vadd.f32 %v1163, 0.5
        %v1172 = vadd.f32 %v1164, 0.5
        %v1173 = vadd.f32 %v1165, 0.5
        %v1174 = vadd.f32 %v1166, 0.5
        %v1175 = vadd.f32 %v1167, 0.5
        %v1176 = vadd.f32 %v1168, 0.5
        %v1177 = vmul.f32 %v1126, %v1169
        %v1178 = vmul.f32 %v1128, %v1170
        %v1179 = vmul.f32 %v1131, %v1171
        %v1180 = vmul.f32 %v1133, %v1172
        %v1181 = vmul.f32 %v1136, %v1173
        %v1182 = vmul.f32 %v1138, %v1174
        %v1183 = vmul.f32 %v1141, %v1175
        %v1184 = vmul.f32 %v1143, %v1176
        %v1185 = vpack.c.bf16 %v1178, %v1177
        %v1186 = vpack.c.bf16 %v1180, %v1179
        %v1187 = vpack.c.bf16 %v1182, %v1181
        %v1188 = vpack.c.bf16 %v1184, %v1183
        %v1189 = vld [vmem:[%s3] sm:$0xf]
        %v1190 = vld [vmem:[%s3 + $0x4] sm:$0x1]
        %v1193 = vunpack.c.l.b16 %v1189
        %v1194 = vunpack.c.l.b16 %v1190
        %v1195 = vpack.c.b16 %v1194, %v1193
        %vm1196 = vcmask 523264
        %v1198 = vsel %vm1196, %v1195, 0
        %1200 = vmatpush.bf16.msra.mxu0 0
        %1201 = vmatpush.bf16.msra.mxu0 0
        %1202 = vmatpush.bf16.msra.mxu0 0
        %1203 = vmatpush.bf16.msra.mxu0 0
        %1204 = vmatpush.bf16.msra.mxu0 %v1188
        %1205 = vmatpush.bf16.msra.mxu0 %v1187
        %1206 = vmatpush.bf16.msra.mxu0 %v1186
        %1207 = vmatpush.bf16.msra.mxu0 %v1185
        %1208 = vmatmul.bf16.gmra.mxu0 %v1198
        %v1209 = vpop.f32.mrf.mxu0
        %v1210 = vadd.f32 0.0, %v1209
        %v1211 = vpop.f32.mrf.mxu0
        %v1212 = vadd.f32 0.0, %v1211
        %1213 = vdwg.mxu0
        %v1214 = vpack.c.bf16 %v1212, %v1210
        %v1215 = vld [vmem:[%s4] sm:$0xf]
        %v1216 = vld [vmem:[%s4 + $0x4] sm:$0xf]
        %v1217 = vld [vmem:[%s4 + $0x8] sm:$0xf]
        %v1218 = vld [vmem:[%s4 + $0xc] sm:$0xf]
        %s1219 = scalar_lea.vmem %s3, 8
        %v1220 = vld [vmem:[%s1219] sm:$0xf]
        %v1221 = vld [vmem:[%s1219 + $0x4] sm:$0x1]
        %v1224 = vunpack.c.l.b16 %v1220
        %v1225 = vunpack.c.l.b16 %v1221
        %v1226 = vpack.c.b16 %v1225, %v1224
        %v1228 = vsel %vm1196, %v1226, 0
        %1230 = vmatpush.bf16.msra.mxu0 0
        %1231 = vmatpush.bf16.msra.mxu0 0
        %1232 = vmatpush.bf16.msra.mxu0 0
        %1233 = vmatpush.bf16.msra.mxu0 0
        %1234 = vmatpush.bf16.msra.mxu0 %v1188
        %1235 = vmatpush.bf16.msra.mxu0 %v1187
        %1236 = vmatpush.bf16.msra.mxu0 %v1186
        %1237 = vmatpush.bf16.msra.mxu0 %v1185
        %1238 = vmatmul.bf16.gmra.mxu0 %v1228
        %v1239 = vpop.f32.mrf.mxu0
        %v1240 = vadd.f32 0.0, %v1239
        %v1241 = vpop.f32.mrf.mxu0
        %v1242 = vadd.f32 0.0, %v1241
        %1243 = vdwg.mxu0
        %v1244 = vpack.c.bf16 %v1242, %v1240
        %s1245 = scalar_lea.vmem %s4, 16
        %v1246 = vld [vmem:[%s1245] sm:$0xf]
        %v1247 = vld [vmem:[%s1245 + $0x4] sm:$0xf]
        %v1248 = vld [vmem:[%s1245 + $0x8] sm:$0xf]
        %v1249 = vld [vmem:[%s1245 + $0xc] sm:$0xf]
        %v1254 = vunpack.c.l.b16 %v1246
        %v1255 = vunpack.c.l.b16 %v1247
        %v1256 = vunpack.c.l.b16 %v1248
        %v1257 = vunpack.c.l.b16 %v1249
        %v1258 = vpack.c.b16 %v1255, %v1254
        %v1259 = vpack.c.b16 %v1257, %v1256
        %vm1262 = vcmask 261120
        %v1264 = vsel %vm1262, %v1244, 0
        %1266 = vmatpush.bf16.msra.mxu0 0
        %1267 = vmatpush.bf16.msra.mxu0 0
        %1268 = vmatpush.bf16.msra.mxu0 0
        %1269 = vmatpush.bf16.msra.mxu0 0
        %1270 = vmatpush.bf16.msra.mxu0 0
        %1271 = vmatpush.bf16.msra.mxu0 0
        %1272 = vmatpush.bf16.msra.mxu0 %v1259
        %1273 = vmatpush.bf16.msra.mxu0 %v1258
        %1274 = vmatmul.bf16.gmra.mxu0 %v1264
        %v1275 = vpop.f32.mrf.mxu0
        %v1276 = vadd.f32 0.0, %v1275
        %v1277 = vpop.f32.mrf.mxu0
        %v1278 = vadd.f32 0.0, %v1277
        %1279 = vdwg.mxu0
        %v1284 = vunpack.c.l.b16 %v1215
        %v1285 = vunpack.c.l.b16 %v1216
        %v1286 = vunpack.c.l.b16 %v1217
        %v1287 = vunpack.c.l.b16 %v1218
        %v1288 = vpack.c.b16 %v1285, %v1284
        %v1289 = vpack.c.b16 %v1287, %v1286
        %v1293 = vsel %vm1262, %v1214, 0
        %1295 = vmatpush.bf16.msra.mxu0 0
        %1296 = vmatpush.bf16.msra.mxu0 0
        %1297 = vmatpush.bf16.msra.mxu0 0
        %1298 = vmatpush.bf16.msra.mxu0 0
        %1299 = vmatpush.bf16.msra.mxu0 0
        %1300 = vmatpush.bf16.msra.mxu0 0
        %1301 = vmatpush.bf16.msra.mxu0 %v1289
        %1302 = vmatpush.bf16.msra.mxu0 %v1288
        %1303 = vmatmul.bf16.gmra.mxu0 %v1293
        %v1304 = vpop.f32.mrf.mxu0
        %v1305 = vadd.f32 %v1276, %v1304
        %v1306 = vpop.f32.mrf.mxu0
        %v1307 = vadd.f32 %v1278, %v1306
        %1308 = vdwg.mxu0
        %s1309 = scalar_lea.vmem %s3, 16
        %v1310 = vld [vmem:[%s1309] sm:$0xf]
        %v1311 = vld [vmem:[%s1309 + $0x4] sm:$0x1]
        %v1314 = vunpack.c.l.b16 %v1310
        %v1315 = vunpack.c.l.b16 %v1311
        %v1316 = vpack.c.b16 %v1315, %v1314
        %v1318 = vsel %vm1196, %v1316, 0
        %1320 = vmatpush.bf16.msra.mxu0 0
        %1321 = vmatpush.bf16.msra.mxu0 0
        %1322 = vmatpush.bf16.msra.mxu0 0
        %1323 = vmatpush.bf16.msra.mxu0 0
        %1324 = vmatpush.bf16.msra.mxu0 %v1188
        %1325 = vmatpush.bf16.msra.mxu0 %v1187
        %1326 = vmatpush.bf16.msra.mxu0 %v1186
        %1327 = vmatpush.bf16.msra.mxu0 %v1185
        %1328 = vmatmul.bf16.gmra.mxu0 %v1318
        %v1329 = vpop.f32.mrf.mxu0
        %v1330 = vadd.f32 0.0, %v1329
        %v1331 = vpop.f32.mrf.mxu0
        %v1332 = vadd.f32 0.0, %v1331
        %1333 = vdwg.mxu0
        %v1334 = vpack.c.bf16 %v1332, %v1330
        %s1335 = scalar_lea.vmem %s4, 32
        %v1336 = vld [vmem:[%s1335] sm:$0xf]
        %v1337 = vld [vmem:[%s1335 + $0x4] sm:$0xf]
        %v1338 = vld [vmem:[%s1335 + $0x8] sm:$0xf]
        %v1339 = vld [vmem:[%s1335 + $0xc] sm:$0xf]
        %v1344 = vunpack.c.l.b16 %v1336
        %v1345 = vunpack.c.l.b16 %v1337
        %v1346 = vunpack.c.l.b16 %v1338
        %v1347 = vunpack.c.l.b16 %v1339
        %v1348 = vpack.c.b16 %v1345, %v1344
        %v1349 = vpack.c.b16 %v1347, %v1346
        %v1353 = vsel %vm1262, %v1334, 0
        %1355 = vmatpush.bf16.msra.mxu0 0
        %1356 = vmatpush.bf16.msra.mxu0 0
        %1357 = vmatpush.bf16.msra.mxu0 0
        %1358 = vmatpush.bf16.msra.mxu0 0
        %1359 = vmatpush.bf16.msra.mxu0 0
        %1360 = vmatpush.bf16.msra.mxu0 0
        %1361 = vmatpush.bf16.msra.mxu0 %v1349
        %1362 = vmatpush.bf16.msra.mxu0 %v1348
        %1363 = vmatmul.bf16.gmra.mxu0 %v1353
        %v1364 = vpop.f32.mrf.mxu0
        %v1365 = vadd.f32 0.0, %v1364
        %v1366 = vpop.f32.mrf.mxu0
        %v1367 = vadd.f32 0.0, %v1366
        %1368 = vdwg.mxu0
        %v1369 = vadd.f32 %v1305, %v1365
        %v1370 = vadd.f32 %v1307, %v1367
        %s1371 = scalar_lea.vmem %s3, 24
        %v1372 = vld [vmem:[%s1371] sm:$0xf]
        %v1373 = vld [vmem:[%s1371 + $0x4] sm:$0x1]
        %v1376 = vunpack.c.l.b16 %v1372
        %v1377 = vunpack.c.l.b16 %v1373
        %v1378 = vpack.c.b16 %v1377, %v1376
        %v1380 = vsel %vm1196, %v1378, 0
        %1382 = vmatpush.bf16.msra.mxu0 0
        %1383 = vmatpush.bf16.msra.mxu0 0
        %1384 = vmatpush.bf16.msra.mxu0 0
        %1385 = vmatpush.bf16.msra.mxu0 0
        %1386 = vmatpush.bf16.msra.mxu0 %v1188
        %1387 = vmatpush.bf16.msra.mxu0 %v1187
        %1388 = vmatpush.bf16.msra.mxu0 %v1186
        %1389 = vmatpush.bf16.msra.mxu0 %v1185
        %1390 = vmatmul.bf16.gmra.mxu0 %v1380
        %v1391 = vpop.f32.mrf.mxu0
        %v1392 = vadd.f32 0.0, %v1391
        %v1393 = vpop.f32.mrf.mxu0
        %v1394 = vadd.f32 0.0, %v1393
        %1395 = vdwg.mxu0
        %v1396 = vpack.c.bf16 %v1394, %v1392
        %s1397 = scalar_lea.vmem %s4, 48
        %v1398 = vld [vmem:[%s1397] sm:$0xf]
        %v1399 = vld [vmem:[%s1397 + $0x4] sm:$0xf]
        %v1400 = vld [vmem:[%s1397 + $0x8] sm:$0xf]
        %v1401 = vld [vmem:[%s1397 + $0xc] sm:$0xf]
        %v1406 = vunpack.c.l.b16 %v1398
        %v1407 = vunpack.c.l.b16 %v1399
        %v1408 = vunpack.c.l.b16 %v1400
        %v1409 = vunpack.c.l.b16 %v1401
        %v1410 = vpack.c.b16 %v1407, %v1406
        %v1411 = vpack.c.b16 %v1409, %v1408
        %v1415 = vsel %vm1262, %v1396, 0
        %1417 = vmatpush.bf16.msra.mxu0 0
        %1418 = vmatpush.bf16.msra.mxu0 0
        %1419 = vmatpush.bf16.msra.mxu0 0
        %1420 = vmatpush.bf16.msra.mxu0 0
        %1421 = vmatpush.bf16.msra.mxu0 0
        %1422 = vmatpush.bf16.msra.mxu0 0
        %1423 = vmatpush.bf16.msra.mxu0 %v1411
        %1424 = vmatpush.bf16.msra.mxu0 %v1410
        %1425 = vmatmul.bf16.gmra.mxu0 %v1415
        %v1426 = vpop.f32.mrf.mxu0
        %v1427 = vadd.f32 0.0, %v1426
        %v1428 = vpop.f32.mrf.mxu0
        %v1429 = vadd.f32 0.0, %v1428
        %1430 = vdwg.mxu0
        %v1431 = vadd.f32 %v1369, %v1427
        %v1432 = vadd.f32 %v1370, %v1429
        %s1433 = scalar_lea.vmem %s3, 32
        %v1434 = vld [vmem:[%s1433] sm:$0xf]
        %v1435 = vld [vmem:[%s1433 + $0x4] sm:$0x1]
        %v1438 = vunpack.c.l.b16 %v1434
        %v1439 = vunpack.c.l.b16 %v1435
        %v1440 = vpack.c.b16 %v1439, %v1438
        %v1442 = vsel %vm1196, %v1440, 0
        %1444 = vmatpush.bf16.msra.mxu0 0
        %1445 = vmatpush.bf16.msra.mxu0 0
        %1446 = vmatpush.bf16.msra.mxu0 0
        %1447 = vmatpush.bf16.msra.mxu0 0
        %1448 = vmatpush.bf16.msra.mxu0 %v1188
        %1449 = vmatpush.bf16.msra.mxu0 %v1187
        %1450 = vmatpush.bf16.msra.mxu0 %v1186
        %1451 = vmatpush.bf16.msra.mxu0 %v1185
        %1452 = vmatmul.bf16.gmra.mxu0 %v1442
        %v1453 = vpop.f32.mrf.mxu0
        %v1454 = vadd.f32 0.0, %v1453
        %v1455 = vpop.f32.mrf.mxu0
        %v1456 = vadd.f32 0.0, %v1455
        %1457 = vdwg.mxu0
        %v1458 = vpack.c.bf16 %v1456, %v1454
        %s1459 = scalar_lea.vmem %s4, 64
        %v1460 = vld [vmem:[%s1459] sm:$0xf]
        %v1461 = vld [vmem:[%s1459 + $0x4] sm:$0xf]
        %v1462 = vld [vmem:[%s1459 + $0x8] sm:$0xf]
        %v1463 = vld [vmem:[%s1459 + $0xc] sm:$0xf]
        %v1468 = vunpack.c.l.b16 %v1460
        %v1469 = vunpack.c.l.b16 %v1461
        %v1470 = vunpack.c.l.b16 %v1462
        %v1471 = vunpack.c.l.b16 %v1463
        %v1472 = vpack.c.b16 %v1469, %v1468
        %v1473 = vpack.c.b16 %v1471, %v1470
        %v1477 = vsel %vm1262, %v1458, 0
        %1479 = vmatpush.bf16.msra.mxu0 0
        %1480 = vmatpush.bf16.msra.mxu0 0
        %1481 = vmatpush.bf16.msra.mxu0 0
        %1482 = vmatpush.bf16.msra.mxu0 0
        %1483 = vmatpush.bf16.msra.mxu0 0
        %1484 = vmatpush.bf16.msra.mxu0 0
        %1485 = vmatpush.bf16.msra.mxu0 %v1473
        %1486 = vmatpush.bf16.msra.mxu0 %v1472
        %1487 = vmatmul.bf16.gmra.mxu0 %v1477
        %v1488 = vpop.f32.mrf.mxu0
        %v1489 = vadd.f32 0.0, %v1488
        %v1490 = vpop.f32.mrf.mxu0
        %v1491 = vadd.f32 0.0, %v1490
        %1492 = vdwg.mxu0
        %v1493 = vadd.f32 %v1431, %v1489
        %v1494 = vadd.f32 %v1432, %v1491
        %s1495 = scalar_lea.vmem %s3, 40
        %v1496 = vld [vmem:[%s1495] sm:$0xf]
        %v1497 = vld [vmem:[%s1495 + $0x4] sm:$0x1]
        %v1500 = vunpack.c.l.b16 %v1496
        %v1501 = vunpack.c.l.b16 %v1497
        %v1502 = vpack.c.b16 %v1501, %v1500
        %v1504 = vsel %vm1196, %v1502, 0
        %1506 = vmatpush.bf16.msra.mxu0 0
        %1507 = vmatpush.bf16.msra.mxu0 0
        %1508 = vmatpush.bf16.msra.mxu0 0
        %1509 = vmatpush.bf16.msra.mxu0 0
        %1510 = vmatpush.bf16.msra.mxu0 %v1188
        %1511 = vmatpush.bf16.msra.mxu0 %v1187
        %1512 = vmatpush.bf16.msra.mxu0 %v1186
        %1513 = vmatpush.bf16.msra.mxu0 %v1185
        %1514 = vmatmul.bf16.gmra.mxu0 %v1504
        %v1515 = vpop.f32.mrf.mxu0
        %v1516 = vadd.f32 0.0, %v1515
        %v1517 = vpop.f32.mrf.mxu0
        %v1518 = vadd.f32 0.0, %v1517
        %1519 = vdwg.mxu0
        %v1520 = vpack.c.bf16 %v1518, %v1516
        %s1521 = scalar_lea.vmem %s4, 80
        %v1522 = vld [vmem:[%s1521] sm:$0xf]
        %v1523 = vld [vmem:[%s1521 + $0x4] sm:$0xf]
        %v1524 = vld [vmem:[%s1521 + $0x8] sm:$0xf]
        %v1525 = vld [vmem:[%s1521 + $0xc] sm:$0xf]
        %v1530 = vunpack.c.l.b16 %v1522
        %v1531 = vunpack.c.l.b16 %v1523
        %v1532 = vunpack.c.l.b16 %v1524
        %v1533 = vunpack.c.l.b16 %v1525
        %v1534 = vpack.c.b16 %v1531, %v1530
        %v1535 = vpack.c.b16 %v1533, %v1532
        %v1539 = vsel %vm1262, %v1520, 0
        %1541 = vmatpush.bf16.msra.mxu0 0
        %1542 = vmatpush.bf16.msra.mxu0 0
        %1543 = vmatpush.bf16.msra.mxu0 0
        %1544 = vmatpush.bf16.msra.mxu0 0
        %1545 = vmatpush.bf16.msra.mxu0 0
        %1546 = vmatpush.bf16.msra.mxu0 0
        %1547 = vmatpush.bf16.msra.mxu0 %v1535
        %1548 = vmatpush.bf16.msra.mxu0 %v1534
        %1549 = vmatmul.bf16.gmra.mxu0 %v1539
        %v1550 = vpop.f32.mrf.mxu0
        %v1551 = vadd.f32 0.0, %v1550
        %v1552 = vpop.f32.mrf.mxu0
        %v1553 = vadd.f32 0.0, %v1552
        %1554 = vdwg.mxu0
        %v1555 = vadd.f32 %v1493, %v1551
        %v1556 = vadd.f32 %v1494, %v1553
        %s1557 = scalar_lea.vmem %s3, 48
        %v1558 = vld [vmem:[%s1557] sm:$0xf]
        %v1559 = vld [vmem:[%s1557 + $0x4] sm:$0x1]
        %v1562 = vunpack.c.l.b16 %v1558
        %v1563 = vunpack.c.l.b16 %v1559
        %v1564 = vpack.c.b16 %v1563, %v1562
        %v1566 = vsel %vm1196, %v1564, 0
        %1568 = vmatpush.bf16.msra.mxu0 0
        %1569 = vmatpush.bf16.msra.mxu0 0
        %1570 = vmatpush.bf16.msra.mxu0 0
        %1571 = vmatpush.bf16.msra.mxu0 0
        %1572 = vmatpush.bf16.msra.mxu0 %v1188
        %1573 = vmatpush.bf16.msra.mxu0 %v1187
        %1574 = vmatpush.bf16.msra.mxu0 %v1186
        %1575 = vmatpush.bf16.msra.mxu0 %v1185
        %1576 = vmatmul.bf16.gmra.mxu0 %v1566
        %v1577 = vpop.f32.mrf.mxu0
        %v1578 = vadd.f32 0.0, %v1577
        %v1579 = vpop.f32.mrf.mxu0
        %v1580 = vadd.f32 0.0, %v1579
        %1581 = vdwg.mxu0
        %v1582 = vpack.c.bf16 %v1580, %v1578
        %s1583 = scalar_lea.vmem %s4, 96
        %v1584 = vld [vmem:[%s1583] sm:$0xf]
        %v1585 = vld [vmem:[%s1583 + $0x4] sm:$0xf]
        %v1586 = vld [vmem:[%s1583 + $0x8] sm:$0xf]
        %v1587 = vld [vmem:[%s1583 + $0xc] sm:$0xf]
        %v1592 = vunpack.c.l.b16 %v1584
        %v1593 = vunpack.c.l.b16 %v1585
        %v1594 = vunpack.c.l.b16 %v1586
        %v1595 = vunpack.c.l.b16 %v1587
        %v1596 = vpack.c.b16 %v1593, %v1592
        %v1597 = vpack.c.b16 %v1595, %v1594
        %v1601 = vsel %vm1262, %v1582, 0
        %1603 = vmatpush.bf16.msra.mxu0 0
        %1604 = vmatpush.bf16.msra.mxu0 0
        %1605 = vmatpush.bf16.msra.mxu0 0
        %1606 = vmatpush.bf16.msra.mxu0 0
        %1607 = vmatpush.bf16.msra.mxu0 0
        %1608 = vmatpush.bf16.msra.mxu0 0
        %1609 = vmatpush.bf16.msra.mxu0 %v1597
        %1610 = vmatpush.bf16.msra.mxu0 %v1596
        %1611 = vmatmul.bf16.gmra.mxu0 %v1601
        %v1612 = vpop.f32.mrf.mxu0
        %v1613 = vadd.f32 0.0, %v1612
        %v1614 = vpop.f32.mrf.mxu0
        %v1615 = vadd.f32 0.0, %v1614
        %1616 = vdwg.mxu0
        %v1617 = vadd.f32 %v1555, %v1613
        %v1618 = vadd.f32 %v1556, %v1615
        %s1619 = scalar_lea.vmem %s3, 56
        %v1620 = vld [vmem:[%s1619] sm:$0xf]
        %v1621 = vld [vmem:[%s1619 + $0x4] sm:$0x1]
        %v1624 = vunpack.c.l.b16 %v1620
        %v1625 = vunpack.c.l.b16 %v1621
        %v1626 = vpack.c.b16 %v1625, %v1624
        %v1628 = vsel %vm1196, %v1626, 0
        %1630 = vmatpush.bf16.msra.mxu0 0
        %1631 = vmatpush.bf16.msra.mxu0 0
        %1632 = vmatpush.bf16.msra.mxu0 0
        %1633 = vmatpush.bf16.msra.mxu0 0
        %1634 = vmatpush.bf16.msra.mxu0 %v1188
        %1635 = vmatpush.bf16.msra.mxu0 %v1187
        %1636 = vmatpush.bf16.msra.mxu0 %v1186
        %1637 = vmatpush.bf16.msra.mxu0 %v1185
        %1638 = vmatmul.bf16.gmra.mxu0 %v1628
        %v1639 = vpop.f32.mrf.mxu0
        %v1640 = vadd.f32 0.0, %v1639
        %v1641 = vpop.f32.mrf.mxu0
        %v1642 = vadd.f32 0.0, %v1641
        %1643 = vdwg.mxu0
        %v1644 = vpack.c.bf16 %v1642, %v1640
        %s1645 = scalar_lea.vmem %s4, 112
        %v1646 = vld [vmem:[%s1645] sm:$0xf]
        %v1647 = vld [vmem:[%s1645 + $0x4] sm:$0xf]
        %v1648 = vld [vmem:[%s1645 + $0x8] sm:$0xf]
        %v1649 = vld [vmem:[%s1645 + $0xc] sm:$0xf]
        %v1654 = vunpack.c.l.b16 %v1646
        %v1655 = vunpack.c.l.b16 %v1647
        %v1656 = vunpack.c.l.b16 %v1648
        %v1657 = vunpack.c.l.b16 %v1649
        %v1658 = vpack.c.b16 %v1655, %v1654
        %v1659 = vpack.c.b16 %v1657, %v1656
        %v1663 = vsel %vm1262, %v1644, 0
        %1665 = vmatpush.bf16.msra.mxu0 0
        %1666 = vmatpush.bf16.msra.mxu0 0
        %1667 = vmatpush.bf16.msra.mxu0 0
        %1668 = vmatpush.bf16.msra.mxu0 0
        %1669 = vmatpush.bf16.msra.mxu0 0
        %1670 = vmatpush.bf16.msra.mxu0 0
        %1671 = vmatpush.bf16.msra.mxu0 %v1659
        %1672 = vmatpush.bf16.msra.mxu0 %v1658
        %1673 = vmatmul.bf16.gmra.mxu0 %v1663
        %v1674 = vpop.f32.mrf.mxu0
        %v1675 = vadd.f32 0.0, %v1674
        %v1676 = vpop.f32.mrf.mxu0
        %v1677 = vadd.f32 0.0, %v1676
        %1678 = vdwg.mxu0
        %v1679 = vadd.f32 %v1617, %v1675
        %v1680 = vadd.f32 %v1618, %v1677
        %s1681 = scalar_lea.vmem %s3, 64
        %v1682 = vld [vmem:[%s1681] sm:$0xf]
        %v1683 = vld [vmem:[%s1681 + $0x4] sm:$0x1]
        %v1686 = vunpack.c.l.b16 %v1682
        %v1687 = vunpack.c.l.b16 %v1683
        %v1688 = vpack.c.b16 %v1687, %v1686
        %v1690 = vsel %vm1196, %v1688, 0
        %1692 = vmatpush.bf16.msra.mxu0 0
        %1693 = vmatpush.bf16.msra.mxu0 0
        %1694 = vmatpush.bf16.msra.mxu0 0
        %1695 = vmatpush.bf16.msra.mxu0 0
        %1696 = vmatpush.bf16.msra.mxu0 %v1188
        %1697 = vmatpush.bf16.msra.mxu0 %v1187
        %1698 = vmatpush.bf16.msra.mxu0 %v1186
        %1699 = vmatpush.bf16.msra.mxu0 %v1185
        %1700 = vmatmul.bf16.gmra.mxu0 %v1690
        %v1701 = vpop.f32.mrf.mxu0
        %v1702 = vadd.f32 0.0, %v1701
        %v1703 = vpop.f32.mrf.mxu0
        %v1704 = vadd.f32 0.0, %v1703
        %1705 = vdwg.mxu0
        %v1706 = vpack.c.bf16 %v1704, %v1702
        %s1707 = scalar_lea.vmem %s4, 128
        %v1708 = vld [vmem:[%s1707] sm:$0xf]
        %v1709 = vld [vmem:[%s1707 + $0x4] sm:$0xf]
        %v1710 = vld [vmem:[%s1707 + $0x8] sm:$0xf]
        %v1711 = vld [vmem:[%s1707 + $0xc] sm:$0xf]
        %v1716 = vunpack.c.l.b16 %v1708
        %v1717 = vunpack.c.l.b16 %v1709
        %v1718 = vunpack.c.l.b16 %v1710
        %v1719 = vunpack.c.l.b16 %v1711
        %v1720 = vpack.c.b16 %v1717, %v1716
        %v1721 = vpack.c.b16 %v1719, %v1718
        %v1725 = vsel %vm1262, %v1706, 0
        %1727 = vmatpush.bf16.msra.mxu0 0
        %1728 = vmatpush.bf16.msra.mxu0 0
        %1729 = vmatpush.bf16.msra.mxu0 0
        %1730 = vmatpush.bf16.msra.mxu0 0
        %1731 = vmatpush.bf16.msra.mxu0 0
        %1732 = vmatpush.bf16.msra.mxu0 0
        %1733 = vmatpush.bf16.msra.mxu0 %v1721
        %1734 = vmatpush.bf16.msra.mxu0 %v1720
        %1735 = vmatmul.bf16.gmra.mxu0 %v1725
        %v1736 = vpop.f32.mrf.mxu0
        %v1737 = vadd.f32 0.0, %v1736
        %v1738 = vpop.f32.mrf.mxu0
        %v1739 = vadd.f32 0.0, %v1738
        %1740 = vdwg.mxu0
        %v1741 = vadd.f32 %v1679, %v1737
        %v1742 = vadd.f32 %v1680, %v1739
        %s1743 = scalar_lea.vmem %s3, 72
        %v1744 = vld [vmem:[%s1743] sm:$0xf]
        %v1745 = vld [vmem:[%s1743 + $0x4] sm:$0x1]
        %v1748 = vunpack.c.l.b16 %v1744
        %v1749 = vunpack.c.l.b16 %v1745
        %v1750 = vpack.c.b16 %v1749, %v1748
        %v1752 = vsel %vm1196, %v1750, 0
        %1754 = vmatpush.bf16.msra.mxu0 0
        %1755 = vmatpush.bf16.msra.mxu0 0
        %1756 = vmatpush.bf16.msra.mxu0 0
        %1757 = vmatpush.bf16.msra.mxu0 0
        %1758 = vmatpush.bf16.msra.mxu0 %v1188
        %1759 = vmatpush.bf16.msra.mxu0 %v1187
        %1760 = vmatpush.bf16.msra.mxu0 %v1186
        %1761 = vmatpush.bf16.msra.mxu0 %v1185
        %1762 = vmatmul.bf16.gmra.mxu0 %v1752
        %v1763 = vpop.f32.mrf.mxu0
        %v1764 = vadd.f32 0.0, %v1763
        %v1765 = vpop.f32.mrf.mxu0
        %v1766 = vadd.f32 0.0, %v1765
        %1767 = vdwg.mxu0
        %v1768 = vpack.c.bf16 %v1766, %v1764
        %s1769 = scalar_lea.vmem %s4, 144
        %v1770 = vld [vmem:[%s1769] sm:$0xf]
        %v1771 = vld [vmem:[%s1769 + $0x4] sm:$0xf]
        %v1772 = vld [vmem:[%s1769 + $0x8] sm:$0xf]
        %v1773 = vld [vmem:[%s1769 + $0xc] sm:$0xf]
        %v1778 = vunpack.c.l.b16 %v1770
        %v1779 = vunpack.c.l.b16 %v1771
        %v1780 = vunpack.c.l.b16 %v1772
        %v1781 = vunpack.c.l.b16 %v1773
        %v1782 = vpack.c.b16 %v1779, %v1778
        %v1783 = vpack.c.b16 %v1781, %v1780
        %v1787 = vsel %vm1262, %v1768, 0
        %1789 = vmatpush.bf16.msra.mxu0 0
        %1790 = vmatpush.bf16.msra.mxu0 0
        %1791 = vmatpush.bf16.msra.mxu0 0
        %1792 = vmatpush.bf16.msra.mxu0 0
        %1793 = vmatpush.bf16.msra.mxu0 0
        %1794 = vmatpush.bf16.msra.mxu0 0
        %1795 = vmatpush.bf16.msra.mxu0 %v1783
        %1796 = vmatpush.bf16.msra.mxu0 %v1782
        %1797 = vmatmul.bf16.gmra.mxu0 %v1787
        %v1798 = vpop.f32.mrf.mxu0
        %v1799 = vadd.f32 0.0, %v1798
        %v1800 = vpop.f32.mrf.mxu0
        %v1801 = vadd.f32 0.0, %v1800
        %1802 = vdwg.mxu0
        %v1803 = vadd.f32 %v1741, %v1799
        %v1804 = vadd.f32 %v1742, %v1801
        %s1805 = scalar_lea.vmem %s3, 80
        %v1806 = vld [vmem:[%s1805] sm:$0xf]
        %v1807 = vld [vmem:[%s1805 + $0x4] sm:$0x1]
        %v1810 = vunpack.c.l.b16 %v1806
        %v1811 = vunpack.c.l.b16 %v1807
        %v1812 = vpack.c.b16 %v1811, %v1810
        %v1814 = vsel %vm1196, %v1812, 0
        %1816 = vmatpush.bf16.msra.mxu0 0
        %1817 = vmatpush.bf16.msra.mxu0 0
        %1818 = vmatpush.bf16.msra.mxu0 0
        %1819 = vmatpush.bf16.msra.mxu0 0
        %1820 = vmatpush.bf16.msra.mxu0 %v1188
        %1821 = vmatpush.bf16.msra.mxu0 %v1187
        %1822 = vmatpush.bf16.msra.mxu0 %v1186
        %1823 = vmatpush.bf16.msra.mxu0 %v1185
        %1824 = vmatmul.bf16.gmra.mxu0 %v1814
        %v1825 = vpop.f32.mrf.mxu0
        %v1826 = vadd.f32 0.0, %v1825
        %v1827 = vpop.f32.mrf.mxu0
        %v1828 = vadd.f32 0.0, %v1827
        %1829 = vdwg.mxu0
        %v1830 = vpack.c.bf16 %v1828, %v1826
        %s1831 = scalar_lea.vmem %s4, 160
        %v1832 = vld [vmem:[%s1831] sm:$0xf]
        %v1833 = vld [vmem:[%s1831 + $0x4] sm:$0xf]
        %v1834 = vld [vmem:[%s1831 + $0x8] sm:$0xf]
        %v1835 = vld [vmem:[%s1831 + $0xc] sm:$0xf]
        %v1840 = vunpack.c.l.b16 %v1832
        %v1841 = vunpack.c.l.b16 %v1833
        %v1842 = vunpack.c.l.b16 %v1834
        %v1843 = vunpack.c.l.b16 %v1835
        %v1844 = vpack.c.b16 %v1841, %v1840
        %v1845 = vpack.c.b16 %v1843, %v1842
        %v1849 = vsel %vm1262, %v1830, 0
        %1851 = vmatpush.bf16.msra.mxu0 0
        %1852 = vmatpush.bf16.msra.mxu0 0
        %1853 = vmatpush.bf16.msra.mxu0 0
        %1854 = vmatpush.bf16.msra.mxu0 0
        %1855 = vmatpush.bf16.msra.mxu0 0
        %1856 = vmatpush.bf16.msra.mxu0 0
        %1857 = vmatpush.bf16.msra.mxu0 %v1845
        %1858 = vmatpush.bf16.msra.mxu0 %v1844
        %1859 = vmatmul.bf16.gmra.mxu0 %v1849
        %v1860 = vpop.f32.mrf.mxu0
        %v1861 = vadd.f32 0.0, %v1860
        %v1862 = vpop.f32.mrf.mxu0
        %v1863 = vadd.f32 0.0, %v1862
        %1864 = vdwg.mxu0
        %v1865 = vadd.f32 %v1803, %v1861
        %v1866 = vadd.f32 %v1804, %v1863
        %s1867 = scalar_lea.vmem %s3, 88
        %v1868 = vld [vmem:[%s1867] sm:$0xf]
        %v1869 = vld [vmem:[%s1867 + $0x4] sm:$0x1]
        %v1872 = vunpack.c.l.b16 %v1868
        %v1873 = vunpack.c.l.b16 %v1869
        %v1874 = vpack.c.b16 %v1873, %v1872
        %v1876 = vsel %vm1196, %v1874, 0
        %1878 = vmatpush.bf16.msra.mxu0 0
        %1879 = vmatpush.bf16.msra.mxu0 0
        %1880 = vmatpush.bf16.msra.mxu0 0
        %1881 = vmatpush.bf16.msra.mxu0 0
        %1882 = vmatpush.bf16.msra.mxu0 %v1188
        %1883 = vmatpush.bf16.msra.mxu0 %v1187
        %1884 = vmatpush.bf16.msra.mxu0 %v1186
        %1885 = vmatpush.bf16.msra.mxu0 %v1185
        %1886 = vmatmul.bf16.gmra.mxu0 %v1876
        %v1887 = vpop.f32.mrf.mxu0
        %v1888 = vadd.f32 0.0, %v1887
        %v1889 = vpop.f32.mrf.mxu0
        %v1890 = vadd.f32 0.0, %v1889
        %1891 = vdwg.mxu0
        %v1892 = vpack.c.bf16 %v1890, %v1888
        %s1893 = scalar_lea.vmem %s4, 176
        %v1894 = vld [vmem:[%s1893] sm:$0xf]
        %v1895 = vld [vmem:[%s1893 + $0x4] sm:$0xf]
        %v1896 = vld [vmem:[%s1893 + $0x8] sm:$0xf]
        %v1897 = vld [vmem:[%s1893 + $0xc] sm:$0xf]
        %v1902 = vunpack.c.l.b16 %v1894
        %v1903 = vunpack.c.l.b16 %v1895
        %v1904 = vunpack.c.l.b16 %v1896
        %v1905 = vunpack.c.l.b16 %v1897
        %v1906 = vpack.c.b16 %v1903, %v1902
        %v1907 = vpack.c.b16 %v1905, %v1904
        %v1911 = vsel %vm1262, %v1892, 0
        %1913 = vmatpush.bf16.msra.mxu0 0
        %1914 = vmatpush.bf16.msra.mxu0 0
        %1915 = vmatpush.bf16.msra.mxu0 0
        %1916 = vmatpush.bf16.msra.mxu0 0
        %1917 = vmatpush.bf16.msra.mxu0 0
        %1918 = vmatpush.bf16.msra.mxu0 0
        %1919 = vmatpush.bf16.msra.mxu0 %v1907
        %1920 = vmatpush.bf16.msra.mxu0 %v1906
        %1921 = vmatmul.bf16.gmra.mxu0 %v1911
        %v1922 = vpop.f32.mrf.mxu0
        %v1923 = vadd.f32 0.0, %v1922
        %v1924 = vpop.f32.mrf.mxu0
        %v1925 = vadd.f32 0.0, %v1924
        %1926 = vdwg.mxu0
        %v1927 = vadd.f32 %v1865, %v1923
        %v1928 = vadd.f32 %v1866, %v1925
        %s1929 = scalar_lea.vmem %s3, 96
        %v1930 = vld [vmem:[%s1929] sm:$0xf]
        %v1931 = vld [vmem:[%s1929 + $0x4] sm:$0x1]
        %v1934 = vunpack.c.l.b16 %v1930
        %v1935 = vunpack.c.l.b16 %v1931
        %v1936 = vpack.c.b16 %v1935, %v1934
        %v1938 = vsel %vm1196, %v1936, 0
        %1940 = vmatpush.bf16.msra.mxu0 0
        %1941 = vmatpush.bf16.msra.mxu0 0
        %1942 = vmatpush.bf16.msra.mxu0 0
        %1943 = vmatpush.bf16.msra.mxu0 0
        %1944 = vmatpush.bf16.msra.mxu0 %v1188
        %1945 = vmatpush.bf16.msra.mxu0 %v1187
        %1946 = vmatpush.bf16.msra.mxu0 %v1186
        %1947 = vmatpush.bf16.msra.mxu0 %v1185
        %1948 = vmatmul.bf16.gmra.mxu0 %v1938
        %v1949 = vpop.f32.mrf.mxu0
        %v1950 = vadd.f32 0.0, %v1949
        %v1951 = vpop.f32.mrf.mxu0
        %v1952 = vadd.f32 0.0, %v1951
        %1953 = vdwg.mxu0
        %v1954 = vpack.c.bf16 %v1952, %v1950
        %s1955 = scalar_lea.vmem %s4, 192
        %v1956 = vld [vmem:[%s1955] sm:$0xf]
        %v1957 = vld [vmem:[%s1955 + $0x4] sm:$0xf]
        %v1958 = vld [vmem:[%s1955 + $0x8] sm:$0xf]
        %v1959 = vld [vmem:[%s1955 + $0xc] sm:$0xf]
        %v1964 = vunpack.c.l.b16 %v1956
        %v1965 = vunpack.c.l.b16 %v1957
        %v1966 = vunpack.c.l.b16 %v1958
        %v1967 = vunpack.c.l.b16 %v1959
        %v1968 = vpack.c.b16 %v1965, %v1964
        %v1969 = vpack.c.b16 %v1967, %v1966
        %v1973 = vsel %vm1262, %v1954, 0
        %1975 = vmatpush.bf16.msra.mxu0 0
        %1976 = vmatpush.bf16.msra.mxu0 0
        %1977 = vmatpush.bf16.msra.mxu0 0
        %1978 = vmatpush.bf16.msra.mxu0 0
        %1979 = vmatpush.bf16.msra.mxu0 0
        %1980 = vmatpush.bf16.msra.mxu0 0
        %1981 = vmatpush.bf16.msra.mxu0 %v1969
        %1982 = vmatpush.bf16.msra.mxu0 %v1968
        %1983 = vmatmul.bf16.gmra.mxu0 %v1973
        %v1984 = vpop.f32.mrf.mxu0
        %v1985 = vadd.f32 0.0, %v1984
        %v1986 = vpop.f32.mrf.mxu0
        %v1987 = vadd.f32 0.0, %v1986
        %1988 = vdwg.mxu0
        %v1989 = vadd.f32 %v1927, %v1985
        %v1990 = vadd.f32 %v1928, %v1987
        %s1991 = scalar_lea.vmem %s3, 104
        %v1992 = vld [vmem:[%s1991] sm:$0xf]
        %v1993 = vld [vmem:[%s1991 + $0x4] sm:$0x1]
        %v1996 = vunpack.c.l.b16 %v1992
        %v1997 = vunpack.c.l.b16 %v1993
        %v1998 = vpack.c.b16 %v1997, %v1996
        %v2000 = vsel %vm1196, %v1998, 0
        %2002 = vmatpush.bf16.msra.mxu0 0
        %2003 = vmatpush.bf16.msra.mxu0 0
        %2004 = vmatpush.bf16.msra.mxu0 0
        %2005 = vmatpush.bf16.msra.mxu0 0
        %2006 = vmatpush.bf16.msra.mxu0 %v1188
        %2007 = vmatpush.bf16.msra.mxu0 %v1187
        %2008 = vmatpush.bf16.msra.mxu0 %v1186
        %2009 = vmatpush.bf16.msra.mxu0 %v1185
        %2010 = vmatmul.bf16.gmra.mxu0 %v2000
        %v2011 = vpop.f32.mrf.mxu0
        %v2012 = vadd.f32 0.0, %v2011
        %v2013 = vpop.f32.mrf.mxu0
        %v2014 = vadd.f32 0.0, %v2013
        %2015 = vdwg.mxu0
        %v2016 = vpack.c.bf16 %v2014, %v2012
        %s2017 = scalar_lea.vmem %s4, 208
        %v2018 = vld [vmem:[%s2017] sm:$0xf]
        %v2019 = vld [vmem:[%s2017 + $0x4] sm:$0xf]
        %v2020 = vld [vmem:[%s2017 + $0x8] sm:$0xf]
        %v2021 = vld [vmem:[%s2017 + $0xc] sm:$0xf]
        %v2026 = vunpack.c.l.b16 %v2018
        %v2027 = vunpack.c.l.b16 %v2019
        %v2028 = vunpack.c.l.b16 %v2020
        %v2029 = vunpack.c.l.b16 %v2021
        %v2030 = vpack.c.b16 %v2027, %v2026
        %v2031 = vpack.c.b16 %v2029, %v2028
        %v2035 = vsel %vm1262, %v2016, 0
        %2037 = vmatpush.bf16.msra.mxu0 0
        %2038 = vmatpush.bf16.msra.mxu0 0
        %2039 = vmatpush.bf16.msra.mxu0 0
        %2040 = vmatpush.bf16.msra.mxu0 0
        %2041 = vmatpush.bf16.msra.mxu0 0
        %2042 = vmatpush.bf16.msra.mxu0 0
        %2043 = vmatpush.bf16.msra.mxu0 %v2031
        %2044 = vmatpush.bf16.msra.mxu0 %v2030
        %2045 = vmatmul.bf16.gmra.mxu0 %v2035
        %v2046 = vpop.f32.mrf.mxu0
        %v2047 = vadd.f32 0.0, %v2046
        %v2048 = vpop.f32.mrf.mxu0
        %v2049 = vadd.f32 0.0, %v2048
        %2050 = vdwg.mxu0
        %v2051 = vadd.f32 %v1989, %v2047
        %v2052 = vadd.f32 %v1990, %v2049
        %s2053 = scalar_lea.vmem %s3, 112
        %v2054 = vld [vmem:[%s2053] sm:$0xf]
        %v2055 = vld [vmem:[%s2053 + $0x4] sm:$0x1]
        %v2058 = vunpack.c.l.b16 %v2054
        %v2059 = vunpack.c.l.b16 %v2055
        %v2060 = vpack.c.b16 %v2059, %v2058
        %v2062 = vsel %vm1196, %v2060, 0
        %2064 = vmatpush.bf16.msra.mxu0 0
        %2065 = vmatpush.bf16.msra.mxu0 0
        %2066 = vmatpush.bf16.msra.mxu0 0
        %2067 = vmatpush.bf16.msra.mxu0 0
        %2068 = vmatpush.bf16.msra.mxu0 %v1188
        %2069 = vmatpush.bf16.msra.mxu0 %v1187
        %2070 = vmatpush.bf16.msra.mxu0 %v1186
        %2071 = vmatpush.bf16.msra.mxu0 %v1185
        %2072 = vmatmul.bf16.gmra.mxu0 %v2062
        %v2073 = vpop.f32.mrf.mxu0
        %v2074 = vadd.f32 0.0, %v2073
        %v2075 = vpop.f32.mrf.mxu0
        %v2076 = vadd.f32 0.0, %v2075
        %2077 = vdwg.mxu0
        %v2078 = vpack.c.bf16 %v2076, %v2074
        %s2079 = scalar_lea.vmem %s4, 224
        %v2080 = vld [vmem:[%s2079] sm:$0xf]
        %v2081 = vld [vmem:[%s2079 + $0x4] sm:$0xf]
        %v2082 = vld [vmem:[%s2079 + $0x8] sm:$0xf]
        %v2083 = vld [vmem:[%s2079 + $0xc] sm:$0xf]
        %v2088 = vunpack.c.l.b16 %v2080
        %v2089 = vunpack.c.l.b16 %v2081
        %v2090 = vunpack.c.l.b16 %v2082
        %v2091 = vunpack.c.l.b16 %v2083
        %v2092 = vpack.c.b16 %v2089, %v2088
        %v2093 = vpack.c.b16 %v2091, %v2090
        %v2097 = vsel %vm1262, %v2078, 0
        %2099 = vmatpush.bf16.msra.mxu0 0
        %2100 = vmatpush.bf16.msra.mxu0 0
        %2101 = vmatpush.bf16.msra.mxu0 0
        %2102 = vmatpush.bf16.msra.mxu0 0
        %2103 = vmatpush.bf16.msra.mxu0 0
        %2104 = vmatpush.bf16.msra.mxu0 0
        %2105 = vmatpush.bf16.msra.mxu0 %v2093
        %2106 = vmatpush.bf16.msra.mxu0 %v2092
        %2107 = vmatmul.bf16.gmra.mxu0 %v2097
        %v2108 = vpop.f32.mrf.mxu0
        %v2109 = vadd.f32 0.0, %v2108
        %v2110 = vpop.f32.mrf.mxu0
        %v2111 = vadd.f32 0.0, %v2110
        %2112 = vdwg.mxu0
        %v2113 = vadd.f32 %v2051, %v2109
        %v2114 = vadd.f32 %v2052, %v2111
        %s2115 = scalar_lea.vmem %s3, 120
        %v2116 = vld [vmem:[%s2115] sm:$0xf]
        %v2117 = vld [vmem:[%s2115 + $0x4] sm:$0x1]
        %v2120 = vunpack.c.l.b16 %v2116
        %v2121 = vunpack.c.l.b16 %v2117
        %v2122 = vpack.c.b16 %v2121, %v2120
        %v2124 = vsel %vm1196, %v2122, 0
        %2126 = vmatpush.bf16.msra.mxu0 0
        %2127 = vmatpush.bf16.msra.mxu0 0
        %2128 = vmatpush.bf16.msra.mxu0 0
        %2129 = vmatpush.bf16.msra.mxu0 0
        %2130 = vmatpush.bf16.msra.mxu0 %v1188
        %2131 = vmatpush.bf16.msra.mxu0 %v1187
        %2132 = vmatpush.bf16.msra.mxu0 %v1186
        %2133 = vmatpush.bf16.msra.mxu0 %v1185
        %2134 = vmatmul.bf16.gmra.mxu0 %v2124
        %v2135 = vpop.f32.mrf.mxu0
        %v2136 = vadd.f32 0.0, %v2135
        %v2137 = vpop.f32.mrf.mxu0
        %v2138 = vadd.f32 0.0, %v2137
        %2139 = vdwg.mxu0
        %v2140 = vpack.c.bf16 %v2138, %v2136
        %s2141 = scalar_lea.vmem %s4, 240
        %v2142 = vld [vmem:[%s2141] sm:$0xf]
        %v2143 = vld [vmem:[%s2141 + $0x4] sm:$0xf]
        %v2144 = vld [vmem:[%s2141 + $0x8] sm:$0xf]
        %v2145 = vld [vmem:[%s2141 + $0xc] sm:$0xf]
        %v2150 = vunpack.c.l.b16 %v2142
        %v2151 = vunpack.c.l.b16 %v2143
        %v2152 = vunpack.c.l.b16 %v2144
        %v2153 = vunpack.c.l.b16 %v2145
        %v2154 = vpack.c.b16 %v2151, %v2150
        %v2155 = vpack.c.b16 %v2153, %v2152
        %v2159 = vsel %vm1262, %v2140, 0
        %2161 = vmatpush.bf16.msra.mxu0 0
        %2162 = vmatpush.bf16.msra.mxu0 0
        %2163 = vmatpush.bf16.msra.mxu0 0
        %2164 = vmatpush.bf16.msra.mxu0 0
        %2165 = vmatpush.bf16.msra.mxu0 0
        %2166 = vmatpush.bf16.msra.mxu0 0
        %2167 = vmatpush.bf16.msra.mxu0 %v2155
        %2168 = vmatpush.bf16.msra.mxu0 %v2154
        %2169 = vmatmul.bf16.gmra.mxu0 %v2159
        %v2170 = vpop.f32.mrf.mxu0
        %v2171 = vadd.f32 0.0, %v2170
        %v2172 = vpop.f32.mrf.mxu0
        %v2173 = vadd.f32 0.0, %v2172
        %2174 = vdwg.mxu0
        %v2175 = vadd.f32 %v2113, %v2171
        %v2176 = vadd.f32 %v2114, %v2173
        %v2177 = vld [vmem:[%s5] sm:$0x1]
        %v2179 = vperm.slane %v2177, 0
        %v2181 = vadd.f32 %v2175, %v2179
        %v2182 = vadd.f32 %v2176, %v2179
        %v2183 = vmul.f32 %v2181, 0.5
        %v2184 = vmul.f32 %v2182, 0.5
        %v2185 = vtanh.pop %v2183
        %v2186 = vtanh.pop %v2184
        %v2187 = vmul.f32 %v2185, 0.5
        %v2188 = vmul.f32 %v2186, 0.5
        %v2189 = vadd.f32 %v2187, 0.5
        %v2190 = vadd.f32 %v2188, 0.5
        %v2191 = vmul.f32 %v2181, %v2189
        %v2192 = vmul.f32 %v2182, %v2190
        %v2193 = vpack.c.bf16 %v2192, %v2191
        %v2194 = vld [vmem:[%s6] sm:$0x1]
        %vm2195 = vcmask 72704
        %v2197 = vsel %vm2195, %v2194, 0
        %vm2199 = vcmask 1043456
        %vm2200 = vcmask 1044480
        %v2201 = vsel %vm2199, 4294967295, 65535
        %v2202 = vsel %vm2200, %v2201, 0
        %v2204 = vand.u32 %v2193, %v2202
        %2206 = vmatpush.bf16.msra.mxu0 0
        %2207 = vmatpush.bf16.msra.mxu0 0
        %2208 = vmatpush.bf16.msra.mxu0 0
        %2209 = vmatpush.bf16.msra.mxu0 0
        %2210 = vmatpush.bf16.msra.mxu0 0
        %2211 = vmatpush.bf16.msra.mxu0 0
        %2212 = vmatpush.bf16.msra.mxu0 0
        %2213 = vmatpush.bf16.msra.mxu0 %v2204
        %2214 = vmatmul.bf16.gmra.mxu0 %v2197
        %v2215 = vpop.f32.mrf.mxu0
        %v2216 = vadd.f32 0.0, %v2215
        %v2217 = vpop.f32.mrf.mxu0
        %2218 = vdwg.mxu0
        %v2219 = vpack.c.bf16 %v2216, %v2216
        %v2220 = vld [vmem:[%s7] sm:$0xf]
        %v2221 = vld [vmem:[%s7 + $0x4] sm:$0xf]
        %v2222 = vld [vmem:[%s7 + $0x8] sm:$0xf]
        %v2223 = vld [vmem:[%s7 + $0xc] sm:$0xf]
        %v2224 = vld [vmem:[%s7 + $0x10] sm:$0xf]
        %v2225 = vld [vmem:[%s7 + $0x14] sm:$0xf]
        %v2226 = vld [vmem:[%s7 + $0x18] sm:$0xf]
        %v2227 = vld [vmem:[%s7 + $0x1c] sm:$0xf]
        %s2228 = scalar_lea.vmem %s6, 1
        %v2229 = vld [vmem:[%s2228] sm:$0x1]
        %v2231 = vsel %vm2195, %v2229, 0
        %2233 = vmatpush.bf16.msra.mxu0 0
        %2234 = vmatpush.bf16.msra.mxu0 0
        %2235 = vmatpush.bf16.msra.mxu0 0
        %2236 = vmatpush.bf16.msra.mxu0 0
        %2237 = vmatpush.bf16.msra.mxu0 0
        %2238 = vmatpush.bf16.msra.mxu0 0
        %2239 = vmatpush.bf16.msra.mxu0 0
        %2240 = vmatpush.bf16.msra.mxu0 %v2204
        %2241 = vmatmul.bf16.gmra.mxu0 %v2231
        %v2242 = vpop.f32.mrf.mxu0
        %v2243 = vadd.f32 0.0, %v2242
        %v2244 = vpop.f32.mrf.mxu0
        %2245 = vdwg.mxu0
        %v2246 = vpack.c.bf16 %v2243, %v2243
        %s2247 = scalar_lea.vmem %s7, 32
        %v2248 = vld [vmem:[%s2247] sm:$0xf]
        %v2249 = vld [vmem:[%s2247 + $0x4] sm:$0xf]
        %v2250 = vld [vmem:[%s2247 + $0x8] sm:$0xf]
        %v2251 = vld [vmem:[%s2247 + $0xc] sm:$0xf]
        %v2252 = vld [vmem:[%s2247 + $0x10] sm:$0xf]
        %v2253 = vld [vmem:[%s2247 + $0x14] sm:$0xf]
        %v2254 = vld [vmem:[%s2247 + $0x18] sm:$0xf]
        %v2255 = vld [vmem:[%s2247 + $0x1c] sm:$0xf]
        %v2264 = vunpack.c.l.b16 %v2248
        %v2265 = vunpack.c.l.b16 %v2249
        %v2266 = vunpack.c.l.b16 %v2250
        %v2267 = vunpack.c.l.b16 %v2251
        %v2268 = vunpack.c.l.b16 %v2252
        %v2269 = vunpack.c.l.b16 %v2253
        %v2270 = vunpack.c.l.b16 %v2254
        %v2271 = vunpack.c.l.b16 %v2255
        %v2272 = vpack.c.b16 %v2265, %v2264
        %v2273 = vpack.c.b16 %v2267, %v2266
        %v2274 = vpack.c.b16 %v2269, %v2268
        %v2275 = vpack.c.b16 %v2271, %v2270
        %v2281 = vsel %vm1196, %v2246, 0
        %2283 = vmatpush.bf16.msra.mxu0 0
        %2284 = vmatpush.bf16.msra.mxu0 0
        %2285 = vmatpush.bf16.msra.mxu0 0
        %2286 = vmatpush.bf16.msra.mxu0 0
        %2287 = vmatpush.bf16.msra.mxu0 %v2275
        %2288 = vmatpush.bf16.msra.mxu0 %v2274
        %2289 = vmatpush.bf16.msra.mxu0 %v2273
        %2290 = vmatpush.bf16.msra.mxu0 %v2272
        %2291 = vmatmul.bf16.gmra.mxu0 %v2281
        %v2292 = vpop.f32.mrf.mxu0
        %v2293 = vadd.f32 0.0, %v2292
        %v2294 = vpop.f32.mrf.mxu0
        %2295 = vdwg.mxu0
        %v2304 = vunpack.c.l.b16 %v2220
        %v2305 = vunpack.c.l.b16 %v2221
        %v2306 = vunpack.c.l.b16 %v2222
        %v2307 = vunpack.c.l.b16 %v2223
        %v2308 = vunpack.c.l.b16 %v2224
        %v2309 = vunpack.c.l.b16 %v2225
        %v2310 = vunpack.c.l.b16 %v2226
        %v2311 = vunpack.c.l.b16 %v2227
        %v2312 = vpack.c.b16 %v2305, %v2304
        %v2313 = vpack.c.b16 %v2307, %v2306
        %v2314 = vpack.c.b16 %v2309, %v2308
        %v2315 = vpack.c.b16 %v2311, %v2310
        %v2321 = vsel %vm1196, %v2219, 0
        %2323 = vmatpush.bf16.msra.mxu0 0
        %2324 = vmatpush.bf16.msra.mxu0 0
        %2325 = vmatpush.bf16.msra.mxu0 0
        %2326 = vmatpush.bf16.msra.mxu0 0
        %2327 = vmatpush.bf16.msra.mxu0 %v2315
        %2328 = vmatpush.bf16.msra.mxu0 %v2314
        %2329 = vmatpush.bf16.msra.mxu0 %v2313
        %2330 = vmatpush.bf16.msra.mxu0 %v2312
        %2331 = vmatmul.bf16.gmra.mxu0 %v2321
        %v2332 = vpop.f32.mrf.mxu0
        %v2333 = vadd.f32 %v2293, %v2332
        %v2334 = vpop.f32.mrf.mxu0
        %2335 = vdwg.mxu0
        %s2336 = scalar_lea.vmem %s6, 2
        %v2337 = vld [vmem:[%s2336] sm:$0x1]
        %v2339 = vsel %vm2195, %v2337, 0
        %2341 = vmatpush.bf16.msra.mxu0 0
        %2342 = vmatpush.bf16.msra.mxu0 0
        %2343 = vmatpush.bf16.msra.mxu0 0
        %2344 = vmatpush.bf16.msra.mxu0 0
        %2345 = vmatpush.bf16.msra.mxu0 0
        %2346 = vmatpush.bf16.msra.mxu0 0
        %2347 = vmatpush.bf16.msra.mxu0 0
        %2348 = vmatpush.bf16.msra.mxu0 %v2204
        %2349 = vmatmul.bf16.gmra.mxu0 %v2339
        %v2350 = vpop.f32.mrf.mxu0
        %v2351 = vadd.f32 0.0, %v2350
        %v2352 = vpop.f32.mrf.mxu0
        %2353 = vdwg.mxu0
        %v2354 = vpack.c.bf16 %v2351, %v2351
        %s2355 = scalar_lea.vmem %s7, 64
        %v2356 = vld [vmem:[%s2355] sm:$0xf]
        %v2357 = vld [vmem:[%s2355 + $0x4] sm:$0xf]
        %v2358 = vld [vmem:[%s2355 + $0x8] sm:$0xf]
        %v2359 = vld [vmem:[%s2355 + $0xc] sm:$0xf]
        %v2360 = vld [vmem:[%s2355 + $0x10] sm:$0xf]
        %v2361 = vld [vmem:[%s2355 + $0x14] sm:$0xf]
        %v2362 = vld [vmem:[%s2355 + $0x18] sm:$0xf]
        %v2363 = vld [vmem:[%s2355 + $0x1c] sm:$0xf]
        %v2372 = vunpack.c.l.b16 %v2356
        %v2373 = vunpack.c.l.b16 %v2357
        %v2374 = vunpack.c.l.b16 %v2358
        %v2375 = vunpack.c.l.b16 %v2359
        %v2376 = vunpack.c.l.b16 %v2360
        %v2377 = vunpack.c.l.b16 %v2361
        %v2378 = vunpack.c.l.b16 %v2362
        %v2379 = vunpack.c.l.b16 %v2363
        %v2380 = vpack.c.b16 %v2373, %v2372
        %v2381 = vpack.c.b16 %v2375, %v2374
        %v2382 = vpack.c.b16 %v2377, %v2376
        %v2383 = vpack.c.b16 %v2379, %v2378
        %v2389 = vsel %vm1196, %v2354, 0
        %2391 = vmatpush.bf16.msra.mxu0 0
        %2392 = vmatpush.bf16.msra.mxu0 0
        %2393 = vmatpush.bf16.msra.mxu0 0
        %2394 = vmatpush.bf16.msra.mxu0 0
        %2395 = vmatpush.bf16.msra.mxu0 %v2383
        %2396 = vmatpush.bf16.msra.mxu0 %v2382
        %2397 = vmatpush.bf16.msra.mxu0 %v2381
        %2398 = vmatpush.bf16.msra.mxu0 %v2380
        %2399 = vmatmul.bf16.gmra.mxu0 %v2389
        %v2400 = vpop.f32.mrf.mxu0
        %v2401 = vadd.f32 0.0, %v2400
        %v2402 = vpop.f32.mrf.mxu0
        %2403 = vdwg.mxu0
        %v2404 = vadd.f32 %v2333, %v2401
        %s2405 = scalar_lea.vmem %s6, 3
        %v2406 = vld [vmem:[%s2405] sm:$0x1]
        %v2408 = vsel %vm2195, %v2406, 0
        %2410 = vmatpush.bf16.msra.mxu0 0
        %2411 = vmatpush.bf16.msra.mxu0 0
        %2412 = vmatpush.bf16.msra.mxu0 0
        %2413 = vmatpush.bf16.msra.mxu0 0
        %2414 = vmatpush.bf16.msra.mxu0 0
        %2415 = vmatpush.bf16.msra.mxu0 0
        %2416 = vmatpush.bf16.msra.mxu0 0
        %2417 = vmatpush.bf16.msra.mxu0 %v2204
        %2418 = vmatmul.bf16.gmra.mxu0 %v2408
        %v2419 = vpop.f32.mrf.mxu0
        %v2420 = vadd.f32 0.0, %v2419
        %v2421 = vpop.f32.mrf.mxu0
        %2422 = vdwg.mxu0
        %v2423 = vpack.c.bf16 %v2420, %v2420
        %s2424 = scalar_lea.vmem %s7, 96
        %v2425 = vld [vmem:[%s2424] sm:$0xf]
        %v2426 = vld [vmem:[%s2424 + $0x4] sm:$0xf]
        %v2427 = vld [vmem:[%s2424 + $0x8] sm:$0xf]
        %v2428 = vld [vmem:[%s2424 + $0xc] sm:$0xf]
        %v2429 = vld [vmem:[%s2424 + $0x10] sm:$0xf]
        %v2430 = vld [vmem:[%s2424 + $0x14] sm:$0xf]
        %v2431 = vld [vmem:[%s2424 + $0x18] sm:$0xf]
        %v2432 = vld [vmem:[%s2424 + $0x1c] sm:$0xf]
        %v2441 = vunpack.c.l.b16 %v2425
        %v2442 = vunpack.c.l.b16 %v2426
        %v2443 = vunpack.c.l.b16 %v2427
        %v2444 = vunpack.c.l.b16 %v2428
        %v2445 = vunpack.c.l.b16 %v2429
        %v2446 = vunpack.c.l.b16 %v2430
        %v2447 = vunpack.c.l.b16 %v2431
        %v2448 = vunpack.c.l.b16 %v2432
        %v2449 = vpack.c.b16 %v2442, %v2441
        %v2450 = vpack.c.b16 %v2444, %v2443
        %v2451 = vpack.c.b16 %v2446, %v2445
        %v2452 = vpack.c.b16 %v2448, %v2447
        %v2458 = vsel %vm1196, %v2423, 0
        %2460 = vmatpush.bf16.msra.mxu0 0
        %2461 = vmatpush.bf16.msra.mxu0 0
        %2462 = vmatpush.bf16.msra.mxu0 0
        %2463 = vmatpush.bf16.msra.mxu0 0
        %2464 = vmatpush.bf16.msra.mxu0 %v2452
        %2465 = vmatpush.bf16.msra.mxu0 %v2451
        %2466 = vmatpush.bf16.msra.mxu0 %v2450
        %2467 = vmatpush.bf16.msra.mxu0 %v2449
        %2468 = vmatmul.bf16.gmra.mxu0 %v2458
        %v2469 = vpop.f32.mrf.mxu0
        %v2470 = vadd.f32 0.0, %v2469
        %v2471 = vpop.f32.mrf.mxu0
        %2472 = vdwg.mxu0
        %v2473 = vadd.f32 %v2404, %v2470
        %s2474 = scalar_lea.vmem %s6, 4
        %v2475 = vld [vmem:[%s2474] sm:$0x1]
        %v2477 = vsel %vm2195, %v2475, 0
        %2479 = vmatpush.bf16.msra.mxu0 0
        %2480 = vmatpush.bf16.msra.mxu0 0
        %2481 = vmatpush.bf16.msra.mxu0 0
        %2482 = vmatpush.bf16.msra.mxu0 0
        %2483 = vmatpush.bf16.msra.mxu0 0
        %2484 = vmatpush.bf16.msra.mxu0 0
        %2485 = vmatpush.bf16.msra.mxu0 0
        %2486 = vmatpush.bf16.msra.mxu0 %v2204
        %2487 = vmatmul.bf16.gmra.mxu0 %v2477
        %v2488 = vpop.f32.mrf.mxu0
        %v2489 = vadd.f32 0.0, %v2488
        %v2490 = vpop.f32.mrf.mxu0
        %2491 = vdwg.mxu0
        %v2492 = vpack.c.bf16 %v2489, %v2489
        %s2493 = scalar_lea.vmem %s7, 128
        %v2494 = vld [vmem:[%s2493] sm:$0xf]
        %v2495 = vld [vmem:[%s2493 + $0x4] sm:$0xf]
        %v2496 = vld [vmem:[%s2493 + $0x8] sm:$0xf]
        %v2497 = vld [vmem:[%s2493 + $0xc] sm:$0xf]
        %v2498 = vld [vmem:[%s2493 + $0x10] sm:$0xf]
        %v2499 = vld [vmem:[%s2493 + $0x14] sm:$0xf]
        %v2500 = vld [vmem:[%s2493 + $0x18] sm:$0xf]
        %v2501 = vld [vmem:[%s2493 + $0x1c] sm:$0xf]
        %v2510 = vunpack.c.l.b16 %v2494
        %v2511 = vunpack.c.l.b16 %v2495
        %v2512 = vunpack.c.l.b16 %v2496
        %v2513 = vunpack.c.l.b16 %v2497
        %v2514 = vunpack.c.l.b16 %v2498
        %v2515 = vunpack.c.l.b16 %v2499
        %v2516 = vunpack.c.l.b16 %v2500
        %v2517 = vunpack.c.l.b16 %v2501
        %v2518 = vpack.c.b16 %v2511, %v2510
        %v2519 = vpack.c.b16 %v2513, %v2512
        %v2520 = vpack.c.b16 %v2515, %v2514
        %v2521 = vpack.c.b16 %v2517, %v2516
        %v2527 = vsel %vm1196, %v2492, 0
        %2529 = vmatpush.bf16.msra.mxu0 0
        %2530 = vmatpush.bf16.msra.mxu0 0
        %2531 = vmatpush.bf16.msra.mxu0 0
        %2532 = vmatpush.bf16.msra.mxu0 0
        %2533 = vmatpush.bf16.msra.mxu0 %v2521
        %2534 = vmatpush.bf16.msra.mxu0 %v2520
        %2535 = vmatpush.bf16.msra.mxu0 %v2519
        %2536 = vmatpush.bf16.msra.mxu0 %v2518
        %2537 = vmatmul.bf16.gmra.mxu0 %v2527
        %v2538 = vpop.f32.mrf.mxu0
        %v2539 = vadd.f32 0.0, %v2538
        %v2540 = vpop.f32.mrf.mxu0
        %2541 = vdwg.mxu0
        %v2542 = vadd.f32 %v2473, %v2539
        %s2543 = scalar_lea.vmem %s6, 5
        %v2544 = vld [vmem:[%s2543] sm:$0x1]
        %v2546 = vsel %vm2195, %v2544, 0
        %2548 = vmatpush.bf16.msra.mxu0 0
        %2549 = vmatpush.bf16.msra.mxu0 0
        %2550 = vmatpush.bf16.msra.mxu0 0
        %2551 = vmatpush.bf16.msra.mxu0 0
        %2552 = vmatpush.bf16.msra.mxu0 0
        %2553 = vmatpush.bf16.msra.mxu0 0
        %2554 = vmatpush.bf16.msra.mxu0 0
        %2555 = vmatpush.bf16.msra.mxu0 %v2204
        %2556 = vmatmul.bf16.gmra.mxu0 %v2546
        %v2557 = vpop.f32.mrf.mxu0
        %v2558 = vadd.f32 0.0, %v2557
        %v2559 = vpop.f32.mrf.mxu0
        %2560 = vdwg.mxu0
        %v2561 = vpack.c.bf16 %v2558, %v2558
        %s2562 = scalar_lea.vmem %s7, 160
        %v2563 = vld [vmem:[%s2562] sm:$0xf]
        %v2564 = vld [vmem:[%s2562 + $0x4] sm:$0xf]
        %v2565 = vld [vmem:[%s2562 + $0x8] sm:$0xf]
        %v2566 = vld [vmem:[%s2562 + $0xc] sm:$0xf]
        %v2567 = vld [vmem:[%s2562 + $0x10] sm:$0xf]
        %v2568 = vld [vmem:[%s2562 + $0x14] sm:$0xf]
        %v2569 = vld [vmem:[%s2562 + $0x18] sm:$0xf]
        %v2570 = vld [vmem:[%s2562 + $0x1c] sm:$0xf]
        %v2579 = vunpack.c.l.b16 %v2563
        %v2580 = vunpack.c.l.b16 %v2564
        %v2581 = vunpack.c.l.b16 %v2565
        %v2582 = vunpack.c.l.b16 %v2566
        %v2583 = vunpack.c.l.b16 %v2567
        %v2584 = vunpack.c.l.b16 %v2568
        %v2585 = vunpack.c.l.b16 %v2569
        %v2586 = vunpack.c.l.b16 %v2570
        %v2587 = vpack.c.b16 %v2580, %v2579
        %v2588 = vpack.c.b16 %v2582, %v2581
        %v2589 = vpack.c.b16 %v2584, %v2583
        %v2590 = vpack.c.b16 %v2586, %v2585
        %v2596 = vsel %vm1196, %v2561, 0
        %2598 = vmatpush.bf16.msra.mxu0 0
        %2599 = vmatpush.bf16.msra.mxu0 0
        %2600 = vmatpush.bf16.msra.mxu0 0
        %2601 = vmatpush.bf16.msra.mxu0 0
        %2602 = vmatpush.bf16.msra.mxu0 %v2590
        %2603 = vmatpush.bf16.msra.mxu0 %v2589
        %2604 = vmatpush.bf16.msra.mxu0 %v2588
        %2605 = vmatpush.bf16.msra.mxu0 %v2587
        %2606 = vmatmul.bf16.gmra.mxu0 %v2596
        %v2607 = vpop.f32.mrf.mxu0
        %v2608 = vadd.f32 0.0, %v2607
        %v2609 = vpop.f32.mrf.mxu0
        %2610 = vdwg.mxu0
        %v2611 = vadd.f32 %v2542, %v2608
        %s2612 = scalar_lea.vmem %s6, 6
        %v2613 = vld [vmem:[%s2612] sm:$0x1]
        %v2615 = vsel %vm2195, %v2613, 0
        %2617 = vmatpush.bf16.msra.mxu0 0
        %2618 = vmatpush.bf16.msra.mxu0 0
        %2619 = vmatpush.bf16.msra.mxu0 0
        %2620 = vmatpush.bf16.msra.mxu0 0
        %2621 = vmatpush.bf16.msra.mxu0 0
        %2622 = vmatpush.bf16.msra.mxu0 0
        %2623 = vmatpush.bf16.msra.mxu0 0
        %2624 = vmatpush.bf16.msra.mxu0 %v2204
        %2625 = vmatmul.bf16.gmra.mxu0 %v2615
        %v2626 = vpop.f32.mrf.mxu0
        %v2627 = vadd.f32 0.0, %v2626
        %v2628 = vpop.f32.mrf.mxu0
        %2629 = vdwg.mxu0
        %v2630 = vpack.c.bf16 %v2627, %v2627
        %s2631 = scalar_lea.vmem %s7, 192
        %v2632 = vld [vmem:[%s2631] sm:$0xf]
        %v2633 = vld [vmem:[%s2631 + $0x4] sm:$0xf]
        %v2634 = vld [vmem:[%s2631 + $0x8] sm:$0xf]
        %v2635 = vld [vmem:[%s2631 + $0xc] sm:$0xf]
        %v2636 = vld [vmem:[%s2631 + $0x10] sm:$0xf]
        %v2637 = vld [vmem:[%s2631 + $0x14] sm:$0xf]
        %v2638 = vld [vmem:[%s2631 + $0x18] sm:$0xf]
        %v2639 = vld [vmem:[%s2631 + $0x1c] sm:$0xf]
        %v2648 = vunpack.c.l.b16 %v2632
        %v2649 = vunpack.c.l.b16 %v2633
        %v2650 = vunpack.c.l.b16 %v2634
        %v2651 = vunpack.c.l.b16 %v2635
        %v2652 = vunpack.c.l.b16 %v2636
        %v2653 = vunpack.c.l.b16 %v2637
        %v2654 = vunpack.c.l.b16 %v2638
        %v2655 = vunpack.c.l.b16 %v2639
        %v2656 = vpack.c.b16 %v2649, %v2648
        %v2657 = vpack.c.b16 %v2651, %v2650
        %v2658 = vpack.c.b16 %v2653, %v2652
        %v2659 = vpack.c.b16 %v2655, %v2654
        %v2665 = vsel %vm1196, %v2630, 0
        %2667 = vmatpush.bf16.msra.mxu0 0
        %2668 = vmatpush.bf16.msra.mxu0 0
        %2669 = vmatpush.bf16.msra.mxu0 0
        %2670 = vmatpush.bf16.msra.mxu0 0
        %2671 = vmatpush.bf16.msra.mxu0 %v2659
        %2672 = vmatpush.bf16.msra.mxu0 %v2658
        %2673 = vmatpush.bf16.msra.mxu0 %v2657
        %2674 = vmatpush.bf16.msra.mxu0 %v2656
        %2675 = vmatmul.bf16.gmra.mxu0 %v2665
        %v2676 = vpop.f32.mrf.mxu0
        %v2677 = vadd.f32 0.0, %v2676
        %v2678 = vpop.f32.mrf.mxu0
        %2679 = vdwg.mxu0
        %v2680 = vadd.f32 %v2611, %v2677
        %s2681 = scalar_lea.vmem %s6, 7
        %v2682 = vld [vmem:[%s2681] sm:$0x1]
        %v2684 = vsel %vm2195, %v2682, 0
        %2686 = vmatpush.bf16.msra.mxu0 0
        %2687 = vmatpush.bf16.msra.mxu0 0
        %2688 = vmatpush.bf16.msra.mxu0 0
        %2689 = vmatpush.bf16.msra.mxu0 0
        %2690 = vmatpush.bf16.msra.mxu0 0
        %2691 = vmatpush.bf16.msra.mxu0 0
        %2692 = vmatpush.bf16.msra.mxu0 0
        %2693 = vmatpush.bf16.msra.mxu0 %v2204
        %2694 = vmatmul.bf16.gmra.mxu0 %v2684
        %v2695 = vpop.f32.mrf.mxu0
        %v2696 = vadd.f32 0.0, %v2695
        %v2697 = vpop.f32.mrf.mxu0
        %2698 = vdwg.mxu0
        %v2699 = vpack.c.bf16 %v2696, %v2696
        %s2700 = scalar_lea.vmem %s7, 224
        %v2701 = vld [vmem:[%s2700] sm:$0xf]
        %v2702 = vld [vmem:[%s2700 + $0x4] sm:$0xf]
        %v2703 = vld [vmem:[%s2700 + $0x8] sm:$0xf]
        %v2704 = vld [vmem:[%s2700 + $0xc] sm:$0xf]
        %v2705 = vld [vmem:[%s2700 + $0x10] sm:$0xf]
        %v2706 = vld [vmem:[%s2700 + $0x14] sm:$0xf]
        %v2707 = vld [vmem:[%s2700 + $0x18] sm:$0xf]
        %v2708 = vld [vmem:[%s2700 + $0x1c] sm:$0xf]
        %v2717 = vunpack.c.l.b16 %v2701
        %v2718 = vunpack.c.l.b16 %v2702
        %v2719 = vunpack.c.l.b16 %v2703
        %v2720 = vunpack.c.l.b16 %v2704
        %v2721 = vunpack.c.l.b16 %v2705
        %v2722 = vunpack.c.l.b16 %v2706
        %v2723 = vunpack.c.l.b16 %v2707
        %v2724 = vunpack.c.l.b16 %v2708
        %v2725 = vpack.c.b16 %v2718, %v2717
        %v2726 = vpack.c.b16 %v2720, %v2719
        %v2727 = vpack.c.b16 %v2722, %v2721
        %v2728 = vpack.c.b16 %v2724, %v2723
        %v2734 = vsel %vm1196, %v2699, 0
        %2736 = vmatpush.bf16.msra.mxu0 0
        %2737 = vmatpush.bf16.msra.mxu0 0
        %2738 = vmatpush.bf16.msra.mxu0 0
        %2739 = vmatpush.bf16.msra.mxu0 0
        %2740 = vmatpush.bf16.msra.mxu0 %v2728
        %2741 = vmatpush.bf16.msra.mxu0 %v2727
        %2742 = vmatpush.bf16.msra.mxu0 %v2726
        %2743 = vmatpush.bf16.msra.mxu0 %v2725
        %2744 = vmatmul.bf16.gmra.mxu0 %v2734
        %v2745 = vpop.f32.mrf.mxu0
        %v2746 = vadd.f32 0.0, %v2745
        %v2747 = vpop.f32.mrf.mxu0
        %2748 = vdwg.mxu0
        %v2749 = vadd.f32 %v2680, %v2746
        %s2750 = scalar_lea.vmem %s6, 8
        %v2751 = vld [vmem:[%s2750] sm:$0x1]
        %v2753 = vsel %vm2195, %v2751, 0
        %2755 = vmatpush.bf16.msra.mxu0 0
        %2756 = vmatpush.bf16.msra.mxu0 0
        %2757 = vmatpush.bf16.msra.mxu0 0
        %2758 = vmatpush.bf16.msra.mxu0 0
        %2759 = vmatpush.bf16.msra.mxu0 0
        %2760 = vmatpush.bf16.msra.mxu0 0
        %2761 = vmatpush.bf16.msra.mxu0 0
        %2762 = vmatpush.bf16.msra.mxu0 %v2204
        %2763 = vmatmul.bf16.gmra.mxu0 %v2753
        %v2764 = vpop.f32.mrf.mxu0
        %v2765 = vadd.f32 0.0, %v2764
        %v2766 = vpop.f32.mrf.mxu0
        %2767 = vdwg.mxu0
        %v2768 = vpack.c.bf16 %v2765, %v2765
        %s2769 = scalar_lea.vmem %s7, 256
        %v2770 = vld [vmem:[%s2769] sm:$0xf]
        %v2771 = vld [vmem:[%s2769 + $0x4] sm:$0xf]
        %v2772 = vld [vmem:[%s2769 + $0x8] sm:$0xf]
        %v2773 = vld [vmem:[%s2769 + $0xc] sm:$0xf]
        %v2774 = vld [vmem:[%s2769 + $0x10] sm:$0xf]
        %v2775 = vld [vmem:[%s2769 + $0x14] sm:$0xf]
        %v2776 = vld [vmem:[%s2769 + $0x18] sm:$0xf]
        %v2777 = vld [vmem:[%s2769 + $0x1c] sm:$0xf]
        %v2786 = vunpack.c.l.b16 %v2770
        %v2787 = vunpack.c.l.b16 %v2771
        %v2788 = vunpack.c.l.b16 %v2772
        %v2789 = vunpack.c.l.b16 %v2773
        %v2790 = vunpack.c.l.b16 %v2774
        %v2791 = vunpack.c.l.b16 %v2775
        %v2792 = vunpack.c.l.b16 %v2776
        %v2793 = vunpack.c.l.b16 %v2777
        %v2794 = vpack.c.b16 %v2787, %v2786
        %v2795 = vpack.c.b16 %v2789, %v2788
        %v2796 = vpack.c.b16 %v2791, %v2790
        %v2797 = vpack.c.b16 %v2793, %v2792
        %v2803 = vsel %vm1196, %v2768, 0
        %2805 = vmatpush.bf16.msra.mxu0 0
        %2806 = vmatpush.bf16.msra.mxu0 0
        %2807 = vmatpush.bf16.msra.mxu0 0
        %2808 = vmatpush.bf16.msra.mxu0 0
        %2809 = vmatpush.bf16.msra.mxu0 %v2797
        %2810 = vmatpush.bf16.msra.mxu0 %v2796
        %2811 = vmatpush.bf16.msra.mxu0 %v2795
        %2812 = vmatpush.bf16.msra.mxu0 %v2794
        %2813 = vmatmul.bf16.gmra.mxu0 %v2803
        %v2814 = vpop.f32.mrf.mxu0
        %v2815 = vadd.f32 0.0, %v2814
        %v2816 = vpop.f32.mrf.mxu0
        %2817 = vdwg.mxu0
        %v2818 = vadd.f32 %v2749, %v2815
        %v2819 = vld [vmem:[%s8] sm:$0x1]
        %v2820 = vadd.f32 %v2818, %v2819
        %v2821 = vmul.f32 %v2820, 0.5
        %v2822 = vtanh.pop %v2821
        %v2823 = vmul.f32 %v2822, 0.5
        %v2824 = vadd.f32 %v2823, 0.5
        %v2825 = vmul.f32 %v2820, %v2824
        %v2826 = vpack.c.bf16 %v2825, %v2825
        %v2827 = vld [vmem:[%s9] sm:$0xff]
        %v2828 = vld [vmem:[%s9 + $0x8] sm:$0xff]
        %v2829 = vld [vmem:[%s9 + $0x10] sm:$0xff]
        %v2830 = vld [vmem:[%s9 + $0x18] sm:$0xff]
        %v2831 = vld [vmem:[%s9 + $0x20] sm:$0xff]
        %v2832 = vld [vmem:[%s9 + $0x28] sm:$0xff]
        %v2833 = vld [vmem:[%s9 + $0x30] sm:$0xff]
        %v2834 = vld [vmem:[%s9 + $0x38] sm:$0xff]
        %v2835 = vld [vmem:[%s9 + $0x40] sm:$0xff]
        %v2836 = vld [vmem:[%s9 + $0x48] sm:$0xff]
        %v2837 = vld [vmem:[%s9 + $0x50] sm:$0xff]
        %v2838 = vld [vmem:[%s9 + $0x58] sm:$0xff]
        %v2839 = vld [vmem:[%s9 + $0x60] sm:$0xff]
        %v2840 = vld [vmem:[%s9 + $0x68] sm:$0xff]
        %v2841 = vld [vmem:[%s9 + $0x70] sm:$0xff]
        %v2842 = vld [vmem:[%s9 + $0x78] sm:$0xff]
        %v2843 = vld [vmem:[%s9 + $0x80] sm:$0xff]
        %v2844 = vld [vmem:[%s9 + $0x88] sm:$0xff]
        %v2845 = vld [vmem:[%s9 + $0x90] sm:$0xff]
        %v2846 = vld [vmem:[%s9 + $0x98] sm:$0xff]
        %v2847 = vld [vmem:[%s9 + $0xa0] sm:$0xff]
        %v2848 = vld [vmem:[%s9 + $0xa8] sm:$0xff]
        %v2849 = vld [vmem:[%s9 + $0xb0] sm:$0xff]
        %v2850 = vld [vmem:[%s9 + $0xb8] sm:$0xff]
        %v2851 = vld [vmem:[%s9 + $0xc0] sm:$0xff]
        %v2852 = vld [vmem:[%s9 + $0xc8] sm:$0xff]
        %v2853 = vld [vmem:[%s9 + $0xd0] sm:$0xff]
        %v2854 = vld [vmem:[%s9 + $0xd8] sm:$0xff]
        %v2855 = vld [vmem:[%s9 + $0xe0] sm:$0xff]
        %v2856 = vld [vmem:[%s9 + $0xe8] sm:$0xff]
        %v2857 = vld [vmem:[%s9 + $0xf0] sm:$0xff]
        %v2858 = vld [vmem:[%s9 + $0xf8] sm:$0xff]
        %v2859 = vld [vmem:[%s10] sm:$0xff]
        %v2892 = vunpack.c.l.b16 %v2827
        %v2893 = vunpack.c.h.b16 %v2827
        %v2894 = vunpack.c.l.b16 %v2828
        %v2895 = vunpack.c.h.b16 %v2828
        %v2896 = vunpack.c.l.b16 %v2829
        %v2897 = vunpack.c.h.b16 %v2829
        %v2898 = vunpack.c.l.b16 %v2830
        %v2899 = vunpack.c.h.b16 %v2830
        %v2900 = vunpack.c.l.b16 %v2831
        %v2901 = vunpack.c.h.b16 %v2831
        %v2902 = vunpack.c.l.b16 %v2832
        %v2903 = vunpack.c.h.b16 %v2832
        %v2904 = vunpack.c.l.b16 %v2833
        %v2905 = vunpack.c.h.b16 %v2833
        %v2906 = vunpack.c.l.b16 %v2834
        %v2907 = vunpack.c.h.b16 %v2834
        %v2908 = vunpack.c.l.b16 %v2835
        %v2909 = vunpack.c.h.b16 %v2835
        %v2910 = vunpack.c.l.b16 %v2836
        %v2911 = vunpack.c.h.b16 %v2836
        %v2912 = vunpack.c.l.b16 %v2837
        %v2913 = vunpack.c.h.b16 %v2837
        %v2914 = vunpack.c.l.b16 %v2838
        %v2915 = vunpack.c.h.b16 %v2838
        %v2916 = vunpack.c.l.b16 %v2839
        %v2917 = vunpack.c.h.b16 %v2839
        %v2918 = vunpack.c.l.b16 %v2840
        %v2919 = vunpack.c.h.b16 %v2840
        %v2920 = vunpack.c.l.b16 %v2841
        %v2921 = vunpack.c.h.b16 %v2841
        %v2922 = vunpack.c.l.b16 %v2842
        %v2923 = vunpack.c.h.b16 %v2842
        %v2924 = vunpack.c.l.b16 %v2843
        %v2925 = vunpack.c.h.b16 %v2843
        %v2926 = vunpack.c.l.b16 %v2844
        %v2927 = vunpack.c.h.b16 %v2844
        %v2928 = vunpack.c.l.b16 %v2845
        %v2929 = vunpack.c.h.b16 %v2845
        %v2930 = vunpack.c.l.b16 %v2846
        %v2931 = vunpack.c.h.b16 %v2846
        %v2932 = vunpack.c.l.b16 %v2847
        %v2933 = vunpack.c.h.b16 %v2847
        %v2934 = vunpack.c.l.b16 %v2848
        %v2935 = vunpack.c.h.b16 %v2848
        %v2936 = vunpack.c.l.b16 %v2849
        %v2937 = vunpack.c.h.b16 %v2849
        %v2938 = vunpack.c.l.b16 %v2850
        %v2939 = vunpack.c.h.b16 %v2850
        %v2940 = vunpack.c.l.b16 %v2851
        %v2941 = vunpack.c.h.b16 %v2851
        %v2942 = vunpack.c.l.b16 %v2852
        %v2943 = vunpack.c.h.b16 %v2852
        %v2944 = vunpack.c.l.b16 %v2853
        %v2945 = vunpack.c.h.b16 %v2853
        %v2946 = vunpack.c.l.b16 %v2854
        %v2947 = vunpack.c.h.b16 %v2854
        %v2948 = vunpack.c.l.b16 %v2855
        %v2949 = vunpack.c.h.b16 %v2855
        %v2950 = vunpack.c.l.b16 %v2856
        %v2951 = vunpack.c.h.b16 %v2856
        %v2952 = vunpack.c.l.b16 %v2857
        %v2953 = vunpack.c.h.b16 %v2857
        %v2954 = vunpack.c.l.b16 %v2858
        %v2955 = vunpack.c.h.b16 %v2858
        %v2956 = vpack.c.b16 %v2900, %v2892
        %v2957 = vpack.c.b16 %v2901, %v2893
        %v2958 = vpack.c.b16 %v2902, %v2894
        %v2959 = vpack.c.b16 %v2903, %v2895
        %v2960 = vpack.c.b16 %v2904, %v2896
        %v2961 = vpack.c.b16 %v2905, %v2897
        %v2962 = vpack.c.b16 %v2906, %v2898
        %v2963 = vpack.c.b16 %v2907, %v2899
        %v2964 = vpack.c.b16 %v2916, %v2908
        %v2965 = vpack.c.b16 %v2917, %v2909
        %v2966 = vpack.c.b16 %v2918, %v2910
        %v2967 = vpack.c.b16 %v2919, %v2911
        %v2968 = vpack.c.b16 %v2920, %v2912
        %v2969 = vpack.c.b16 %v2921, %v2913
        %v2970 = vpack.c.b16 %v2922, %v2914
        %v2971 = vpack.c.b16 %v2923, %v2915
        %v2972 = vpack.c.b16 %v2932, %v2924
        %v2973 = vpack.c.b16 %v2933, %v2925
        %v2974 = vpack.c.b16 %v2934, %v2926
        %v2975 = vpack.c.b16 %v2935, %v2927
        %v2976 = vpack.c.b16 %v2936, %v2928
        %v2977 = vpack.c.b16 %v2937, %v2929
        %v2978 = vpack.c.b16 %v2938, %v2930
        %v2979 = vpack.c.b16 %v2939, %v2931
        %v2980 = vpack.c.b16 %v2948, %v2940
        %v2981 = vpack.c.b16 %v2949, %v2941
        %v2982 = vpack.c.b16 %v2950, %v2942
        %v2983 = vpack.c.b16 %v2951, %v2943
        %v2984 = vpack.c.b16 %v2952, %v2944
        %v2985 = vpack.c.b16 %v2953, %v2945
        %v2986 = vpack.c.b16 %v2954, %v2946
        %v2987 = vpack.c.b16 %v2955, %v2947
        %v3021 = vperm.slane %v2859, 0
        %v3022 = vperm.slane %v2859, 1
        %v3023 = vperm.slane %v2859, 2
        %v3024 = vperm.slane %v2859, 3
        %v3025 = vperm.slane %v2859, 4
        %v3026 = vperm.slane %v2859, 5
        %v3027 = vperm.slane %v2859, 6
        %v3028 = vperm.slane %v2859, 7
        %v3038 = vsel %vm1196, %v2826, 0
        %3040 = vmatpush.bf16.msra.mxu0 0
        %3041 = vmatpush.bf16.msra.mxu0 0
        %3042 = vmatpush.bf16.msra.mxu0 0
        %3043 = vmatpush.bf16.msra.mxu0 0
        %3044 = vmatpush.bf16.msra.mxu0 %v2980
        %3045 = vmatpush.bf16.msra.mxu0 %v2972
        %3046 = vmatpush.bf16.msra.mxu0 %v2964
        %3047 = vmatpush.bf16.msra.mxu0 %v2956
        %3048 = vmatmul.bf16.gmra.mxu0 %v3038
        %v3049 = vpop.f32.mrf.mxu0
        %v3050 = vadd.f32 %v3021, %v3049
        %v3051 = vpop.f32.mrf.mxu0
        %3052 = vdwg.mxu0
        %3053 = vmatpush.bf16.msra.mxu0 0
        %3054 = vmatpush.bf16.msra.mxu0 0
        %3055 = vmatpush.bf16.msra.mxu0 0
        %3056 = vmatpush.bf16.msra.mxu0 0
        %3057 = vmatpush.bf16.msra.mxu0 %v2981
        %3058 = vmatpush.bf16.msra.mxu0 %v2973
        %3059 = vmatpush.bf16.msra.mxu0 %v2965
        %3060 = vmatpush.bf16.msra.mxu0 %v2957
        %3061 = vmatmul.bf16.gmra.mxu0 %v3038
        %v3062 = vpop.f32.mrf.mxu0
        %v3063 = vadd.f32 %v3022, %v3062
        %v3064 = vpop.f32.mrf.mxu0
        %3065 = vdwg.mxu0
        %3066 = vmatpush.bf16.msra.mxu0 0
        %3067 = vmatpush.bf16.msra.mxu0 0
        %3068 = vmatpush.bf16.msra.mxu0 0
        %3069 = vmatpush.bf16.msra.mxu0 0
        %3070 = vmatpush.bf16.msra.mxu0 %v2982
        %3071 = vmatpush.bf16.msra.mxu0 %v2974
        %3072 = vmatpush.bf16.msra.mxu0 %v2966
        %3073 = vmatpush.bf16.msra.mxu0 %v2958
        %3074 = vmatmul.bf16.gmra.mxu0 %v3038
        %v3075 = vpop.f32.mrf.mxu0
        %v3076 = vadd.f32 %v3023, %v3075
        %v3077 = vpop.f32.mrf.mxu0
        %3078 = vdwg.mxu0
        %3079 = vmatpush.bf16.msra.mxu0 0
        %3080 = vmatpush.bf16.msra.mxu0 0
        %3081 = vmatpush.bf16.msra.mxu0 0
        %3082 = vmatpush.bf16.msra.mxu0 0
        %3083 = vmatpush.bf16.msra.mxu0 %v2983
        %3084 = vmatpush.bf16.msra.mxu0 %v2975
        %3085 = vmatpush.bf16.msra.mxu0 %v2967
        %3086 = vmatpush.bf16.msra.mxu0 %v2959
        %3087 = vmatmul.bf16.gmra.mxu0 %v3038
        %v3088 = vpop.f32.mrf.mxu0
        %v3089 = vadd.f32 %v3024, %v3088
        %v3090 = vpop.f32.mrf.mxu0
        %3091 = vdwg.mxu0
        %3092 = vmatpush.bf16.msra.mxu0 0
        %3093 = vmatpush.bf16.msra.mxu0 0
        %3094 = vmatpush.bf16.msra.mxu0 0
        %3095 = vmatpush.bf16.msra.mxu0 0
        %3096 = vmatpush.bf16.msra.mxu0 %v2984
        %3097 = vmatpush.bf16.msra.mxu0 %v2976
        %3098 = vmatpush.bf16.msra.mxu0 %v2968
        %3099 = vmatpush.bf16.msra.mxu0 %v2960
        %3100 = vmatmul.bf16.gmra.mxu0 %v3038
        %v3101 = vpop.f32.mrf.mxu0
        %v3102 = vadd.f32 %v3025, %v3101
        %v3103 = vpop.f32.mrf.mxu0
        %3104 = vdwg.mxu0
        %3105 = vmatpush.bf16.msra.mxu0 0
        %3106 = vmatpush.bf16.msra.mxu0 0
        %3107 = vmatpush.bf16.msra.mxu0 0
        %3108 = vmatpush.bf16.msra.mxu0 0
        %3109 = vmatpush.bf16.msra.mxu0 %v2985
        %3110 = vmatpush.bf16.msra.mxu0 %v2977
        %3111 = vmatpush.bf16.msra.mxu0 %v2969
        %3112 = vmatpush.bf16.msra.mxu0 %v2961
        %3113 = vmatmul.bf16.gmra.mxu0 %v3038
        %v3114 = vpop.f32.mrf.mxu0
        %v3115 = vadd.f32 %v3026, %v3114
        %v3116 = vpop.f32.mrf.mxu0
        %3117 = vdwg.mxu0
        %3118 = vmatpush.bf16.msra.mxu0 0
        %3119 = vmatpush.bf16.msra.mxu0 0
        %3120 = vmatpush.bf16.msra.mxu0 0
        %3121 = vmatpush.bf16.msra.mxu0 0
        %3122 = vmatpush.bf16.msra.mxu0 %v2986
        %3123 = vmatpush.bf16.msra.mxu0 %v2978
        %3124 = vmatpush.bf16.msra.mxu0 %v2970
        %3125 = vmatpush.bf16.msra.mxu0 %v2962
        %3126 = vmatmul.bf16.gmra.mxu0 %v3038
        %v3127 = vpop.f32.mrf.mxu0
        %v3128 = vadd.f32 %v3027, %v3127
        %v3129 = vpop.f32.mrf.mxu0
        %3130 = vdwg.mxu0
        %3131 = vmatpush.bf16.msra.mxu0 0
        %3132 = vmatpush.bf16.msra.mxu0 0
        %3133 = vmatpush.bf16.msra.mxu0 0
        %3134 = vmatpush.bf16.msra.mxu0 0
        %3135 = vmatpush.bf16.msra.mxu0 %v2987
        %3136 = vmatpush.bf16.msra.mxu0 %v2979
        %3137 = vmatpush.bf16.msra.mxu0 %v2971
        %3138 = vmatpush.bf16.msra.mxu0 %v2963
        %3139 = vmatmul.bf16.gmra.mxu0 %v3038
        %v3140 = vpop.f32.mrf.mxu0
        %v3141 = vadd.f32 %v3028, %v3140
        %v3142 = vpop.f32.mrf.mxu0
        %3143 = vdwg.mxu0
        %v3144 = vmul.f32 %v3050, 0.5
        %v3145 = vmul.f32 %v3063, 0.5
        %v3146 = vmul.f32 %v3076, 0.5
        %v3147 = vmul.f32 %v3089, 0.5
        %v3148 = vmul.f32 %v3102, 0.5
        %v3149 = vmul.f32 %v3115, 0.5
        %v3150 = vmul.f32 %v3128, 0.5
        %v3151 = vmul.f32 %v3141, 0.5
        %v3152 = vtanh.pop %v3144
        %v3153 = vtanh.pop %v3145
        %v3154 = vtanh.pop %v3146
        %v3155 = vtanh.pop %v3147
        %v3156 = vtanh.pop %v3148
        %v3157 = vtanh.pop %v3149
        %v3158 = vtanh.pop %v3150
        %v3159 = vtanh.pop %v3151
        %v3160 = vmul.f32 %v3152, 0.5
        %v3161 = vmul.f32 %v3153, 0.5
        %v3162 = vmul.f32 %v3154, 0.5
        %v3163 = vmul.f32 %v3155, 0.5
        %v3164 = vmul.f32 %v3156, 0.5
        %v3165 = vmul.f32 %v3157, 0.5
        %v3166 = vmul.f32 %v3158, 0.5
        %v3167 = vmul.f32 %v3159, 0.5
        %v3168 = vadd.f32 %v3160, 0.5
        %v3169 = vadd.f32 %v3161, 0.5
        %v3170 = vadd.f32 %v3162, 0.5
        %v3171 = vadd.f32 %v3163, 0.5
        %v3172 = vadd.f32 %v3164, 0.5
        %v3173 = vadd.f32 %v3165, 0.5
        %v3174 = vadd.f32 %v3166, 0.5
        %v3175 = vadd.f32 %v3167, 0.5
        %v3176 = vmul.f32 %v3050, %v3168
        %v3177 = vmul.f32 %v3063, %v3169
        %v3178 = vmul.f32 %v3076, %v3170
        %v3179 = vmul.f32 %v3089, %v3171
        %v3180 = vmul.f32 %v3102, %v3172
        %v3181 = vmul.f32 %v3115, %v3173
        %v3182 = vmul.f32 %v3128, %v3174
        %v3183 = vmul.f32 %v3141, %v3175
        %v3184 = vpack.c.bf16 %v3176, %v3176
        %v3185 = vpack.c.bf16 %v3177, %v3177
        %v3186 = vpack.c.bf16 %v3178, %v3178
        %v3187 = vpack.c.bf16 %v3179, %v3179
        %v3188 = vpack.c.bf16 %v3180, %v3180
        %v3189 = vpack.c.bf16 %v3181, %v3181
        %v3190 = vpack.c.bf16 %v3182, %v3182
        %v3191 = vpack.c.bf16 %v3183, %v3183
        %v3192 = vld [vmem:[%s11] sm:$0xf]
        %v3193 = vld [vmem:[%s11 + $0x4] sm:$0xf]
        %v3194 = vld [vmem:[%s11 + $0x8] sm:$0xf]
        %v3195 = vld [vmem:[%s11 + $0xc] sm:$0xf]
        %v3196 = vld [vmem:[%s11 + $0x10] sm:$0xf]
        %v3197 = vld [vmem:[%s11 + $0x14] sm:$0xf]
        %v3198 = vld [vmem:[%s11 + $0x18] sm:$0xf]
        %v3199 = vld [vmem:[%s11 + $0x1c] sm:$0xf]
        %v3200 = vld [vmem:[%s11 + $0x20] sm:$0xf]
        %v3201 = vld [vmem:[%s11 + $0x24] sm:$0xf]
        %v3202 = vld [vmem:[%s11 + $0x28] sm:$0xf]
        %v3203 = vld [vmem:[%s11 + $0x2c] sm:$0xf]
        %v3204 = vld [vmem:[%s11 + $0x30] sm:$0xf]
        %v3205 = vld [vmem:[%s11 + $0x34] sm:$0xf]
        %v3206 = vld [vmem:[%s11 + $0x38] sm:$0xf]
        %v3207 = vld [vmem:[%s11 + $0x3c] sm:$0xf]
        %v3208 = vld [vmem:[%s11 + $0x40] sm:$0xf]
        %v3209 = vld [vmem:[%s11 + $0x44] sm:$0xf]
        %v3210 = vld [vmem:[%s11 + $0x48] sm:$0xf]
        %v3211 = vld [vmem:[%s11 + $0x4c] sm:$0xf]
        %v3212 = vld [vmem:[%s11 + $0x50] sm:$0xf]
        %v3213 = vld [vmem:[%s11 + $0x54] sm:$0xf]
        %v3214 = vld [vmem:[%s11 + $0x58] sm:$0xf]
        %v3215 = vld [vmem:[%s11 + $0x5c] sm:$0xf]
        %v3216 = vld [vmem:[%s11 + $0x60] sm:$0xf]
        %v3217 = vld [vmem:[%s11 + $0x64] sm:$0xf]
        %v3218 = vld [vmem:[%s11 + $0x68] sm:$0xf]
        %v3219 = vld [vmem:[%s11 + $0x6c] sm:$0xf]
        %v3220 = vld [vmem:[%s11 + $0x70] sm:$0xf]
        %v3221 = vld [vmem:[%s11 + $0x74] sm:$0xf]
        %v3222 = vld [vmem:[%s11 + $0x78] sm:$0xf]
        %v3223 = vld [vmem:[%s11 + $0x7c] sm:$0xf]
        %v3224 = vld [vmem:[%s11 + $0x80] sm:$0xf]
        %v3225 = vld [vmem:[%s11 + $0x84] sm:$0xf]
        %v3226 = vld [vmem:[%s11 + $0x88] sm:$0xf]
        %v3227 = vld [vmem:[%s11 + $0x8c] sm:$0xf]
        %v3228 = vld [vmem:[%s11 + $0x90] sm:$0xf]
        %v3229 = vld [vmem:[%s11 + $0x94] sm:$0xf]
        %v3230 = vld [vmem:[%s11 + $0x98] sm:$0xf]
        %v3231 = vld [vmem:[%s11 + $0x9c] sm:$0xf]
        %v3232 = vld [vmem:[%s11 + $0xa0] sm:$0xf]
        %v3233 = vld [vmem:[%s11 + $0xa4] sm:$0xf]
        %v3234 = vld [vmem:[%s11 + $0xa8] sm:$0xf]
        %v3235 = vld [vmem:[%s11 + $0xac] sm:$0xf]
        %v3236 = vld [vmem:[%s11 + $0xb0] sm:$0xf]
        %v3237 = vld [vmem:[%s11 + $0xb4] sm:$0xf]
        %v3238 = vld [vmem:[%s11 + $0xb8] sm:$0xf]
        %v3239 = vld [vmem:[%s11 + $0xbc] sm:$0xf]
        %v3240 = vld [vmem:[%s11 + $0xc0] sm:$0xf]
        %v3241 = vld [vmem:[%s11 + $0xc4] sm:$0xf]
        %v3242 = vld [vmem:[%s11 + $0xc8] sm:$0xf]
        %v3243 = vld [vmem:[%s11 + $0xcc] sm:$0xf]
        %v3244 = vld [vmem:[%s11 + $0xd0] sm:$0xf]
        %v3245 = vld [vmem:[%s11 + $0xd4] sm:$0xf]
        %v3246 = vld [vmem:[%s11 + $0xd8] sm:$0xf]
        %v3247 = vld [vmem:[%s11 + $0xdc] sm:$0xf]
        %v3248 = vld [vmem:[%s11 + $0xe0] sm:$0xf]
        %v3249 = vld [vmem:[%s11 + $0xe4] sm:$0xf]
        %v3250 = vld [vmem:[%s11 + $0xe8] sm:$0xf]
        %v3251 = vld [vmem:[%s11 + $0xec] sm:$0xf]
        %v3252 = vld [vmem:[%s11 + $0xf0] sm:$0xf]
        %v3253 = vld [vmem:[%s11 + $0xf4] sm:$0xf]
        %v3254 = vld [vmem:[%s11 + $0xf8] sm:$0xf]
        %v3255 = vld [vmem:[%s11 + $0xfc] sm:$0xf]
        %v3256 = vld [vmem:[%s11 + $0x100] sm:$0xf]
        %v3257 = vld [vmem:[%s11 + $0x104] sm:$0xf]
        %v3258 = vld [vmem:[%s11 + $0x108] sm:$0xf]
        %v3259 = vld [vmem:[%s11 + $0x10c] sm:$0xf]
        %v3260 = vld [vmem:[%s11 + $0x110] sm:$0xf]
        %v3261 = vld [vmem:[%s11 + $0x114] sm:$0xf]
        %v3262 = vld [vmem:[%s11 + $0x118] sm:$0xf]
        %v3263 = vld [vmem:[%s11 + $0x11c] sm:$0xf]
        %v3264 = vld [vmem:[%s11 + $0x120] sm:$0xf]
        %v3265 = vld [vmem:[%s11 + $0x124] sm:$0xf]
        %v3266 = vld [vmem:[%s11 + $0x128] sm:$0xf]
        %v3267 = vld [vmem:[%s11 + $0x12c] sm:$0xf]
        %v3268 = vld [vmem:[%s11 + $0x130] sm:$0xf]
        %v3269 = vld [vmem:[%s11 + $0x134] sm:$0xf]
        %v3270 = vld [vmem:[%s11 + $0x138] sm:$0xf]
        %v3271 = vld [vmem:[%s11 + $0x13c] sm:$0xf]
        %v3272 = vld [vmem:[%s11 + $0x140] sm:$0xf]
        %v3273 = vld [vmem:[%s11 + $0x144] sm:$0xf]
        %v3274 = vld [vmem:[%s11 + $0x148] sm:$0xf]
        %v3275 = vld [vmem:[%s11 + $0x14c] sm:$0xf]
        %v3276 = vld [vmem:[%s11 + $0x150] sm:$0xf]
        %v3277 = vld [vmem:[%s11 + $0x154] sm:$0xf]
        %v3278 = vld [vmem:[%s11 + $0x158] sm:$0xf]
        %v3279 = vld [vmem:[%s11 + $0x15c] sm:$0xf]
        %v3280 = vld [vmem:[%s11 + $0x160] sm:$0xf]
        %v3281 = vld [vmem:[%s11 + $0x164] sm:$0xf]
        %v3282 = vld [vmem:[%s11 + $0x168] sm:$0xf]
        %v3283 = vld [vmem:[%s11 + $0x16c] sm:$0xf]
        %v3284 = vld [vmem:[%s11 + $0x170] sm:$0xf]
        %v3285 = vld [vmem:[%s11 + $0x174] sm:$0xf]
        %v3286 = vld [vmem:[%s11 + $0x178] sm:$0xf]
        %v3287 = vld [vmem:[%s11 + $0x17c] sm:$0xf]
        %v3288 = vld [vmem:[%s11 + $0x180] sm:$0xf]
        %v3289 = vld [vmem:[%s11 + $0x184] sm:$0xf]
        %v3290 = vld [vmem:[%s11 + $0x188] sm:$0xf]
        %v3291 = vld [vmem:[%s11 + $0x18c] sm:$0xf]
        %v3292 = vld [vmem:[%s11 + $0x190] sm:$0xf]
        %v3293 = vld [vmem:[%s11 + $0x194] sm:$0xf]
        %v3294 = vld [vmem:[%s11 + $0x198] sm:$0xf]
        %v3295 = vld [vmem:[%s11 + $0x19c] sm:$0xf]
        %v3296 = vld [vmem:[%s11 + $0x1a0] sm:$0xf]
        %v3297 = vld [vmem:[%s11 + $0x1a4] sm:$0xf]
        %v3298 = vld [vmem:[%s11 + $0x1a8] sm:$0xf]
        %v3299 = vld [vmem:[%s11 + $0x1ac] sm:$0xf]
        %v3300 = vld [vmem:[%s11 + $0x1b0] sm:$0xf]
        %v3301 = vld [vmem:[%s11 + $0x1b4] sm:$0xf]
        %v3302 = vld [vmem:[%s11 + $0x1b8] sm:$0xf]
        %v3303 = vld [vmem:[%s11 + $0x1bc] sm:$0xf]
        %v3304 = vld [vmem:[%s11 + $0x1c0] sm:$0xf]
        %v3305 = vld [vmem:[%s11 + $0x1c4] sm:$0xf]
        %v3306 = vld [vmem:[%s11 + $0x1c8] sm:$0xf]
        %v3307 = vld [vmem:[%s11 + $0x1cc] sm:$0xf]
        %v3308 = vld [vmem:[%s11 + $0x1d0] sm:$0xf]
        %v3309 = vld [vmem:[%s11 + $0x1d4] sm:$0xf]
        %v3310 = vld [vmem:[%s11 + $0x1d8] sm:$0xf]
        %v3311 = vld [vmem:[%s11 + $0x1dc] sm:$0xf]
        %v3312 = vld [vmem:[%s11 + $0x1e0] sm:$0xf]
        %v3313 = vld [vmem:[%s11 + $0x1e4] sm:$0xf]
        %v3314 = vld [vmem:[%s11 + $0x1e8] sm:$0xf]
        %v3315 = vld [vmem:[%s11 + $0x1ec] sm:$0xf]
        %v3316 = vld [vmem:[%s11 + $0x1f0] sm:$0xf]
        %v3317 = vld [vmem:[%s11 + $0x1f4] sm:$0xf]
        %v3318 = vld [vmem:[%s11 + $0x1f8] sm:$0xf]
        %v3319 = vld [vmem:[%s11 + $0x1fc] sm:$0xf]
        %v3320 = vld [vmem:[%s12] sm:$0x1]
        %v3449 = vunpack.c.l.b16 %v3192
        %v3450 = vunpack.c.l.b16 %v3193
        %v3451 = vunpack.c.l.b16 %v3194
        %v3452 = vunpack.c.l.b16 %v3195
        %v3453 = vunpack.c.l.b16 %v3196
        %v3454 = vunpack.c.l.b16 %v3197
        %v3455 = vunpack.c.l.b16 %v3198
        %v3456 = vunpack.c.l.b16 %v3199
        %v3457 = vunpack.c.l.b16 %v3200
        %v3458 = vunpack.c.l.b16 %v3201
        %v3459 = vunpack.c.l.b16 %v3202
        %v3460 = vunpack.c.l.b16 %v3203
        %v3461 = vunpack.c.l.b16 %v3204
        %v3462 = vunpack.c.l.b16 %v3205
        %v3463 = vunpack.c.l.b16 %v3206
        %v3464 = vunpack.c.l.b16 %v3207
        %v3465 = vunpack.c.l.b16 %v3208
        %v3466 = vunpack.c.l.b16 %v3209
        %v3467 = vunpack.c.l.b16 %v3210
        %v3468 = vunpack.c.l.b16 %v3211
        %v3469 = vunpack.c.l.b16 %v3212
        %v3470 = vunpack.c.l.b16 %v3213
        %v3471 = vunpack.c.l.b16 %v3214
        %v3472 = vunpack.c.l.b16 %v3215
        %v3473 = vunpack.c.l.b16 %v3216
        %v3474 = vunpack.c.l.b16 %v3217
        %v3475 = vunpack.c.l.b16 %v3218
        %v3476 = vunpack.c.l.b16 %v3219
        %v3477 = vunpack.c.l.b16 %v3220
        %v3478 = vunpack.c.l.b16 %v3221
        %v3479 = vunpack.c.l.b16 %v3222
        %v3480 = vunpack.c.l.b16 %v3223
        %v3481 = vunpack.c.l.b16 %v3224
        %v3482 = vunpack.c.l.b16 %v3225
        %v3483 = vunpack.c.l.b16 %v3226
        %v3484 = vunpack.c.l.b16 %v3227
        %v3485 = vunpack.c.l.b16 %v3228
        %v3486 = vunpack.c.l.b16 %v3229
        %v3487 = vunpack.c.l.b16 %v3230
        %v3488 = vunpack.c.l.b16 %v3231
        %v3489 = vunpack.c.l.b16 %v3232
        %v3490 = vunpack.c.l.b16 %v3233
        %v3491 = vunpack.c.l.b16 %v3234
        %v3492 = vunpack.c.l.b16 %v3235
        %v3493 = vunpack.c.l.b16 %v3236
        %v3494 = vunpack.c.l.b16 %v3237
        %v3495 = vunpack.c.l.b16 %v3238
        %v3496 = vunpack.c.l.b16 %v3239
        %v3497 = vunpack.c.l.b16 %v3240
        %v3498 = vunpack.c.l.b16 %v3241
        %v3499 = vunpack.c.l.b16 %v3242
        %v3500 = vunpack.c.l.b16 %v3243
        %v3501 = vunpack.c.l.b16 %v3244
        %v3502 = vunpack.c.l.b16 %v3245
        %v3503 = vunpack.c.l.b16 %v3246
        %v3504 = vunpack.c.l.b16 %v3247
        %v3505 = vunpack.c.l.b16 %v3248
        %v3506 = vunpack.c.l.b16 %v3249
        %v3507 = vunpack.c.l.b16 %v3250
        %v3508 = vunpack.c.l.b16 %v3251
        %v3509 = vunpack.c.l.b16 %v3252
        %v3510 = vunpack.c.l.b16 %v3253
        %v3511 = vunpack.c.l.b16 %v3254
        %v3512 = vunpack.c.l.b16 %v3255
        %v3513 = vunpack.c.l.b16 %v3256
        %v3514 = vunpack.c.l.b16 %v3257
        %v3515 = vunpack.c.l.b16 %v3258
        %v3516 = vunpack.c.l.b16 %v3259
        %v3517 = vunpack.c.l.b16 %v3260
        %v3518 = vunpack.c.l.b16 %v3261
        %v3519 = vunpack.c.l.b16 %v3262
        %v3520 = vunpack.c.l.b16 %v3263
        %v3521 = vunpack.c.l.b16 %v3264
        %v3522 = vunpack.c.l.b16 %v3265
        %v3523 = vunpack.c.l.b16 %v3266
        %v3524 = vunpack.c.l.b16 %v3267
        %v3525 = vunpack.c.l.b16 %v3268
        %v3526 = vunpack.c.l.b16 %v3269
        %v3527 = vunpack.c.l.b16 %v3270
        %v3528 = vunpack.c.l.b16 %v3271
        %v3529 = vunpack.c.l.b16 %v3272
        %v3530 = vunpack.c.l.b16 %v3273
        %v3531 = vunpack.c.l.b16 %v3274
        %v3532 = vunpack.c.l.b16 %v3275
        %v3533 = vunpack.c.l.b16 %v3276
        %v3534 = vunpack.c.l.b16 %v3277
        %v3535 = vunpack.c.l.b16 %v3278
        %v3536 = vunpack.c.l.b16 %v3279
        %v3537 = vunpack.c.l.b16 %v3280
        %v3538 = vunpack.c.l.b16 %v3281
        %v3539 = vunpack.c.l.b16 %v3282
        %v3540 = vunpack.c.l.b16 %v3283
        %v3541 = vunpack.c.l.b16 %v3284
        %v3542 = vunpack.c.l.b16 %v3285
        %v3543 = vunpack.c.l.b16 %v3286
        %v3544 = vunpack.c.l.b16 %v3287
        %v3545 = vunpack.c.l.b16 %v3288
        %v3546 = vunpack.c.l.b16 %v3289
        %v3547 = vunpack.c.l.b16 %v3290
        %v3548 = vunpack.c.l.b16 %v3291
        %v3549 = vunpack.c.l.b16 %v3292
        %v3550 = vunpack.c.l.b16 %v3293
        %v3551 = vunpack.c.l.b16 %v3294
        %v3552 = vunpack.c.l.b16 %v3295
        %v3553 = vunpack.c.l.b16 %v3296
        %v3554 = vunpack.c.l.b16 %v3297
        %v3555 = vunpack.c.l.b16 %v3298
        %v3556 = vunpack.c.l.b16 %v3299
        %v3557 = vunpack.c.l.b16 %v3300
        %v3558 = vunpack.c.l.b16 %v3301
        %v3559 = vunpack.c.l.b16 %v3302
        %v3560 = vunpack.c.l.b16 %v3303
        %v3561 = vunpack.c.l.b16 %v3304
        %v3562 = vunpack.c.l.b16 %v3305
        %v3563 = vunpack.c.l.b16 %v3306
        %v3564 = vunpack.c.l.b16 %v3307
        %v3565 = vunpack.c.l.b16 %v3308
        %v3566 = vunpack.c.l.b16 %v3309
        %v3567 = vunpack.c.l.b16 %v3310
        %v3568 = vunpack.c.l.b16 %v3311
        %v3569 = vunpack.c.l.b16 %v3312
        %v3570 = vunpack.c.l.b16 %v3313
        %v3571 = vunpack.c.l.b16 %v3314
        %v3572 = vunpack.c.l.b16 %v3315
        %v3573 = vunpack.c.l.b16 %v3316
        %v3574 = vunpack.c.l.b16 %v3317
        %v3575 = vunpack.c.l.b16 %v3318
        %v3576 = vunpack.c.l.b16 %v3319
        %v3577 = vpack.c.b16 %v3450, %v3449
        %v3578 = vpack.c.b16 %v3452, %v3451
        %v3579 = vpack.c.b16 %v3454, %v3453
        %v3580 = vpack.c.b16 %v3456, %v3455
        %v3581 = vpack.c.b16 %v3458, %v3457
        %v3582 = vpack.c.b16 %v3460, %v3459
        %v3583 = vpack.c.b16 %v3462, %v3461
        %v3584 = vpack.c.b16 %v3464, %v3463
        %v3585 = vpack.c.b16 %v3466, %v3465
        %v3586 = vpack.c.b16 %v3468, %v3467
        %v3587 = vpack.c.b16 %v3470, %v3469
        %v3588 = vpack.c.b16 %v3472, %v3471
        %v3589 = vpack.c.b16 %v3474, %v3473
        %v3590 = vpack.c.b16 %v3476, %v3475
        %v3591 = vpack.c.b16 %v3478, %v3477
        %v3592 = vpack.c.b16 %v3480, %v3479
        %v3593 = vpack.c.b16 %v3482, %v3481
        %v3594 = vpack.c.b16 %v3484, %v3483
        %v3595 = vpack.c.b16 %v3486, %v3485
        %v3596 = vpack.c.b16 %v3488, %v3487
        %v3597 = vpack.c.b16 %v3490, %v3489
        %v3598 = vpack.c.b16 %v3492, %v3491
        %v3599 = vpack.c.b16 %v3494, %v3493
        %v3600 = vpack.c.b16 %v3496, %v3495
        %v3601 = vpack.c.b16 %v3498, %v3497
        %v3602 = vpack.c.b16 %v3500, %v3499
        %v3603 = vpack.c.b16 %v3502, %v3501
        %v3604 = vpack.c.b16 %v3504, %v3503
        %v3605 = vpack.c.b16 %v3506, %v3505
        %v3606 = vpack.c.b16 %v3508, %v3507
        %v3607 = vpack.c.b16 %v3510, %v3509
        %v3608 = vpack.c.b16 %v3512, %v3511
        %v3609 = vpack.c.b16 %v3514, %v3513
        %v3610 = vpack.c.b16 %v3516, %v3515
        %v3611 = vpack.c.b16 %v3518, %v3517
        %v3612 = vpack.c.b16 %v3520, %v3519
        %v3613 = vpack.c.b16 %v3522, %v3521
        %v3614 = vpack.c.b16 %v3524, %v3523
        %v3615 = vpack.c.b16 %v3526, %v3525
        %v3616 = vpack.c.b16 %v3528, %v3527
        %v3617 = vpack.c.b16 %v3530, %v3529
        %v3618 = vpack.c.b16 %v3532, %v3531
        %v3619 = vpack.c.b16 %v3534, %v3533
        %v3620 = vpack.c.b16 %v3536, %v3535
        %v3621 = vpack.c.b16 %v3538, %v3537
        %v3622 = vpack.c.b16 %v3540, %v3539
        %v3623 = vpack.c.b16 %v3542, %v3541
        %v3624 = vpack.c.b16 %v3544, %v3543
        %v3625 = vpack.c.b16 %v3546, %v3545
        %v3626 = vpack.c.b16 %v3548, %v3547
        %v3627 = vpack.c.b16 %v3550, %v3549
        %v3628 = vpack.c.b16 %v3552, %v3551
        %v3629 = vpack.c.b16 %v3554, %v3553
        %v3630 = vpack.c.b16 %v3556, %v3555
        %v3631 = vpack.c.b16 %v3558, %v3557
        %v3632 = vpack.c.b16 %v3560, %v3559
        %v3633 = vpack.c.b16 %v3562, %v3561
        %v3634 = vpack.c.b16 %v3564, %v3563
        %v3635 = vpack.c.b16 %v3566, %v3565
        %v3636 = vpack.c.b16 %v3568, %v3567
        %v3637 = vpack.c.b16 %v3570, %v3569
        %v3638 = vpack.c.b16 %v3572, %v3571
        %v3639 = vpack.c.b16 %v3574, %v3573
        %v3640 = vpack.c.b16 %v3576, %v3575
        %3705 = vmatpush.bf16.msra.mxu0 %v3584
        %3706 = vmatpush.bf16.msra.mxu0 %v3583
        %3707 = vmatpush.bf16.msra.mxu0 %v3582
        %3708 = vmatpush.bf16.msra.mxu0 %v3581
        %3709 = vmatpush.bf16.msra.mxu0 %v3580
        %3710 = vmatpush.bf16.msra.mxu0 %v3579
        %3711 = vmatpush.bf16.msra.mxu0 %v3578
        %3712 = vmatpush.bf16.msra.mxu0 %v3577
        %3713 = vmatmul.bf16.gmra.mxu0 %v3184
        %v3714 = vpop.f32.mrf.mxu0
        %v3715 = vadd.f32 %v3320, %v3714
        %v3716 = vpop.f32.mrf.mxu0
        %3717 = vdwg.mxu0
        %3718 = vmatpush.bf16.msra.mxu0 %v3592
        %3719 = vmatpush.bf16.msra.mxu0 %v3591
        %3720 = vmatpush.bf16.msra.mxu0 %v3590
        %3721 = vmatpush.bf16.msra.mxu0 %v3589
        %3722 = vmatpush.bf16.msra.mxu0 %v3588
        %3723 = vmatpush.bf16.msra.mxu0 %v3587
        %3724 = vmatpush.bf16.msra.mxu0 %v3586
        %3725 = vmatpush.bf16.msra.mxu0 %v3585
        %3726 = vmatmul.bf16.gmra.mxu0 %v3185
        %v3727 = vpop.f32.mrf.mxu0
        %v3728 = vadd.f32 %v3715, %v3727
        %v3729 = vpop.f32.mrf.mxu0
        %3730 = vdwg.mxu0
        %3731 = vmatpush.bf16.msra.mxu0 %v3600
        %3732 = vmatpush.bf16.msra.mxu0 %v3599
        %3733 = vmatpush.bf16.msra.mxu0 %v3598
        %3734 = vmatpush.bf16.msra.mxu0 %v3597
        %3735 = vmatpush.bf16.msra.mxu0 %v3596
        %3736 = vmatpush.bf16.msra.mxu0 %v3595
        %3737 = vmatpush.bf16.msra.mxu0 %v3594
        %3738 = vmatpush.bf16.msra.mxu0 %v3593
        %3739 = vmatmul.bf16.gmra.mxu0 %v3186
        %v3740 = vpop.f32.mrf.mxu0
        %v3741 = vadd.f32 %v3728, %v3740
        %v3742 = vpop.f32.mrf.mxu0
        %3743 = vdwg.mxu0
        %3744 = vmatpush.bf16.msra.mxu0 %v3608
        %3745 = vmatpush.bf16.msra.mxu0 %v3607
        %3746 = vmatpush.bf16.msra.mxu0 %v3606
        %3747 = vmatpush.bf16.msra.mxu0 %v3605
        %3748 = vmatpush.bf16.msra.mxu0 %v3604
        %3749 = vmatpush.bf16.msra.mxu0 %v3603
        %3750 = vmatpush.bf16.msra.mxu0 %v3602
        %3751 = vmatpush.bf16.msra.mxu0 %v3601
        %3752 = vmatmul.bf16.gmra.mxu0 %v3187
        %v3753 = vpop.f32.mrf.mxu0
        %v3754 = vadd.f32 %v3741, %v3753
        %v3755 = vpop.f32.mrf.mxu0
        %3756 = vdwg.mxu0
        %3757 = vmatpush.bf16.msra.mxu0 %v3616
        %3758 = vmatpush.bf16.msra.mxu0 %v3615
        %3759 = vmatpush.bf16.msra.mxu0 %v3614
        %3760 = vmatpush.bf16.msra.mxu0 %v3613
        %3761 = vmatpush.bf16.msra.mxu0 %v3612
        %3762 = vmatpush.bf16.msra.mxu0 %v3611
        %3763 = vmatpush.bf16.msra.mxu0 %v3610
        %3764 = vmatpush.bf16.msra.mxu0 %v3609
        %3765 = vmatmul.bf16.gmra.mxu0 %v3188
        %v3766 = vpop.f32.mrf.mxu0
        %v3767 = vadd.f32 %v3754, %v3766
        %v3768 = vpop.f32.mrf.mxu0
        %3769 = vdwg.mxu0
        %3770 = vmatpush.bf16.msra.mxu0 %v3624
        %3771 = vmatpush.bf16.msra.mxu0 %v3623
        %3772 = vmatpush.bf16.msra.mxu0 %v3622
        %3773 = vmatpush.bf16.msra.mxu0 %v3621
        %3774 = vmatpush.bf16.msra.mxu0 %v3620
        %3775 = vmatpush.bf16.msra.mxu0 %v3619
        %3776 = vmatpush.bf16.msra.mxu0 %v3618
        %3777 = vmatpush.bf16.msra.mxu0 %v3617
        %3778 = vmatmul.bf16.gmra.mxu0 %v3189
        %v3779 = vpop.f32.mrf.mxu0
        %v3780 = vadd.f32 %v3767, %v3779
        %v3781 = vpop.f32.mrf.mxu0
        %3782 = vdwg.mxu0
        %3783 = vmatpush.bf16.msra.mxu0 %v3632
        %3784 = vmatpush.bf16.msra.mxu0 %v3631
        %3785 = vmatpush.bf16.msra.mxu0 %v3630
        %3786 = vmatpush.bf16.msra.mxu0 %v3629
        %3787 = vmatpush.bf16.msra.mxu0 %v3628
        %3788 = vmatpush.bf16.msra.mxu0 %v3627
        %3789 = vmatpush.bf16.msra.mxu0 %v3626
        %3790 = vmatpush.bf16.msra.mxu0 %v3625
        %3791 = vmatmul.bf16.gmra.mxu0 %v3190
        %v3792 = vpop.f32.mrf.mxu0
        %v3793 = vadd.f32 %v3780, %v3792
        %v3794 = vpop.f32.mrf.mxu0
        %3795 = vdwg.mxu0
        %3796 = vmatpush.bf16.msra.mxu0 %v3640
        %3797 = vmatpush.bf16.msra.mxu0 %v3639
        %3798 = vmatpush.bf16.msra.mxu0 %v3638
        %3799 = vmatpush.bf16.msra.mxu0 %v3637
        %3800 = vmatpush.bf16.msra.mxu0 %v3636
        %3801 = vmatpush.bf16.msra.mxu0 %v3635
        %3802 = vmatpush.bf16.msra.mxu0 %v3634
        %3803 = vmatpush.bf16.msra.mxu0 %v3633
        %3804 = vmatmul.bf16.gmra.mxu0 %v3191
        %v3805 = vpop.f32.mrf.mxu0
        %v3806 = vadd.f32 %v3793, %v3805
        %v3807 = vpop.f32.mrf.mxu0
        %3808 = vdwg.mxu0
        %3810 = vset.pattern.permute.xlu0 0
        %3811 = vperm.xlu0 %3810, %v3806
        %v3812 = vpop.permute.xlu0 %3811
        %v3814 = vadd.f32 %v3812, %v3806
        %3815 = vrot.lane.b32.xlu0 %v3806, 127
        %v3816 = vpop.permute.xlu0 %3815
        %vm3818 = vcmask 8192
        %v3819 = vsel %vm3818, %v3816, 0.0
        %3820 = vadd.xlane.f32.xlu0 %v3819
        %v3821 = vpop.xlane.xlu0 %3820
        %v3822 = vrcp.pop 2.0
        %v3823 = vmul.f32 2.0, %v3822
        %v3824 = vsub.f32 1.0, %v3823
        %v3825 = vmul.f32 %v3822, %v3824
        %v3826 = vadd.f32 %v3822, %v3825
        %vm3827 = vweird.f32 %v3822
        %v3828 = vsel %vm3827, %v3822, %v3826
        %v3829 = vmul.f32 %v3821, %v3828
        %v3830 = vsub.f32 %v3814, %v3829
        %3832 = vrot.lane.b32.xlu0 %v3830, 127
        %v3833 = vpop.permute.xlu0 %3832
        %3835 = vst.msk [vmem:[%s432] sm:$0x1] %vm3818, %v3833
        %s3836 = sand.u32 %s313, 1
        %s3837 = scalar_lea.sflag [#allocation3], %s3836
        %s3838 = sand.u32 %s313, 1
        %s3839 = scalar_lea.vmem [#allocation2], %s3838
        // Predicated region
        $region73: #{duel_dqn_forward.1} parent=71 // pred_check
          %p3840 = pneg %p323
        $region74: #{duel_dqn_forward.1} parent=71 // pred_check_branch
          %3842 = sbr.rel (%p3840) target = $region76
        $region75: #{duel_dqn_forward.1} parent=71 // pred_region
          %3844 = vsyncadd %s3837, 0
          %s3845 = scalar_lea.hbm %s13, %s27
          %s3847 = sshll.u32 %s3839, 4
          %s3848 = int_to_ptr.vmem [resolvable:$true] %s3847
          %s3849 = sshll.u32 %s3845, 4
          %s3850 = int_to_ptr.hbm [resolvable:$true] %s3849
          %3852 = dma.vmem_to_hbm [thread:$0]  %s3848, 16, %s3850, %s3837
        $region76: #{duel_dqn_forward.1} parent=71 // pred_fallthru
          _
      $region72: #{duel_dqn_forward.1} parent=5 // pred_fallthru
        _
      %p3853 = scmp.le.s32.totalorder 2, %s22
      // Predicated region
      $region77: #{duel_dqn_forward.1} parent=5 // pred_check
        %p3854 = pneg %p3853
      $region78: #{duel_dqn_forward.1} parent=5 // pred_check_branch
        %3856 = sbr.rel (%p3854) target = $region80
      $region79: #{duel_dqn_forward.1} parent=5 // pred_region
        %s3857 = ssub.s32 %s22, 2
        // Predicated region
        $region81: #{duel_dqn_forward.1} parent=79 // pred_check
          %p3858 = pneg %p329
        $region82: #{duel_dqn_forward.1} parent=79 // pred_check_branch
          %3860 = sbr.rel (%p3858) target = $region84
        $region83: #{duel_dqn_forward.1} parent=79 // pred_region
          %s3861 = sand.u32 %s314, 1
          %s3862 = scalar_lea.sflag [#allocation3], %s3861
          %s3863 = sand.u32 %s314, 1
          %s3864 = scalar_lea.vmem [#allocation2], %s3863
          %3866 = dma.done %s3862, 16
        $region84: #{duel_dqn_forward.1} parent=79 // pred_fallthru
          _
      $region80: #{duel_dqn_forward.1} parent=5 // pred_fallthru
        _
    $region6: #{duel_dqn_forward.1} parent=1 // loop_footer
      %s26 = sadd.s32 1, %s22
    $region7: #{duel_dqn_forward.1} parent=1 // loop_footer_branch
      %21 = sbr.rel target = $region3
    $region8: #{duel_dqn_forward.1} parent=1 // loop_exit
      _
    %3867 = vsyncpa [#allocation3], 1
    %s3868 = scalar_lea.sflag [#allocation3], 1
    %3869 = vsyncpa %s3868, 1

</llo_original>
